<compile_context>
chip_gen: v7x
topology: tpu7x:2x2x1
jax: 0.10.0
libtpu: 0.0.40
codegen_flags: <defaults>
</compile_context>

<pallas_src>
import jax
import jax.numpy as jnp
import numpy as np
from jax.experimental import pallas as pl
from jax.experimental.pallas import tpu as pltpu

# ----------------------------- config (small) --------------------------------
B = 2            # batch
S = 16           # sequence length
H = 128          # hidden size   (stands in for 768)
NH = 4           # attention heads
HD = H // NH     # head dim
FF = 4 * H       # FFN intermediate
L = 2            # encoder layers
VOCAB = 512
MAXPOS = 64
NUM_LABELS = 3   # BIO / polarity classes
HEAD_PAD = 128   # lane-dense padded width for the fused heads output
EPS = 1e-12
BS = B * S


# --------------------------- fused forward kernel ------------------------------
def _fused_encoder_kernel(
    emb_ref, embg_ref, embb_ref, mask_ref,
    wqkv_ref, bqkv_ref, wo_ref, bo_ref, ln1g_ref, ln1b_ref,
    w1_ref, b1_ref, w2_ref, b2_ref, ln2g_ref, ln2b_ref,
    wh_ref, bh_ref,
    out_ref,
    h_ref,                      # VMEM scratch: resident [BS, H] activation
):
    l = pl.program_id(0)

    def layernorm(x, g, b):
        mu = jnp.mean(x, axis=-1, keepdims=True)
        var = jnp.mean((x - mu) ** 2, axis=-1, keepdims=True)
        return (x - mu) * jax.lax.rsqrt(var + EPS) * g + b

    # ---- layer 0: embedding LayerNorm (fused init) ----
    @pl.when(l == 0)
    def _():
        h_ref[...] = layernorm(emb_ref[...], embg_ref[...], embb_ref[...])

    h = h_ref[...]                                        # [BS, H]

    # ---- fused Q/K/V projection: one [BS,H] @ [H,3H] matmul ----
    qkv = jnp.dot(h, wqkv_ref[...], preferred_element_type=jnp.float32) + bqkv_ref[...]
    q = qkv[:, 0 * H:1 * H]
    k = qkv[:, 1 * H:2 * H]
    v = qkv[:, 2 * H:3 * H]

    # ---- multi-head attention + output projection (accumulated per head) ----
    wo = wo_ref[...]                                      # [H, H]
    mask = mask_ref[...]                                  # [BS, BS] block-diag + padding
    scale = 1.0 / float(np.sqrt(HD))
    attn_out = jnp.zeros((BS, H), jnp.float32)
    for hh in range(NH):
        qh = q[:, hh * HD:(hh + 1) * HD]                  # [BS, HD] static lane slice
        kh = k[:, hh * HD:(hh + 1) * HD]
        vh = v[:, hh * HD:(hh + 1) * HD]
        s = jax.lax.dot_general(qh, kh, (((1,), (1,)), ((), ())),
                                preferred_element_type=jnp.float32)    # Q @ K^T
        s = s * scale + mask
        s = s - jnp.max(s, axis=-1, keepdims=True)
        p = jnp.exp(s)
        p = p * pl.reciprocal(jnp.sum(p, axis=-1, keepdims=True), approx=True)
        ctx_h = jnp.dot(p, vh, preferred_element_type=jnp.float32)     # [BS, HD]
        attn_out = attn_out + jnp.dot(ctx_h, wo[hh * HD:(hh + 1) * HD, :],
                                      preferred_element_type=jnp.float32)
    attn_out = attn_out + bo_ref[...]

    # ---- residual + LayerNorm 1 (fused) ----
    h1 = layernorm(h + attn_out, ln1g_ref[...], ln1b_ref[...])

    # ---- FFN: GELU(h1 @ w1 + b1) @ w2 + b2 ----
    ff = jnp.dot(h1, w1_ref[...], preferred_element_type=jnp.float32) + b1_ref[...]
    ff = jax.nn.gelu(ff, approximate=True)
    ff = jnp.dot(ff, w2_ref[...], preferred_element_type=jnp.float32) + b2_ref[...]

    # ---- residual + LayerNorm 2 (fused) ----
    h2 = layernorm(h1 + ff, ln2g_ref[...], ln2b_ref[...])
    h_ref[...] = h2

    # ---- final layer: fused (padded, lane-dense) classification heads ----
    @pl.when(l == pl.num_programs(0) - 1)
    def _():
        out_ref[...] = (
            jnp.dot(h2, wh_ref[...], preferred_element_type=jnp.float32) + bh_ref[...]
        )


# ------------------------------ parameters ------------------------------------
def init_params(key):
    def nrm(k, shape, std=0.02):
        return std * jax.random.normal(k, shape, dtype=jnp.float32)

    keys = iter(jax.random.split(key, 16 + 16 * L))
    p = {
        "word_emb": nrm(next(keys), (VOCAB, H)),
        "pos_emb": nrm(next(keys), (MAXPOS, H)),
        "type_emb": nrm(next(keys), (2, H)),
        "emb_ln_g": jnp.ones((H,), jnp.float32),
        "emb_ln_b": jnp.zeros((H,), jnp.float32),
        "w_bio": nrm(next(keys), (H, NUM_LABELS)),
        "b_bio": jnp.zeros((NUM_LABELS,), jnp.float32),
        "w_pol": nrm(next(keys), (H, NUM_LABELS)),
        "b_pol": jnp.zeros((NUM_LABELS,), jnp.float32),
        "layers": [],
    }
    for _ in range(L):
        p["layers"].append(
            {
                "wq": nrm(next(keys), (H, H)), "bq": jnp.zeros((H,), jnp.float32),
                "wk": nrm(next(keys), (H, H)), "bk": jnp.zeros((H,), jnp.float32),
                "wv": nrm(next(keys), (H, H)), "bv": jnp.zeros((H,), jnp.float32),
                "wo": nrm(next(keys), (H, H)), "bo": jnp.zeros((H,), jnp.float32),
                "ln1_g": jnp.ones((H,), jnp.float32),
                "ln1_b": jnp.zeros((H,), jnp.float32),
                "w1": nrm(next(keys), (H, FF)), "b1": jnp.zeros((FF,), jnp.float32),
                "w2": nrm(next(keys), (FF, H)), "b2": jnp.zeros((H,), jnp.float32),
                "ln2_g": jnp.ones((H,), jnp.float32),
                "ln2_b": jnp.zeros((H,), jnp.float32),
            }
        )
    return p


def pack_params(p):
    """Stack per-layer weights along a leading L axis; fuse QKV and the two heads."""
    ls = p["layers"]

    def stack2(fn):
        return jnp.stack([fn(lp) for lp in ls])

    packed = {
        "word_emb": p["word_emb"],
        "pos_emb": p["pos_emb"],
        "type_emb": p["type_emb"],
        "emb_ln_g": p["emb_ln_g"].reshape(1, H),
        "emb_ln_b": p["emb_ln_b"].reshape(1, H),
        # fused QKV: [L, H, 3H] / [L, 1, 3H]
        "wqkv": stack2(lambda lp: jnp.concatenate([lp["wq"], lp["wk"], lp["wv"]], axis=1)),
        "bqkv": stack2(lambda lp: jnp.concatenate([lp["bq"], lp["bk"], lp["bv"]]).reshape(1, 3 * H)),
        "wo": stack2(lambda lp: lp["wo"]),
        "bo": stack2(lambda lp: lp["bo"].reshape(1, H)),
        "ln1_g": stack2(lambda lp: lp["ln1_g"].reshape(1, H)),
        "ln1_b": stack2(lambda lp: lp["ln1_b"].reshape(1, H)),
        "w1": stack2(lambda lp: lp["w1"]),
        "b1": stack2(lambda lp: lp["b1"].reshape(1, FF)),
        "w2": stack2(lambda lp: lp["w2"]),
        "b2": stack2(lambda lp: lp["b2"].reshape(1, H)),
        "ln2_g": stack2(lambda lp: lp["ln2_g"].reshape(1, H)),
        "ln2_b": stack2(lambda lp: lp["ln2_b"].reshape(1, H)),
    }
    # fused + lane-padded heads: [H, 128] (cols 0:3 = BIO, 3:6 = polarity, rest 0)
    w_heads = jnp.zeros((H, HEAD_PAD), jnp.float32)
    w_heads = w_heads.at[:, 0:NUM_LABELS].set(p["w_bio"])
    w_heads = w_heads.at[:, NUM_LABELS:2 * NUM_LABELS].set(p["w_pol"])
    b_heads = jnp.zeros((1, HEAD_PAD), jnp.float32)
    b_heads = b_heads.at[0, 0:NUM_LABELS].set(p["b_bio"])
    b_heads = b_heads.at[0, NUM_LABELS:2 * NUM_LABELS].set(p["b_pol"])
    packed["w_heads"] = w_heads
    packed["b_heads"] = b_heads
    return packed


# ------------------------------ forward (Pallas) -------------------------------
def hard_share_forward(packed, input_ids, attention_mask):
    b, s = input_ids.shape
    bs = b * s

    # embeddings (gather is glue; everything downstream is one Pallas kernel)
    emb = (
        packed["word_emb"][input_ids]
        + packed["pos_emb"][:s][None, :, :]
        + packed["type_emb"][0][None, None, :]
    ).reshape(bs, H)

    # block-diagonal (same-batch) + key-padding additive attention mask, [BS, BS]
    valid = attention_mask.astype(jnp.float32)                                # [B, S]
    same_batch = jnp.kron(jnp.eye(b, dtype=jnp.float32), jnp.ones((s, s), jnp.float32))
    key_ok = jnp.broadcast_to(valid.reshape(1, bs), (bs, bs))
    mask_add = (1.0 - same_batch * key_ok) * jnp.float32(-1e9)

    const = lambda l: (0, 0)        # noqa: E731
    per_layer3 = lambda l: (l, 0, 0)  # noqa: E731

    out = pl.pallas_call(
        _fused_encoder_kernel,
        out_shape=jax.ShapeDtypeStruct((bs, HEAD_PAD), jnp.float32),
        grid_spec=pltpu.PrefetchScalarGridSpec(
            num_scalar_prefetch=0,
            grid=(L,),
            in_specs=[
                pl.BlockSpec((bs, H), const),                 # emb
                pl.BlockSpec((1, H), const),                  # emb_ln_g
                pl.BlockSpec((1, H), const),                  # emb_ln_b
                pl.BlockSpec((bs, bs), const),                # attention mask
                pl.BlockSpec((None, H, 3 * H), per_layer3),   # wqkv
                pl.BlockSpec((None, 1, 3 * H), per_layer3),   # bqkv
                pl.BlockSpec((None, H, H), per_layer3),       # wo
                pl.BlockSpec((None, 1, H), per_layer3),       # bo
                pl.BlockSpec((None, 1, H), per_layer3),       # ln1_g
                pl.BlockSpec((None, 1, H), per_layer3),       # ln1_b
                pl.BlockSpec((None, H, FF), per_layer3),      # w1
                pl.BlockSpec((None, 1, FF), per_layer3),      # b1
                pl.BlockSpec((None, FF, H), per_layer3),      # w2
                pl.BlockSpec((None, 1, H), per_layer3),       # b2
                pl.BlockSpec((None, 1, H), per_layer3),       # ln2_g
                pl.BlockSpec((None, 1, H), per_layer3),       # ln2_b
                pl.BlockSpec((H, HEAD_PAD), const),           # w_heads (fused, padded)
                pl.BlockSpec((1, HEAD_PAD), const),           # b_heads
            ],
            out_specs=pl.BlockSpec((bs, HEAD_PAD), const),
            scratch_shapes=[pltpu.VMEM((bs, H), jnp.float32)],
        ),
        compiler_params=pltpu.CompilerParams(
            dimension_semantics=("arbitrary",),   # carried activation across layers
        ),
    )(
        emb, packed["emb_ln_g"], packed["emb_ln_b"], mask_add,
        packed["wqkv"], packed["bqkv"], packed["wo"], packed["bo"],
        packed["ln1_g"], packed["ln1_b"], packed["w1"], packed["b1"],
        packed["w2"], packed["b2"], packed["ln2_g"], packed["ln2_b"],
        packed["w_heads"], packed["b_heads"],
    )

    logits_bio = out[:, 0:NUM_LABELS].reshape(b, s, NUM_LABELS)
    logits_pol = out[:, NUM_LABELS:2 * NUM_LABELS].reshape(b, s, NUM_LABELS)
    return logits_bio, logits_pol


# ------------------------------ pure-JAX reference -----------------------------
def reference_forward(params, input_ids, attention_mask):
    b, s = input_ids.shape
    emb = (
        params["word_emb"][input_ids]
        + params["pos_emb"][:s][None, :, :]
        + params["type_emb"][0][None, None, :]
    )

    def ln(x, g, bb):
        mu = jnp.mean(x, -1, keepdims=True)
        var = jnp.mean((x - mu) ** 2, -1, keepdims=True)
        return (x - mu) * jax.lax.rsqrt(var + EPS) * g + bb

    h = ln(emb, params["emb_ln_g"], params["emb_ln_b"])
    add_mask = (1.0 - attention_mask.astype(jnp.float32))[:, None, None, :] * -10000.0

    for p in params["layers"]:
        def proj(x, w, bb):
            return x @ w + bb

        q = proj(h, p["wq"], p["bq"]).reshape(b, s, NH, HD).transpose(0, 2, 1, 3)
        k = proj(h, p["wk"], p["bk"]).reshape(b, s, NH, HD).transpose(0, 2, 1, 3)
        v = proj(h, p["wv"], p["bv"]).reshape(b, s, NH, HD).transpose(0, 2, 1, 3)
        sc = jnp.einsum("bhqd,bhkd->bhqk", q, k) / np.sqrt(HD) + add_mask
        pr = jax.nn.softmax(sc, axis=-1)
        ctx = jnp.einsum("bhqk,bhkd->bhqd", pr, v).transpose(0, 2, 1, 3).reshape(b, s, H)
        h1 = ln(h + (ctx @ p["wo"] + p["bo"]), p["ln1_g"], p["ln1_b"])
        ff = jax.nn.gelu(h1 @ p["w1"] + p["b1"], approximate=True) @ p["w2"] + p["b2"]
        h = ln(h1 + ff, p["ln2_g"], p["ln2_b"])

    return h @ params["w_bio"] + params["b_bio"], h @ params["w_pol"] + params["b_pol"]


# ----------------------------------- main --------------------------------------
if __name__ == "__main__":
    root = jax.random.PRNGKey(0)
    k_par, k_ids = jax.random.split(root)
    params = init_params(k_par)
    packed = pack_params(params)

    input_ids = jax.random.randint(k_ids, (B, S), 0, VOCAB, dtype=jnp.int32)
    # batch item 0 fully valid, batch item 1 has 4 padding tokens at the end
    attention_mask = jnp.ones((B, S), dtype=jnp.int32)
    attention_mask = attention_mask.at[1, S - 4:].set(0)

    fwd = jax.jit(hard_share_forward)
    out_bio, out_pol = fwd(packed, input_ids, attention_mask)
    jax.block_until_ready((out_bio, out_pol))

    ref_bio, ref_pol = reference_forward(params, input_ids, attention_mask)
    # tolerance 1e-3: only deviations vs. the f32 reference are the EUP approximate
    # reciprocal in softmax and fp summation-order differences from the fused matmuls.
    np.testing.assert_allclose(np.asarray(out_bio), np.asarray(ref_bio), atol=1e-3, rtol=1e-3)
    np.testing.assert_allclose(np.asarray(out_pol), np.asarray(ref_pol), atol=1e-3, rtol=1e-3)

    assert out_bio.shape == (B, S, NUM_LABELS) and out_pol.shape == (B, S, NUM_LABELS)
    print("KERNEL_OK")
</pallas_src>

<mosaic_0001>
module attributes {stable_mosaic.version = 11 : i64} {
  func.func @_fused_encoder_kernel(%arg0: i32, %arg1: memref<32x128xf32, #tpu.memory_space<vmem>>, %arg2: memref<1x128xf32, #tpu.memory_space<vmem>>, %arg3: memref<1x128xf32, #tpu.memory_space<vmem>>, %arg4: memref<32x32xf32, #tpu.memory_space<vmem>>, %arg5: memref<1x128x384xf32, #tpu.memory_space<vmem>>, %arg6: memref<1x1x384xf32, #tpu.memory_space<vmem>>, %arg7: memref<1x128x128xf32, #tpu.memory_space<vmem>>, %arg8: memref<1x1x128xf32, #tpu.memory_space<vmem>>, %arg9: memref<1x1x128xf32, #tpu.memory_space<vmem>>, %arg10: memref<1x1x128xf32, #tpu.memory_space<vmem>>, %arg11: memref<1x128x512xf32, #tpu.memory_space<vmem>>, %arg12: memref<1x1x512xf32, #tpu.memory_space<vmem>>, %arg13: memref<1x512x128xf32, #tpu.memory_space<vmem>>, %arg14: memref<1x1x128xf32, #tpu.memory_space<vmem>>, %arg15: memref<1x1x128xf32, #tpu.memory_space<vmem>>, %arg16: memref<1x1x128xf32, #tpu.memory_space<vmem>>, %arg17: memref<128x128xf32, #tpu.memory_space<vmem>>, %arg18: memref<1x128xf32, #tpu.memory_space<vmem>>, %arg19: memref<32x128xf32, #tpu.memory_space<vmem>>, %arg20: memref<32x128xf32, #tpu.memory_space<vmem>>) attributes {dimension_semantics = [#tpu.dimension_semantics<arbitrary>], iteration_bounds = array<i64: 2>, scalar_prefetch = 0 : i64, scratch_operands = 1 : i64, tpu.core_type = #tpu.core_type<tc>, window_params = [{pipeline_mode = #tpu.pipeline_mode<synchronous>, transform_indices = @transform_0, window_bounds = array<i64: 32, 128>}, {pipeline_mode = #tpu.pipeline_mode<synchronous>, transform_indices = @transform_1, window_bounds = array<i64: 1, 128>}, {pipeline_mode = #tpu.pipeline_mode<synchronous>, transform_indices = @transform_2, window_bounds = array<i64: 1, 128>}, {pipeline_mode = #tpu.pipeline_mode<synchronous>, transform_indices = @transform_3, window_bounds = array<i64: 32, 32>}, {transform_indices = @transform_4, window_bounds = array<i64: 1, 128, 384>}, {transform_indices = @transform_5, window_bounds = array<i64: 1, 1, 384>}, {transform_indices = @transform_6, window_bounds = array<i64: 1, 128, 128>}, {transform_indices = @transform_7, window_bounds = array<i64: 1, 1, 128>}, {transform_indices = @transform_8, window_bounds = array<i64: 1, 1, 128>}, {transform_indices = @transform_9, window_bounds = array<i64: 1, 1, 128>}, {transform_indices = @transform_10, window_bounds = array<i64: 1, 128, 512>}, {transform_indices = @transform_11, window_bounds = array<i64: 1, 1, 512>}, {transform_indices = @transform_12, window_bounds = array<i64: 1, 512, 128>}, {transform_indices = @transform_13, window_bounds = array<i64: 1, 1, 128>}, {transform_indices = @transform_14, window_bounds = array<i64: 1, 1, 128>}, {transform_indices = @transform_15, window_bounds = array<i64: 1, 1, 128>}, {pipeline_mode = #tpu.pipeline_mode<synchronous>, transform_indices = @transform_16, window_bounds = array<i64: 128, 128>}, {pipeline_mode = #tpu.pipeline_mode<synchronous>, transform_indices = @transform_17, window_bounds = array<i64: 1, 128>}, {pipeline_mode = #tpu.pipeline_mode<synchronous>, transform_indices = @transform_18, window_bounds = array<i64: 32, 128>}]} {
    %c0_i32 = arith.constant 0 : i32
    %0 = arith.cmpi eq, %arg0, %c0_i32 : i32
    %1 = arith.extui %0 : i1 to i32
    %c0_i32_0 = arith.constant 0 : i32
    %2 = arith.cmpi ne, %1, %c0_i32_0 : i32
    scf.if %2 {
      %c0_84 = arith.constant 0 : index
      %c0_85 = arith.constant 0 : index
      %191 = vector.load %arg1[%c0_84, %c0_85] : memref<32x128xf32, #tpu.memory_space<vmem>>, vector<32x128xf32>
      %c0_86 = arith.constant 0 : index
      %c0_87 = arith.constant 0 : index
      %192 = vector.load %arg2[%c0_86, %c0_87] : memref<1x128xf32, #tpu.memory_space<vmem>>, vector<1x128xf32>
      %c0_88 = arith.constant 0 : index
      %c0_89 = arith.constant 0 : index
      %193 = vector.load %arg3[%c0_88, %c0_89] : memref<1x128xf32, #tpu.memory_space<vmem>>, vector<1x128xf32>
      %cst_90 = arith.constant dense<0.000000e+00> : vector<32xf32>
      %194 = vector.multi_reduction <add>, %191, %cst_90 [1] : vector<32x128xf32> to vector<32xf32>
      %195 = vector.shape_cast %194 : vector<32xf32> to vector<32x1xf32>
      %cst_91 = arith.constant 1.280000e+02 : f32
      %196 = vector.broadcast %cst_91 : f32 to vector<32x1xf32>
      %197 = arith.divf %195, %196 : vector<32x1xf32>
      %198 = vector.broadcast %197 : vector<32x1xf32> to vector<32x128xf32>
      %199 = arith.subf %191, %198 : vector<32x128xf32>
      %200 = arith.mulf %199, %199 : vector<32x128xf32>
      %cst_92 = arith.constant dense<0.000000e+00> : vector<32xf32>
      %201 = vector.multi_reduction <add>, %200, %cst_92 [1] : vector<32x128xf32> to vector<32xf32>
      %202 = vector.shape_cast %201 : vector<32xf32> to vector<32x1xf32>
      %cst_93 = arith.constant 1.280000e+02 : f32
      %203 = vector.broadcast %cst_93 : f32 to vector<32x1xf32>
      %204 = arith.divf %202, %203 : vector<32x1xf32>
      %205 = vector.broadcast %197 : vector<32x1xf32> to vector<32x128xf32>
      %206 = arith.subf %191, %205 : vector<32x128xf32>
      %cst_94 = arith.constant 9.99999996E-13 : f32
      %207 = vector.broadcast %cst_94 : f32 to vector<32x1xf32>
      %208 = arith.addf %204, %207 : vector<32x1xf32>
      %209 = math.rsqrt %208 : vector<32x1xf32>
      %210 = vector.broadcast %209 : vector<32x1xf32> to vector<32x128xf32>
      %211 = arith.mulf %206, %210 : vector<32x128xf32>
      %212 = vector.broadcast %192 : vector<1x128xf32> to vector<32x128xf32>
      %213 = arith.mulf %211, %212 : vector<32x128xf32>
      %214 = vector.broadcast %193 : vector<1x128xf32> to vector<32x128xf32>
      %215 = arith.addf %213, %214 : vector<32x128xf32>
      %c0_95 = arith.constant 0 : index
      %c0_96 = arith.constant 0 : index
      %216 = vector.load %arg20[%c0_95, %c0_96] : memref<32x128xf32, #tpu.memory_space<vmem>>, vector<32x128xf32>
      tpu.vector_store %arg20[%c0_95, %c0_96], %215 {strides = array<i32>} : memref<32x128xf32, #tpu.memory_space<vmem>>, vector<32x128xf32>,
    } else {
    }
    %c0 = arith.constant 0 : index
    %c0_1 = arith.constant 0 : index
    %3 = vector.load %arg20[%c0, %c0_1] : memref<32x128xf32, #tpu.memory_space<vmem>>, vector<32x128xf32>
    %c0_2 = arith.constant 0 : index
    %c0_3 = arith.constant 0 : index
    %c0_4 = arith.constant 0 : index
    %4 = vector.load %arg5[%c0_2, %c0_3, %c0_4] : memref<1x128x384xf32, #tpu.memory_space<vmem>>, vector<1x128x384xf32>
    %5 = vector.shape_cast %4 : vector<1x128x384xf32> to vector<128x384xf32>
    %cst = arith.constant dense<0.000000e+00> : vector<32x384xf32>
    %6 = tpu.matmul %3, %5, %cst {dimension_numbers = #tpu.dot_dimension_numbers<[1], [0], [0], [1], [0, 0, 1, 1], [], []>} : vector<32x128xf32>, vector<128x384xf32>, vector<32x384xf32> -> vector<32x384xf32>
    %c0_5 = arith.constant 0 : index
    %c0_6 = arith.constant 0 : index
    %c0_7 = arith.constant 0 : index
    %7 = vector.load %arg6[%c0_5, %c0_6, %c0_7] : memref<1x1x384xf32, #tpu.memory_space<vmem>>, vector<1x1x384xf32>
    %8 = vector.shape_cast %7 : vector<1x1x384xf32> to vector<1x384xf32>
    %9 = vector.broadcast %8 : vector<1x384xf32> to vector<32x384xf32>
    %10 = arith.addf %6, %9 : vector<32x384xf32>
    %11 = vector.extract_strided_slice %10 {offsets = [0, 0], sizes = [32, 128], strides = [1, 1]} : vector<32x384xf32> to vector<32x128xf32>
    %12 = vector.extract_strided_slice %10 {offsets = [0, 128], sizes = [32, 128], strides = [1, 1]} : vector<32x384xf32> to vector<32x128xf32>
    %13 = vector.extract_strided_slice %10 {offsets = [0, 256], sizes = [32, 128], strides = [1, 1]} : vector<32x384xf32> to vector<32x128xf32>
    %c0_8 = arith.constant 0 : index
    %c0_9 = arith.constant 0 : index
    %c0_10 = arith.constant 0 : index
    %14 = vector.load %arg7[%c0_8, %c0_9, %c0_10] : memref<1x128x128xf32, #tpu.memory_space<vmem>>, vector<1x128x128xf32>
    %15 = vector.shape_cast %14 : vector<1x128x128xf32> to vector<128x128xf32>
    %c0_11 = arith.constant 0 : index
    %c0_12 = arith.constant 0 : index
    %16 = vector.load %arg4[%c0_11, %c0_12] : memref<32x32xf32, #tpu.memory_space<vmem>>, vector<32x32xf32>
    %cst_13 = arith.constant 0.000000e+00 : f32
    %17 = vector.broadcast %cst_13 : f32 to vector<32x128xf32>
    %18 = vector.extract_strided_slice %11 {offsets = [0, 0], sizes = [32, 32], strides = [1, 1]} : vector<32x128xf32> to vector<32x32xf32>
    %19 = vector.extract_strided_slice %12 {offsets = [0, 0], sizes = [32, 32], strides = [1, 1]} : vector<32x128xf32> to vector<32x32xf32>
    %20 = vector.extract_strided_slice %13 {offsets = [0, 0], sizes = [32, 32], strides = [1, 1]} : vector<32x128xf32> to vector<32x32xf32>
    %cst_14 = arith.constant dense<0.000000e+00> : vector<32x32xf32>
    %21 = tpu.matmul %18, %19, %cst_14 {dimension_numbers = #tpu.dot_dimension_numbers<[1], [1], [0], [0], [0, 0, 1, 0], [], []>} : vector<32x32xf32>, vector<32x32xf32>, vector<32x32xf32> -> vector<32x32xf32>
    %cst_15 = arith.constant 0.176776692 : f32
    %22 = vector.broadcast %cst_15 : f32 to vector<32x32xf32>
    %23 = arith.mulf %21, %22 : vector<32x32xf32>
    %24 = arith.addf %23, %16 : vector<32x32xf32>
    %cst_16 = arith.constant dense<0xFF800000> : vector<32xf32>
    %25 = vector.multi_reduction <maximumf>, %24, %cst_16 [1] : vector<32x32xf32> to vector<32xf32>
    %26 = vector.shape_cast %25 : vector<32xf32> to vector<32x1xf32>
    %27 = vector.broadcast %26 : vector<32x1xf32> to vector<32x32xf32>
    %28 = arith.subf %24, %27 : vector<32x32xf32>
    %29 = math.exp %28 : vector<32x32xf32>
    %cst_17 = arith.constant dense<0.000000e+00> : vector<32xf32>
    %30 = vector.multi_reduction <add>, %29, %cst_17 [1] : vector<32x32xf32> to vector<32xf32>
    %31 = vector.shape_cast %30 : vector<32xf32> to vector<32x1xf32>
    %32 = tpu.reciprocal %31 {approx = true} : vector<32x1xf32> -> vector<32x1xf32>
    %33 = vector.broadcast %32 : vector<32x1xf32> to vector<32x32xf32>
    %34 = arith.mulf %29, %33 : vector<32x32xf32>
    %cst_18 = arith.constant dense<0.000000e+00> : vector<32x32xf32>
    %35 = tpu.matmul %34, %20, %cst_18 {dimension_numbers = #tpu.dot_dimension_numbers<[1], [0], [0], [1], [0, 0, 1, 1], [], []>} : vector<32x32xf32>, vector<32x32xf32>, vector<32x32xf32> -> vector<32x32xf32>
    %36 = vector.extract_strided_slice %15 {offsets = [0, 0], sizes = [32, 128], strides = [1, 1]} : vector<128x128xf32> to vector<32x128xf32>
    %cst_19 = arith.constant dense<0.000000e+00> : vector<32x128xf32>
    %37 = tpu.matmul %35, %36, %cst_19 {dimension_numbers = #tpu.dot_dimension_numbers<[1], [0], [0], [1], [0, 0, 1, 1], [], []>} : vector<32x32xf32>, vector<32x128xf32>, vector<32x128xf32> -> vector<32x128xf32>
    %38 = arith.addf %17, %37 : vector<32x128xf32>
    %39 = vector.extract_strided_slice %11 {offsets = [0, 32], sizes = [32, 32], strides = [1, 1]} : vector<32x128xf32> to vector<32x32xf32>
    %40 = vector.extract_strided_slice %12 {offsets = [0, 32], sizes = [32, 32], strides = [1, 1]} : vector<32x128xf32> to vector<32x32xf32>
    %41 = vector.extract_strided_slice %13 {offsets = [0, 32], sizes = [32, 32], strides = [1, 1]} : vector<32x128xf32> to vector<32x32xf32>
    %cst_20 = arith.constant dense<0.000000e+00> : vector<32x32xf32>
    %42 = tpu.matmul %39, %40, %cst_20 {dimension_numbers = #tpu.dot_dimension_numbers<[1], [1], [0], [0], [0, 0, 1, 0], [], []>} : vector<32x32xf32>, vector<32x32xf32>, vector<32x32xf32> -> vector<32x32xf32>
    %cst_21 = arith.constant 0.176776692 : f32
    %43 = vector.broadcast %cst_21 : f32 to vector<32x32xf32>
    %44 = arith.mulf %42, %43 : vector<32x32xf32>
    %45 = arith.addf %44, %16 : vector<32x32xf32>
    %cst_22 = arith.constant dense<0xFF800000> : vector<32xf32>
    %46 = vector.multi_reduction <maximumf>, %45, %cst_22 [1] : vector<32x32xf32> to vector<32xf32>
    %47 = vector.shape_cast %46 : vector<32xf32> to vector<32x1xf32>
    %48 = vector.broadcast %47 : vector<32x1xf32> to vector<32x32xf32>
    %49 = arith.subf %45, %48 : vector<32x32xf32>
    %50 = math.exp %49 : vector<32x32xf32>
    %cst_23 = arith.constant dense<0.000000e+00> : vector<32xf32>
    %51 = vector.multi_reduction <add>, %50, %cst_23 [1] : vector<32x32xf32> to vector<32xf32>
    %52 = vector.shape_cast %51 : vector<32xf32> to vector<32x1xf32>
    %53 = tpu.reciprocal %52 {approx = true} : vector<32x1xf32> -> vector<32x1xf32>
    %54 = vector.broadcast %53 : vector<32x1xf32> to vector<32x32xf32>
    %55 = arith.mulf %50, %54 : vector<32x32xf32>
    %cst_24 = arith.constant dense<0.000000e+00> : vector<32x32xf32>
    %56 = tpu.matmul %55, %41, %cst_24 {dimension_numbers = #tpu.dot_dimension_numbers<[1], [0], [0], [1], [0, 0, 1, 1], [], []>} : vector<32x32xf32>, vector<32x32xf32>, vector<32x32xf32> -> vector<32x32xf32>
    %57 = vector.extract_strided_slice %15 {offsets = [32, 0], sizes = [32, 128], strides = [1, 1]} : vector<128x128xf32> to vector<32x128xf32>
    %cst_25 = arith.constant dense<0.000000e+00> : vector<32x128xf32>
    %58 = tpu.matmul %56, %57, %cst_25 {dimension_numbers = #tpu.dot_dimension_numbers<[1], [0], [0], [1], [0, 0, 1, 1], [], []>} : vector<32x32xf32>, vector<32x128xf32>, vector<32x128xf32> -> vector<32x128xf32>
    %59 = arith.addf %38, %58 : vector<32x128xf32>
    %60 = vector.extract_strided_slice %11 {offsets = [0, 64], sizes = [32, 32], strides = [1, 1]} : vector<32x128xf32> to vector<32x32xf32>
    %61 = vector.extract_strided_slice %12 {offsets = [0, 64], sizes = [32, 32], strides = [1, 1]} : vector<32x128xf32> to vector<32x32xf32>
    %62 = vector.extract_strided_slice %13 {offsets = [0, 64], sizes = [32, 32], strides = [1, 1]} : vector<32x128xf32> to vector<32x32xf32>
    %cst_26 = arith.constant dense<0.000000e+00> : vector<32x32xf32>
    %63 = tpu.matmul %60, %61, %cst_26 {dimension_numbers = #tpu.dot_dimension_numbers<[1], [1], [0], [0], [0, 0, 1, 0], [], []>} : vector<32x32xf32>, vector<32x32xf32>, vector<32x32xf32> -> vector<32x32xf32>
    %cst_27 = arith.constant 0.176776692 : f32
    %64 = vector.broadcast %cst_27 : f32 to vector<32x32xf32>
    %65 = arith.mulf %63, %64 : vector<32x32xf32>
    %66 = arith.addf %65, %16 : vector<32x32xf32>
    %cst_28 = arith.constant dense<0xFF800000> : vector<32xf32>
    %67 = vector.multi_reduction <maximumf>, %66, %cst_28 [1] : vector<32x32xf32> to vector<32xf32>
    %68 = vector.shape_cast %67 : vector<32xf32> to vector<32x1xf32>
    %69 = vector.broadcast %68 : vector<32x1xf32> to vector<32x32xf32>
    %70 = arith.subf %66, %69 : vector<32x32xf32>
    %71 = math.exp %70 : vector<32x32xf32>
    %cst_29 = arith.constant dense<0.000000e+00> : vector<32xf32>
    %72 = vector.multi_reduction <add>, %71, %cst_29 [1] : vector<32x32xf32> to vector<32xf32>
    %73 = vector.shape_cast %72 : vector<32xf32> to vector<32x1xf32>
    %74 = tpu.reciprocal %73 {approx = true} : vector<32x1xf32> -> vector<32x1xf32>
    %75 = vector.broadcast %74 : vector<32x1xf32> to vector<32x32xf32>
    %76 = arith.mulf %71, %75 : vector<32x32xf32>
    %cst_30 = arith.constant dense<0.000000e+00> : vector<32x32xf32>
    %77 = tpu.matmul %76, %62, %cst_30 {dimension_numbers = #tpu.dot_dimension_numbers<[1], [0], [0], [1], [0, 0, 1, 1], [], []>} : vector<32x32xf32>, vector<32x32xf32>, vector<32x32xf32> -> vector<32x32xf32>
    %78 = vector.extract_strided_slice %15 {offsets = [64, 0], sizes = [32, 128], strides = [1, 1]} : vector<128x128xf32> to vector<32x128xf32>
    %cst_31 = arith.constant dense<0.000000e+00> : vector<32x128xf32>
    %79 = tpu.matmul %77, %78, %cst_31 {dimension_numbers = #tpu.dot_dimension_numbers<[1], [0], [0], [1], [0, 0, 1, 1], [], []>} : vector<32x32xf32>, vector<32x128xf32>, vector<32x128xf32> -> vector<32x128xf32>
    %80 = arith.addf %59, %79 : vector<32x128xf32>
    %81 = vector.extract_strided_slice %11 {offsets = [0, 96], sizes = [32, 32], strides = [1, 1]} : vector<32x128xf32> to vector<32x32xf32>
    %82 = vector.extract_strided_slice %12 {offsets = [0, 96], sizes = [32, 32], strides = [1, 1]} : vector<32x128xf32> to vector<32x32xf32>
    %83 = vector.extract_strided_slice %13 {offsets = [0, 96], sizes = [32, 32], strides = [1, 1]} : vector<32x128xf32> to vector<32x32xf32>
    %cst_32 = arith.constant dense<0.000000e+00> : vector<32x32xf32>
    %84 = tpu.matmul %81, %82, %cst_32 {dimension_numbers = #tpu.dot_dimension_numbers<[1], [1], [0], [0], [0, 0, 1, 0], [], []>} : vector<32x32xf32>, vector<32x32xf32>, vector<32x32xf32> -> vector<32x32xf32>
    %cst_33 = arith.constant 0.176776692 : f32
    %85 = vector.broadcast %cst_33 : f32 to vector<32x32xf32>
    %86 = arith.mulf %84, %85 : vector<32x32xf32>
    %87 = arith.addf %86, %16 : vector<32x32xf32>
    %cst_34 = arith.constant dense<0xFF800000> : vector<32xf32>
    %88 = vector.multi_reduction <maximumf>, %87, %cst_34 [1] : vector<32x32xf32> to vector<32xf32>
    %89 = vector.shape_cast %88 : vector<32xf32> to vector<32x1xf32>
    %90 = vector.broadcast %89 : vector<32x1xf32> to vector<32x32xf32>
    %91 = arith.subf %87, %90 : vector<32x32xf32>
    %92 = math.exp %91 : vector<32x32xf32>
    %cst_35 = arith.constant dense<0.000000e+00> : vector<32xf32>
    %93 = vector.multi_reduction <add>, %92, %cst_35 [1] : vector<32x32xf32> to vector<32xf32>
    %94 = vector.shape_cast %93 : vector<32xf32> to vector<32x1xf32>
    %95 = tpu.reciprocal %94 {approx = true} : vector<32x1xf32> -> vector<32x1xf32>
    %96 = vector.broadcast %95 : vector<32x1xf32> to vector<32x32xf32>
    %97 = arith.mulf %92, %96 : vector<32x32xf32>
    %cst_36 = arith.constant dense<0.000000e+00> : vector<32x32xf32>
    %98 = tpu.matmul %97, %83, %cst_36 {dimension_numbers = #tpu.dot_dimension_numbers<[1], [0], [0], [1], [0, 0, 1, 1], [], []>} : vector<32x32xf32>, vector<32x32xf32>, vector<32x32xf32> -> vector<32x32xf32>
    %99 = vector.extract_strided_slice %15 {offsets = [96, 0], sizes = [32, 128], strides = [1, 1]} : vector<128x128xf32> to vector<32x128xf32>
    %cst_37 = arith.constant dense<0.000000e+00> : vector<32x128xf32>
    %100 = tpu.matmul %98, %99, %cst_37 {dimension_numbers = #tpu.dot_dimension_numbers<[1], [0], [0], [1], [0, 0, 1, 1], [], []>} : vector<32x32xf32>, vector<32x128xf32>, vector<32x128xf32> -> vector<32x128xf32>
    %101 = arith.addf %80, %100 : vector<32x128xf32>
    %c0_38 = arith.constant 0 : index
    %c0_39 = arith.constant 0 : index
    %c0_40 = arith.constant 0 : index
    %102 = vector.load %arg8[%c0_38, %c0_39, %c0_40] : memref<1x1x128xf32, #tpu.memory_space<vmem>>, vector<1x1x128xf32>
    %103 = vector.shape_cast %102 : vector<1x1x128xf32> to vector<1x128xf32>
    %104 = vector.broadcast %103 : vector<1x128xf32> to vector<32x128xf32>
    %105 = arith.addf %101, %104 : vector<32x128xf32>
    %106 = arith.addf %3, %105 : vector<32x128xf32>
    %c0_41 = arith.constant 0 : index
    %c0_42 = arith.constant 0 : index
    %c0_43 = arith.constant 0 : index
    %107 = vector.load %arg9[%c0_41, %c0_42, %c0_43] : memref<1x1x128xf32, #tpu.memory_space<vmem>>, vector<1x1x128xf32>
    %108 = vector.shape_cast %107 : vector<1x1x128xf32> to vector<1x128xf32>
    %c0_44 = arith.constant 0 : index
    %c0_45 = arith.constant 0 : index
    %c0_46 = arith.constant 0 : index
    %109 = vector.load %arg10[%c0_44, %c0_45, %c0_46] : memref<1x1x128xf32, #tpu.memory_space<vmem>>, vector<1x1x128xf32>
    %110 = vector.shape_cast %109 : vector<1x1x128xf32> to vector<1x128xf32>
    %cst_47 = arith.constant dense<0.000000e+00> : vector<32xf32>
    %111 = vector.multi_reduction <add>, %106, %cst_47 [1] : vector<32x128xf32> to vector<32xf32>
    %112 = vector.shape_cast %111 : vector<32xf32> to vector<32x1xf32>
    %cst_48 = arith.constant 1.280000e+02 : f32
    %113 = vector.broadcast %cst_48 : f32 to vector<32x1xf32>
    %114 = arith.divf %112, %113 : vector<32x1xf32>
    %115 = vector.broadcast %114 : vector<32x1xf32> to vector<32x128xf32>
    %116 = arith.subf %106, %115 : vector<32x128xf32>
    %117 = arith.mulf %116, %116 : vector<32x128xf32>
    %cst_49 = arith.constant dense<0.000000e+00> : vector<32xf32>
    %118 = vector.multi_reduction <add>, %117, %cst_49 [1] : vector<32x128xf32> to vector<32xf32>
    %119 = vector.shape_cast %118 : vector<32xf32> to vector<32x1xf32>
    %cst_50 = arith.constant 1.280000e+02 : f32
    %120 = vector.broadcast %cst_50 : f32 to vector<32x1xf32>
    %121 = arith.divf %119, %120 : vector<32x1xf32>
    %122 = vector.broadcast %114 : vector<32x1xf32> to vector<32x128xf32>
    %123 = arith.subf %106, %122 : vector<32x128xf32>
    %cst_51 = arith.constant 9.99999996E-13 : f32
    %124 = vector.broadcast %cst_51 : f32 to vector<32x1xf32>
    %125 = arith.addf %121, %124 : vector<32x1xf32>
    %126 = math.rsqrt %125 : vector<32x1xf32>
    %127 = vector.broadcast %126 : vector<32x1xf32> to vector<32x128xf32>
    %128 = arith.mulf %123, %127 : vector<32x128xf32>
    %129 = vector.broadcast %108 : vector<1x128xf32> to vector<32x128xf32>
    %130 = arith.mulf %128, %129 : vector<32x128xf32>
    %131 = vector.broadcast %110 : vector<1x128xf32> to vector<32x128xf32>
    %132 = arith.addf %130, %131 : vector<32x128xf32>
    %c0_52 = arith.constant 0 : index
    %c0_53 = arith.constant 0 : index
    %c0_54 = arith.constant 0 : index
    %133 = vector.load %arg11[%c0_52, %c0_53, %c0_54] : memref<1x128x512xf32, #tpu.memory_space<vmem>>, vector<1x128x512xf32>
    %134 = vector.shape_cast %133 : vector<1x128x512xf32> to vector<128x512xf32>
    %cst_55 = arith.constant dense<0.000000e+00> : vector<32x512xf32>
    %135 = tpu.matmul %132, %134, %cst_55 {dimension_numbers = #tpu.dot_dimension_numbers<[1], [0], [0], [1], [0, 0, 1, 1], [], []>} : vector<32x128xf32>, vector<128x512xf32>, vector<32x512xf32> -> vector<32x512xf32>
    %c0_56 = arith.constant 0 : index
    %c0_57 = arith.constant 0 : index
    %c0_58 = arith.constant 0 : index
    %136 = vector.load %arg12[%c0_56, %c0_57, %c0_58] : memref<1x1x512xf32, #tpu.memory_space<vmem>>, vector<1x1x512xf32>
    %137 = vector.shape_cast %136 : vector<1x1x512xf32> to vector<1x512xf32>
    %138 = vector.broadcast %137 : vector<1x512xf32> to vector<32x512xf32>
    %139 = arith.addf %135, %138 : vector<32x512xf32>
    %140 = arith.mulf %139, %139 : vector<32x512xf32>
    %141 = arith.mulf %139, %140 : vector<32x512xf32>
    %cst_59 = arith.constant 4.471500e-02 : f32
    %142 = vector.broadcast %cst_59 : f32 to vector<32x512xf32>
    %143 = arith.mulf %142, %141 : vector<32x512xf32>
    %144 = arith.addf %139, %143 : vector<32x512xf32>
    %cst_60 = arith.constant 0.797884583 : f32
    %145 = vector.broadcast %cst_60 : f32 to vector<32x512xf32>
    %146 = arith.mulf %145, %144 : vector<32x512xf32>
    %147 = math.tanh %146 : vector<32x512xf32>
    %cst_61 = arith.constant 1.000000e+00 : f32
    %148 = vector.broadcast %cst_61 : f32 to vector<32x512xf32>
    %149 = arith.addf %148, %147 : vector<32x512xf32>
    %cst_62 = arith.constant 5.000000e-01 : f32
    %150 = vector.broadcast %cst_62 : f32 to vector<32x512xf32>
    %151 = arith.mulf %150, %149 : vector<32x512xf32>
    %152 = arith.mulf %139, %151 : vector<32x512xf32>
    %c0_63 = arith.constant 0 : index
    %c0_64 = arith.constant 0 : index
    %c0_65 = arith.constant 0 : index
    %153 = vector.load %arg13[%c0_63, %c0_64, %c0_65] : memref<1x512x128xf32, #tpu.memory_space<vmem>>, vector<1x512x128xf32>
    %154 = vector.shape_cast %153 : vector<1x512x128xf32> to vector<512x128xf32>
    %cst_66 = arith.constant dense<0.000000e+00> : vector<32x128xf32>
    %155 = tpu.matmul %152, %154, %cst_66 {dimension_numbers = #tpu.dot_dimension_numbers<[1], [0], [0], [1], [0, 0, 1, 1], [], []>} : vector<32x512xf32>, vector<512x128xf32>, vector<32x128xf32> -> vector<32x128xf32>
    %c0_67 = arith.constant 0 : index
    %c0_68 = arith.constant 0 : index
    %c0_69 = arith.constant 0 : index
    %156 = vector.load %arg14[%c0_67, %c0_68, %c0_69] : memref<1x1x128xf32, #tpu.memory_space<vmem>>, vector<1x1x128xf32>
    %157 = vector.shape_cast %156 : vector<1x1x128xf32> to vector<1x128xf32>
    %158 = vector.broadcast %157 : vector<1x128xf32> to vector<32x128xf32>
    %159 = arith.addf %155, %158 : vector<32x128xf32>
    %160 = arith.addf %132, %159 : vector<32x128xf32>
    %c0_70 = arith.constant 0 : index
    %c0_71 = arith.constant 0 : index
    %c0_72 = arith.constant 0 : index
    %161 = vector.load %arg15[%c0_70, %c0_71, %c0_72] : memref<1x1x128xf32, #tpu.memory_space<vmem>>, vector<1x1x128xf32>
    %162 = vector.shape_cast %161 : vector<1x1x128xf32> to vector<1x128xf32>
    %c0_73 = arith.constant 0 : index
    %c0_74 = arith.constant 0 : index
    %c0_75 = arith.constant 0 : index
    %163 = vector.load %arg16[%c0_73, %c0_74, %c0_75] : memref<1x1x128xf32, #tpu.memory_space<vmem>>, vector<1x1x128xf32>
    %164 = vector.shape_cast %163 : vector<1x1x128xf32> to vector<1x128xf32>
    %cst_76 = arith.constant dense<0.000000e+00> : vector<32xf32>
    %165 = vector.multi_reduction <add>, %160, %cst_76 [1] : vector<32x128xf32> to vector<32xf32>
    %166 = vector.shape_cast %165 : vector<32xf32> to vector<32x1xf32>
    %cst_77 = arith.constant 1.280000e+02 : f32
    %167 = vector.broadcast %cst_77 : f32 to vector<32x1xf32>
    %168 = arith.divf %166, %167 : vector<32x1xf32>
    %169 = vector.broadcast %168 : vector<32x1xf32> to vector<32x128xf32>
    %170 = arith.subf %160, %169 : vector<32x128xf32>
    %171 = arith.mulf %170, %170 : vector<32x128xf32>
    %cst_78 = arith.constant dense<0.000000e+00> : vector<32xf32>
    %172 = vector.multi_reduction <add>, %171, %cst_78 [1] : vector<32x128xf32> to vector<32xf32>
    %173 = vector.shape_cast %172 : vector<32xf32> to vector<32x1xf32>
    %cst_79 = arith.constant 1.280000e+02 : f32
    %174 = vector.broadcast %cst_79 : f32 to vector<32x1xf32>
    %175 = arith.divf %173, %174 : vector<32x1xf32>
    %176 = vector.broadcast %168 : vector<32x1xf32> to vector<32x128xf32>
    %177 = arith.subf %160, %176 : vector<32x128xf32>
    %cst_80 = arith.constant 9.99999996E-13 : f32
    %178 = vector.broadcast %cst_80 : f32 to vector<32x1xf32>
    %179 = arith.addf %175, %178 : vector<32x1xf32>
    %180 = math.rsqrt %179 : vector<32x1xf32>
    %181 = vector.broadcast %180 : vector<32x1xf32> to vector<32x128xf32>
    %182 = arith.mulf %177, %181 : vector<32x128xf32>
    %183 = vector.broadcast %162 : vector<1x128xf32> to vector<32x128xf32>
    %184 = arith.mulf %182, %183 : vector<32x128xf32>
    %185 = vector.broadcast %164 : vector<1x128xf32> to vector<32x128xf32>
    %186 = arith.addf %184, %185 : vector<32x128xf32>
    %c0_81 = arith.constant 0 : index
    %c0_82 = arith.constant 0 : index
    %187 = vector.load %arg20[%c0_81, %c0_82] : memref<32x128xf32, #tpu.memory_space<vmem>>, vector<32x128xf32>
    tpu.vector_store %arg20[%c0_81, %c0_82], %186 {strides = array<i32>} : memref<32x128xf32, #tpu.memory_space<vmem>>, vector<32x128xf32>,
    %c1_i32 = arith.constant 1 : i32
    %188 = arith.cmpi eq, %arg0, %c1_i32 : i32
    %189 = arith.extui %188 : i1 to i32
    %c0_i32_83 = arith.constant 0 : i32
    %190 = arith.cmpi ne, %189, %c0_i32_83 : i32
    scf.if %190 {
      %c0_84 = arith.constant 0 : index
      %c0_85 = arith.constant 0 : index
      %191 = vector.load %arg17[%c0_84, %c0_85] : memref<128x128xf32, #tpu.memory_space<vmem>>, vector<128x128xf32>
      %cst_86 = arith.constant dense<0.000000e+00> : vector<32x128xf32>
      %192 = tpu.matmul %186, %191, %cst_86 {dimension_numbers = #tpu.dot_dimension_numbers<[1], [0], [0], [1], [0, 0, 1, 1], [], []>} : vector<32x128xf32>, vector<128x128xf32>, vector<32x128xf32> -> vector<32x128xf32>
      %c0_87 = arith.constant 0 : index
      %c0_88 = arith.constant 0 : index
      %193 = vector.load %arg18[%c0_87, %c0_88] : memref<1x128xf32, #tpu.memory_space<vmem>>, vector<1x128xf32>
      %194 = vector.broadcast %193 : vector<1x128xf32> to vector<32x128xf32>
      %195 = arith.addf %192, %194 : vector<32x128xf32>
      %c0_89 = arith.constant 0 : index
      %c0_90 = arith.constant 0 : index
      %196 = vector.load %arg19[%c0_89, %c0_90] : memref<32x128xf32, #tpu.memory_space<vmem>>, vector<32x128xf32>
      tpu.vector_store %arg19[%c0_89, %c0_90], %195 {strides = array<i32>} : memref<32x128xf32, #tpu.memory_space<vmem>>, vector<32x128xf32>,
    } else {
    }
    return
  }
  func.func @transform_0(%arg0: i32) -> (i32, i32) {
    %c0_i32 = arith.constant 0 : i32
    %c0_i32_0 = arith.constant 0 : i32
    %c0_i32_1 = arith.constant 0 : i32
    return %c0_i32, %c0_i32_0 : i32, i32
  }
  func.func @transform_1(%arg0: i32) -> (i32, i32) {
    %c0_i32 = arith.constant 0 : i32
    %c0_i32_0 = arith.constant 0 : i32
    %c0_i32_1 = arith.constant 0 : i32
    return %c0_i32, %c0_i32_0 : i32, i32
  }
  func.func @transform_2(%arg0: i32) -> (i32, i32) {
    %c0_i32 = arith.constant 0 : i32
    %c0_i32_0 = arith.constant 0 : i32
    %c0_i32_1 = arith.constant 0 : i32
    return %c0_i32, %c0_i32_0 : i32, i32
  }
  func.func @transform_3(%arg0: i32) -> (i32, i32) {
    %c0_i32 = arith.constant 0 : i32
    %c0_i32_0 = arith.constant 0 : i32
    %c0_i32_1 = arith.constant 0 : i32
    return %c0_i32, %c0_i32_0 : i32, i32
  }
  func.func @transform_4(%arg0: i32) -> (i32, i32, i32) {
    %c0_i32 = arith.constant 0 : i32
    %c0_i32_0 = arith.constant 0 : i32
    %c0_i32_1 = arith.constant 0 : i32
    return %arg0, %c0_i32, %c0_i32_0 : i32, i32, i32
  }
  func.func @transform_5(%arg0: i32) -> (i32, i32, i32) {
    %c0_i32 = arith.constant 0 : i32
    %c0_i32_0 = arith.constant 0 : i32
    %c0_i32_1 = arith.constant 0 : i32
    return %arg0, %c0_i32, %c0_i32_0 : i32, i32, i32
  }
  func.func @transform_6(%arg0: i32) -> (i32, i32, i32) {
    %c0_i32 = arith.constant 0 : i32
    %c0_i32_0 = arith.constant 0 : i32
    %c0_i32_1 = arith.constant 0 : i32
    return %arg0, %c0_i32, %c0_i32_0 : i32, i32, i32
  }
  func.func @transform_7(%arg0: i32) -> (i32, i32, i32) {
    %c0_i32 = arith.constant 0 : i32
    %c0_i32_0 = arith.constant 0 : i32
    %c0_i32_1 = arith.constant 0 : i32
    return %arg0, %c0_i32, %c0_i32_0 : i32, i32, i32
  }
  func.func @transform_8(%arg0: i32) -> (i32, i32, i32) {
    %c0_i32 = arith.constant 0 : i32
    %c0_i32_0 = arith.constant 0 : i32
    %c0_i32_1 = arith.constant 0 : i32
    return %arg0, %c0_i32, %c0_i32_0 : i32, i32, i32
  }
  func.func @transform_9(%arg0: i32) -> (i32, i32, i32) {
    %c0_i32 = arith.constant 0 : i32
    %c0_i32_0 = arith.constant 0 : i32
    %c0_i32_1 = arith.constant 0 : i32
    return %arg0, %c0_i32, %c0_i32_0 : i32, i32, i32
  }
  func.func @transform_10(%arg0: i32) -> (i32, i32, i32) {
    %c0_i32 = arith.constant 0 : i32
    %c0_i32_0 = arith.constant 0 : i32
    %c0_i32_1 = arith.constant 0 : i32
    return %arg0, %c0_i32, %c0_i32_0 : i32, i32, i32
  }
  func.func @transform_11(%arg0: i32) -> (i32, i32, i32) {
    %c0_i32 = arith.constant 0 : i32
    %c0_i32_0 = arith.constant 0 : i32
    %c0_i32_1 = arith.constant 0 : i32
    return %arg0, %c0_i32, %c0_i32_0 : i32, i32, i32
  }
  func.func @transform_12(%arg0: i32) -> (i32, i32, i32) {
    %c0_i32 = arith.constant 0 : i32
    %c0_i32_0 = arith.constant 0 : i32
    %c0_i32_1 = arith.constant 0 : i32
    return %arg0, %c0_i32, %c0_i32_0 : i32, i32, i32
  }
  func.func @transform_13(%arg0: i32) -> (i32, i32, i32) {
    %c0_i32 = arith.constant 0 : i32
    %c0_i32_0 = arith.constant 0 : i32
    %c0_i32_1 = arith.constant 0 : i32
    return %arg0, %c0_i32, %c0_i32_0 : i32, i32, i32
  }
  func.func @transform_14(%arg0: i32) -> (i32, i32, i32) {
    %c0_i32 = arith.constant 0 : i32
    %c0_i32_0 = arith.constant 0 : i32
    %c0_i32_1 = arith.constant 0 : i32
    return %arg0, %c0_i32, %c0_i32_0 : i32, i32, i32
  }
  func.func @transform_15(%arg0: i32) -> (i32, i32, i32) {
    %c0_i32 = arith.constant 0 : i32
    %c0_i32_0 = arith.constant 0 : i32
    %c0_i32_1 = arith.constant 0 : i32
    return %arg0, %c0_i32, %c0_i32_0 : i32, i32, i32
  }
  func.func @transform_16(%arg0: i32) -> (i32, i32) {
    %c0_i32 = arith.constant 0 : i32
    %c0_i32_0 = arith.constant 0 : i32
    %c0_i32_1 = arith.constant 0 : i32
    return %c0_i32, %c0_i32_0 : i32, i32
  }
  func.func @transform_17(%arg0: i32) -> (i32, i32) {
    %c0_i32 = arith.constant 0 : i32
    %c0_i32_0 = arith.constant 0 : i32
    %c0_i32_1 = arith.constant 0 : i32
    return %c0_i32, %c0_i32_0 : i32, i32
  }
  func.func @transform_18(%arg0: i32) -> (i32, i32) {
    %c0_i32 = arith.constant 0 : i32
    %c0_i32_0 = arith.constant 0 : i32
    %c0_i32_1 = arith.constant 0 : i32
    return %c0_i32, %c0_i32_0 : i32, i32
  }
}

</mosaic_0001>

<llo_original>
// kernel: hard_share_forward.1
$region0: #{hard_share_forward.1}
  #allocation0 [shape = 'u32[]', space=smem, size = 0x4, offset = 0x4, fixed_abs, tag = 'smem constant byte address 0x4 - core index']
  #allocation1 [shape = 'u32[144,128]{1,0:T(1,128)}', space=vmem, size = 0x12000, scoped, tag = 'internal scratch']
  #allocation2 [shape = 'f32[32,128]{1,0:T(8,128)}', space=vmem, size = 0x4000, scoped, tag = 'scratch operand']
  %s0 = inlined_call_operand.vmem [shape: f32[32,128], index: 0, kind: input, shape index: {}]
  %s1 = inlined_call_operand.vmem [shape: f32[1,128], index: 1, kind: input, shape index: {}]
  %s2 = inlined_call_operand.vmem [shape: f32[1,128], index: 2, kind: input, shape index: {}]
  %s3 = inlined_call_operand.vmem [shape: f32[32,32], index: 3, kind: input, shape index: {}]
  %s4 = inlined_call_operand.hbm [shape: f32[2,128,384], index: 4, kind: input, shape index: {}]
  %s5 = inlined_call_operand.vmem [shape: f32[2,1,384], index: 5, kind: input, shape index: {}]
  %s6 = inlined_call_operand.vmem [shape: f32[2,128,128], index: 6, kind: input, shape index: {}]
  %s7 = inlined_call_operand.vmem [shape: f32[2,1,128], index: 7, kind: input, shape index: {}]
  %s8 = inlined_call_operand.vmem [shape: f32[2,1,128], index: 8, kind: input, shape index: {}]
  %s9 = inlined_call_operand.vmem [shape: f32[2,1,128], index: 9, kind: input, shape index: {}]
  %s10 = inlined_call_operand.hbm [shape: f32[2,128,512], index: 10, kind: input, shape index: {}]
  %s11 = inlined_call_operand.vmem [shape: f32[2,1,512], index: 11, kind: input, shape index: {}]
  %s12 = inlined_call_operand.hbm [shape: f32[2,512,128], index: 12, kind: input, shape index: {}]
  %s13 = inlined_call_operand.vmem [shape: f32[2,1,128], index: 13, kind: input, shape index: {}]
  %s14 = inlined_call_operand.vmem [shape: f32[2,1,128], index: 14, kind: input, shape index: {}]
  %s15 = inlined_call_operand.vmem [shape: f32[2,1,128], index: 15, kind: input, shape index: {}]
  %s16 = inlined_call_operand.vmem [shape: f32[128,128], index: 16, kind: input, shape index: {}]
  %s17 = inlined_call_operand.vmem [shape: f32[1,128], index: 17, kind: input, shape index: {}]
  %s18 = inlined_call_operand.vmem [shape: f32[32,128], index: 18, kind: output, shape index: {}]
  %s19 = sld [smem:[#allocation0]]
  $region125: #{hard_share_forward.1} parent=0
    _
  %s21 = ssub.s32 1, %s19
  %s22 = scalar_select 0, %s21, %s19
  $region1: #{hard_share_forward.1} parent=0
    #allocation3 [shape = 'u8[393216]{0}', space=vmem, size = 0x60000, scoped, tag = 'input window, operand 4']
    #allocation4 [shape = 's32[2]{0}', space=sflag, size = 0x8, scoped, tag = 'scoped memory for hard_share_forward.1']
    #allocation5 [shape = 'u8[524288]{0}', space=vmem, size = 0x80000, scoped, tag = 'input window, operand 10']
    #allocation6 [shape = 's32[2]{0}', space=sflag, size = 0x8, scoped, tag = 'scoped memory for hard_share_forward.1']
    #allocation7 [shape = 'u8[524288]{0}', space=vmem, size = 0x80000, scoped, tag = 'input window, operand 12']
    %23 = vsyncpa [#allocation4], 0
    %s24 = scalar_lea.sflag [#allocation4], 1
    %25 = vsyncpa %s24, 0
    %26 = vsyncpa [#allocation6], 0
    %s27 = scalar_lea.sflag [#allocation6], 1
    %28 = vsyncpa %s27, 0
    loop: start=0, step=1, limit=4
    $region2: #{hard_share_forward.1} parent=1 // loop_pre_header
      _
    $region3: #{hard_share_forward.1} parent=1 // loop_header
      %s30 = sphi 0, %s34
      %p31 = scmp.ge.s32.totalorder %s30, 4
      %s38 = sphi 0, %s38
      %s40 = sphi 0, %s38
      %s41 = sphi 0, %s40
      %s55 = sphi 0, %s41
      %s59 = sphi 0, %s59
      %s61 = sphi 0, %s59
      %s62 = sphi 0, %s61
      %s76 = sphi 0, %s62
      %s80 = sphi 0, %s80
      %s82 = sphi 0, %s80
      %s83 = sphi 0, %s82
      %s97 = sphi 0, %s83
      %s101 = sphi 0, %s101
      %s103 = sphi 0, %s101
      %s104 = sphi 0, %s103
      %s118 = sphi 0, %s104
      %s124 = sphi 0, %s126
      %s127 = sphi 0, %s124
      %s128 = sphi 0, %s127
      %s144 = sphi 0, %s128
      %s150 = sphi 0, %s152
      %s153 = sphi 0, %s150
      %s154 = sphi 0, %s153
      %s170 = sphi 0, %s154
      %s176 = sphi 0, %s178
      %s179 = sphi 0, %s176
      %s180 = sphi 0, %s179
      %s196 = sphi 0, %s180
      %s202 = sphi 0, %s204
      %s205 = sphi 0, %s202
      %s206 = sphi 0, %s205
      %s222 = sphi 0, %s206
      %s228 = sphi 0, %s230
      %s231 = sphi 0, %s228
      %s232 = sphi 0, %s231
      %s248 = sphi 0, %s232
      %s254 = sphi 0, %s256
      %s257 = sphi 0, %s254
      %s258 = sphi 0, %s257
      %s274 = sphi 0, %s258
      %s280 = sphi 0, %s282
      %s283 = sphi 0, %s280
      %s284 = sphi 0, %s283
      %s300 = sphi 0, %s284
      %s306 = sphi 0, %s308
      %s309 = sphi 0, %s306
      %s310 = sphi 0, %s309
      %s326 = sphi 0, %s310
      %s332 = sphi 0, %s334
      %s335 = sphi 0, %s332
      %s336 = sphi 0, %s335
      %s352 = sphi 0, %s336
      %s358 = sphi 0, %s360
      %s361 = sphi 0, %s358
      %s362 = sphi 0, %s361
      %s378 = sphi 0, %s362
      %s384 = sphi 0, %s386
      %s387 = sphi 0, %s384
      %s388 = sphi 0, %s387
      %s404 = sphi 0, %s388
      %s410 = sphi 0, %s412
      %s413 = sphi 0, %s410
      %s414 = sphi 0, %s413
      %s430 = sphi 0, %s414
      %s434 = sphi 0, %s434
      %s436 = sphi 0, %s434
      %s437 = sphi 0, %s436
      %s451 = sphi 0, %s437
      %s455 = sphi 0, %s455
      %s457 = sphi 0, %s455
      %s458 = sphi 0, %s457
      %s472 = sphi 0, %s458
      %s476 = sphi 0, %s476
      %s478 = sphi 0, %s476
      %s479 = sphi 0, %s478
      %s493 = sphi 0, %s479
    $region4: #{hard_share_forward.1} parent=1 // loop_header_branch
      %33 = sbr.rel (%p31) target = $region8
    $region5: #{hard_share_forward.1} parent=1 // loop_body
      %s35 = ssub.s32 %s30, 1
      %s36 = ssub.s32 %s30, 2
      %s37 = sadd.s32 %s30, 1
      %s39 = sadd.s32 %s38, 1
      %p42 = scmp.eq.s32.totalorder %s30, 1
      %p43 = scmp.ne.s32.totalorder %s38, %s40
      %p44 = scmp.eq.s32.totalorder %s30, 0
      %p45 = por %p43, %p44
      %p46 = scmp.ne.s32.totalorder %s38, %s40
      %p47 = scmp.eq.s32.totalorder %s35, 1
      %p48 = por %p46, %p47
      %p49 = scmp.ne.s32.totalorder %s40, %s41
      %p50 = scmp.eq.s32.totalorder %s35, 0
      %p51 = por %p49, %p50
      %p52 = scmp.ne.s32.totalorder %s40, %s41
      %p53 = scmp.eq.s32.totalorder %s36, 1
      %p54 = por %p52, %p53
      %p56 = scmp.ne.s32.totalorder %s41, %s55
      %p57 = scmp.eq.s32.totalorder %s36, 0
      %p58 = por %p56, %p57
      %s60 = sadd.s32 %s59, 1
      %p63 = scmp.eq.s32.totalorder %s30, 1
      %p64 = scmp.ne.s32.totalorder %s59, %s61
      %p65 = scmp.eq.s32.totalorder %s30, 0
      %p66 = por %p64, %p65
      %p67 = scmp.ne.s32.totalorder %s59, %s61
      %p68 = scmp.eq.s32.totalorder %s35, 1
      %p69 = por %p67, %p68
      %p70 = scmp.ne.s32.totalorder %s61, %s62
      %p71 = scmp.eq.s32.totalorder %s35, 0
      %p72 = por %p70, %p71
      %p73 = scmp.ne.s32.totalorder %s61, %s62
      %p74 = scmp.eq.s32.totalorder %s36, 1
      %p75 = por %p73, %p74
      %p77 = scmp.ne.s32.totalorder %s62, %s76
      %p78 = scmp.eq.s32.totalorder %s36, 0
      %p79 = por %p77, %p78
      %s81 = sadd.s32 %s80, 1
      %p84 = scmp.eq.s32.totalorder %s30, 1
      %p85 = scmp.ne.s32.totalorder %s80, %s82
      %p86 = scmp.eq.s32.totalorder %s30, 0
      %p87 = por %p85, %p86
      %p88 = scmp.ne.s32.totalorder %s80, %s82
      %p89 = scmp.eq.s32.totalorder %s35, 1
      %p90 = por %p88, %p89
      %p91 = scmp.ne.s32.totalorder %s82, %s83
      %p92 = scmp.eq.s32.totalorder %s35, 0
      %p93 = por %p91, %p92
      %p94 = scmp.ne.s32.totalorder %s82, %s83
      %p95 = scmp.eq.s32.totalorder %s36, 1
      %p96 = por %p94, %p95
      %p98 = scmp.ne.s32.totalorder %s83, %s97
      %p99 = scmp.eq.s32.totalorder %s36, 0
      %p100 = por %p98, %p99
      %s102 = sadd.s32 %s101, 1
      %p105 = scmp.eq.s32.totalorder %s30, 1
      %p106 = scmp.ne.s32.totalorder %s101, %s103
      %p107 = scmp.eq.s32.totalorder %s30, 0
      %p108 = por %p106, %p107
      %p109 = scmp.ne.s32.totalorder %s101, %s103
      %p110 = scmp.eq.s32.totalorder %s35, 1
      %p111 = por %p109, %p110
      %p112 = scmp.ne.s32.totalorder %s103, %s104
      %p113 = scmp.eq.s32.totalorder %s35, 0
      %p114 = por %p112, %p113
      %p115 = scmp.ne.s32.totalorder %s103, %s104
      %p116 = scmp.eq.s32.totalorder %s36, 1
      %p117 = por %p115, %p116
      %p119 = scmp.ne.s32.totalorder %s104, %s118
      %p120 = scmp.eq.s32.totalorder %s36, 0
      %p121 = por %p119, %p120
      %s122 = ssub.s32 %s30, %s37
      %p123 = scmp.eq.s32.totalorder %s122, 0
      %s125 = sadd.s32 %s124, 1
      %s126 = scalar_select %p123, %s124, %s125
      %p129 = pneg %p123
      %p130 = scmp.eq.s32.totalorder %s30, 1
      %p131 = por %p129, %p130
      %p132 = scmp.ne.s32.totalorder %s124, %s127
      %p133 = scmp.eq.s32.totalorder %s30, 0
      %p134 = por %p132, %p133
      %p135 = scmp.ne.s32.totalorder %s124, %s127
      %p136 = scmp.eq.s32.totalorder %s35, 1
      %p137 = por %p135, %p136
      %p138 = scmp.ne.s32.totalorder %s127, %s128
      %p139 = scmp.eq.s32.totalorder %s35, 0
      %p140 = por %p138, %p139
      %p141 = scmp.ne.s32.totalorder %s127, %s128
      %p142 = scmp.eq.s32.totalorder %s36, 1
      %p143 = por %p141, %p142
      %p145 = scmp.ne.s32.totalorder %s128, %s144
      %p146 = scmp.eq.s32.totalorder %s36, 0
      %p147 = por %p145, %p146
      %s148 = ssub.s32 %s30, %s37
      %p149 = scmp.eq.s32.totalorder %s148, 0
      %s151 = sadd.s32 %s150, 1
      %s152 = scalar_select %p149, %s150, %s151
      %p155 = pneg %p149
      %p156 = scmp.eq.s32.totalorder %s30, 1
      %p157 = por %p155, %p156
      %p158 = scmp.ne.s32.totalorder %s150, %s153
      %p159 = scmp.eq.s32.totalorder %s30, 0
      %p160 = por %p158, %p159
      %p161 = scmp.ne.s32.totalorder %s150, %s153
      %p162 = scmp.eq.s32.totalorder %s35, 1
      %p163 = por %p161, %p162
      %p164 = scmp.ne.s32.totalorder %s153, %s154
      %p165 = scmp.eq.s32.totalorder %s35, 0
      %p166 = por %p164, %p165
      %p167 = scmp.ne.s32.totalorder %s153, %s154
      %p168 = scmp.eq.s32.totalorder %s36, 1
      %p169 = por %p167, %p168
      %p171 = scmp.ne.s32.totalorder %s154, %s170
      %p172 = scmp.eq.s32.totalorder %s36, 0
      %p173 = por %p171, %p172
      %s174 = ssub.s32 %s30, %s37
      %p175 = scmp.eq.s32.totalorder %s174, 0
      %s177 = sadd.s32 %s176, 1
      %s178 = scalar_select %p175, %s176, %s177
      %p181 = pneg %p175
      %p182 = scmp.eq.s32.totalorder %s30, 1
      %p183 = por %p181, %p182
      %p184 = scmp.ne.s32.totalorder %s176, %s179
      %p185 = scmp.eq.s32.totalorder %s30, 0
      %p186 = por %p184, %p185
      %p187 = scmp.ne.s32.totalorder %s176, %s179
      %p188 = scmp.eq.s32.totalorder %s35, 1
      %p189 = por %p187, %p188
      %p190 = scmp.ne.s32.totalorder %s179, %s180
      %p191 = scmp.eq.s32.totalorder %s35, 0
      %p192 = por %p190, %p191
      %p193 = scmp.ne.s32.totalorder %s179, %s180
      %p194 = scmp.eq.s32.totalorder %s36, 1
      %p195 = por %p193, %p194
      %p197 = scmp.ne.s32.totalorder %s180, %s196
      %p198 = scmp.eq.s32.totalorder %s36, 0
      %p199 = por %p197, %p198
      %s200 = ssub.s32 %s30, %s37
      %p201 = scmp.eq.s32.totalorder %s200, 0
      %s203 = sadd.s32 %s202, 1
      %s204 = scalar_select %p201, %s202, %s203
      %p207 = pneg %p201
      %p208 = scmp.eq.s32.totalorder %s30, 1
      %p209 = por %p207, %p208
      %p210 = scmp.ne.s32.totalorder %s202, %s205
      %p211 = scmp.eq.s32.totalorder %s30, 0
      %p212 = por %p210, %p211
      %p213 = scmp.ne.s32.totalorder %s202, %s205
      %p214 = scmp.eq.s32.totalorder %s35, 1
      %p215 = por %p213, %p214
      %p216 = scmp.ne.s32.totalorder %s205, %s206
      %p217 = scmp.eq.s32.totalorder %s35, 0
      %p218 = por %p216, %p217
      %p219 = scmp.ne.s32.totalorder %s205, %s206
      %p220 = scmp.eq.s32.totalorder %s36, 1
      %p221 = por %p219, %p220
      %p223 = scmp.ne.s32.totalorder %s206, %s222
      %p224 = scmp.eq.s32.totalorder %s36, 0
      %p225 = por %p223, %p224
      %s226 = ssub.s32 %s30, %s37
      %p227 = scmp.eq.s32.totalorder %s226, 0
      %s229 = sadd.s32 %s228, 1
      %s230 = scalar_select %p227, %s228, %s229
      %p233 = pneg %p227
      %p234 = scmp.eq.s32.totalorder %s30, 1
      %p235 = por %p233, %p234
      %p236 = scmp.ne.s32.totalorder %s228, %s231
      %p237 = scmp.eq.s32.totalorder %s30, 0
      %p238 = por %p236, %p237
      %p239 = scmp.ne.s32.totalorder %s228, %s231
      %p240 = scmp.eq.s32.totalorder %s35, 1
      %p241 = por %p239, %p240
      %p242 = scmp.ne.s32.totalorder %s231, %s232
      %p243 = scmp.eq.s32.totalorder %s35, 0
      %p244 = por %p242, %p243
      %p245 = scmp.ne.s32.totalorder %s231, %s232
      %p246 = scmp.eq.s32.totalorder %s36, 1
      %p247 = por %p245, %p246
      %p249 = scmp.ne.s32.totalorder %s232, %s248
      %p250 = scmp.eq.s32.totalorder %s36, 0
      %p251 = por %p249, %p250
      %s252 = ssub.s32 %s30, %s37
      %p253 = scmp.eq.s32.totalorder %s252, 0
      %s255 = sadd.s32 %s254, 1
      %s256 = scalar_select %p253, %s254, %s255
      %p259 = pneg %p253
      %p260 = scmp.eq.s32.totalorder %s30, 1
      %p261 = por %p259, %p260
      %p262 = scmp.ne.s32.totalorder %s254, %s257
      %p263 = scmp.eq.s32.totalorder %s30, 0
      %p264 = por %p262, %p263
      %p265 = scmp.ne.s32.totalorder %s254, %s257
      %p266 = scmp.eq.s32.totalorder %s35, 1
      %p267 = por %p265, %p266
      %p268 = scmp.ne.s32.totalorder %s257, %s258
      %p269 = scmp.eq.s32.totalorder %s35, 0
      %p270 = por %p268, %p269
      %p271 = scmp.ne.s32.totalorder %s257, %s258
      %p272 = scmp.eq.s32.totalorder %s36, 1
      %p273 = por %p271, %p272
      %p275 = scmp.ne.s32.totalorder %s258, %s274
      %p276 = scmp.eq.s32.totalorder %s36, 0
      %p277 = por %p275, %p276
      %s278 = ssub.s32 %s30, %s37
      %p279 = scmp.eq.s32.totalorder %s278, 0
      %s281 = sadd.s32 %s280, 1
      %s282 = scalar_select %p279, %s280, %s281
      %p285 = pneg %p279
      %p286 = scmp.eq.s32.totalorder %s30, 1
      %p287 = por %p285, %p286
      %p288 = scmp.ne.s32.totalorder %s280, %s283
      %p289 = scmp.eq.s32.totalorder %s30, 0
      %p290 = por %p288, %p289
      %p291 = scmp.ne.s32.totalorder %s280, %s283
      %p292 = scmp.eq.s32.totalorder %s35, 1
      %p293 = por %p291, %p292
      %p294 = scmp.ne.s32.totalorder %s283, %s284
      %p295 = scmp.eq.s32.totalorder %s35, 0
      %p296 = por %p294, %p295
      %p297 = scmp.ne.s32.totalorder %s283, %s284
      %p298 = scmp.eq.s32.totalorder %s36, 1
      %p299 = por %p297, %p298
      %p301 = scmp.ne.s32.totalorder %s284, %s300
      %p302 = scmp.eq.s32.totalorder %s36, 0
      %p303 = por %p301, %p302
      %s304 = ssub.s32 %s30, %s37
      %p305 = scmp.eq.s32.totalorder %s304, 0
      %s307 = sadd.s32 %s306, 1
      %s308 = scalar_select %p305, %s306, %s307
      %p311 = pneg %p305
      %p312 = scmp.eq.s32.totalorder %s30, 1
      %p313 = por %p311, %p312
      %p314 = scmp.ne.s32.totalorder %s306, %s309
      %p315 = scmp.eq.s32.totalorder %s30, 0
      %p316 = por %p314, %p315
      %p317 = scmp.ne.s32.totalorder %s306, %s309
      %p318 = scmp.eq.s32.totalorder %s35, 1
      %p319 = por %p317, %p318
      %p320 = scmp.ne.s32.totalorder %s309, %s310
      %p321 = scmp.eq.s32.totalorder %s35, 0
      %p322 = por %p320, %p321
      %p323 = scmp.ne.s32.totalorder %s309, %s310
      %p324 = scmp.eq.s32.totalorder %s36, 1
      %p325 = por %p323, %p324
      %p327 = scmp.ne.s32.totalorder %s310, %s326
      %p328 = scmp.eq.s32.totalorder %s36, 0
      %p329 = por %p327, %p328
      %s330 = ssub.s32 %s30, %s37
      %p331 = scmp.eq.s32.totalorder %s330, 0
      %s333 = sadd.s32 %s332, 1
      %s334 = scalar_select %p331, %s332, %s333
      %p337 = pneg %p331
      %p338 = scmp.eq.s32.totalorder %s30, 1
      %p339 = por %p337, %p338
      %p340 = scmp.ne.s32.totalorder %s332, %s335
      %p341 = scmp.eq.s32.totalorder %s30, 0
      %p342 = por %p340, %p341
      %p343 = scmp.ne.s32.totalorder %s332, %s335
      %p344 = scmp.eq.s32.totalorder %s35, 1
      %p345 = por %p343, %p344
      %p346 = scmp.ne.s32.totalorder %s335, %s336
      %p347 = scmp.eq.s32.totalorder %s35, 0
      %p348 = por %p346, %p347
      %p349 = scmp.ne.s32.totalorder %s335, %s336
      %p350 = scmp.eq.s32.totalorder %s36, 1
      %p351 = por %p349, %p350
      %p353 = scmp.ne.s32.totalorder %s336, %s352
      %p354 = scmp.eq.s32.totalorder %s36, 0
      %p355 = por %p353, %p354
      %s356 = ssub.s32 %s30, %s37
      %p357 = scmp.eq.s32.totalorder %s356, 0
      %s359 = sadd.s32 %s358, 1
      %s360 = scalar_select %p357, %s358, %s359
      %p363 = pneg %p357
      %p364 = scmp.eq.s32.totalorder %s30, 1
      %p365 = por %p363, %p364
      %p366 = scmp.ne.s32.totalorder %s358, %s361
      %p367 = scmp.eq.s32.totalorder %s30, 0
      %p368 = por %p366, %p367
      %p369 = scmp.ne.s32.totalorder %s358, %s361
      %p370 = scmp.eq.s32.totalorder %s35, 1
      %p371 = por %p369, %p370
      %p372 = scmp.ne.s32.totalorder %s361, %s362
      %p373 = scmp.eq.s32.totalorder %s35, 0
      %p374 = por %p372, %p373
      %p375 = scmp.ne.s32.totalorder %s361, %s362
      %p376 = scmp.eq.s32.totalorder %s36, 1
      %p377 = por %p375, %p376
      %p379 = scmp.ne.s32.totalorder %s362, %s378
      %p380 = scmp.eq.s32.totalorder %s36, 0
      %p381 = por %p379, %p380
      %s382 = ssub.s32 %s30, %s37
      %p383 = scmp.eq.s32.totalorder %s382, 0
      %s385 = sadd.s32 %s384, 1
      %s386 = scalar_select %p383, %s384, %s385
      %p389 = pneg %p383
      %p390 = scmp.eq.s32.totalorder %s30, 1
      %p391 = por %p389, %p390
      %p392 = scmp.ne.s32.totalorder %s384, %s387
      %p393 = scmp.eq.s32.totalorder %s30, 0
      %p394 = por %p392, %p393
      %p395 = scmp.ne.s32.totalorder %s384, %s387
      %p396 = scmp.eq.s32.totalorder %s35, 1
      %p397 = por %p395, %p396
      %p398 = scmp.ne.s32.totalorder %s387, %s388
      %p399 = scmp.eq.s32.totalorder %s35, 0
      %p400 = por %p398, %p399
      %p401 = scmp.ne.s32.totalorder %s387, %s388
      %p402 = scmp.eq.s32.totalorder %s36, 1
      %p403 = por %p401, %p402
      %p405 = scmp.ne.s32.totalorder %s388, %s404
      %p406 = scmp.eq.s32.totalorder %s36, 0
      %p407 = por %p405, %p406
      %s408 = ssub.s32 %s30, %s37
      %p409 = scmp.eq.s32.totalorder %s408, 0
      %s411 = sadd.s32 %s410, 1
      %s412 = scalar_select %p409, %s410, %s411
      %p415 = pneg %p409
      %p416 = scmp.eq.s32.totalorder %s30, 1
      %p417 = por %p415, %p416
      %p418 = scmp.ne.s32.totalorder %s410, %s413
      %p419 = scmp.eq.s32.totalorder %s30, 0
      %p420 = por %p418, %p419
      %p421 = scmp.ne.s32.totalorder %s410, %s413
      %p422 = scmp.eq.s32.totalorder %s35, 1
      %p423 = por %p421, %p422
      %p424 = scmp.ne.s32.totalorder %s413, %s414
      %p425 = scmp.eq.s32.totalorder %s35, 0
      %p426 = por %p424, %p425
      %p427 = scmp.ne.s32.totalorder %s413, %s414
      %p428 = scmp.eq.s32.totalorder %s36, 1
      %p429 = por %p427, %p428
      %p431 = scmp.ne.s32.totalorder %s414, %s430
      %p432 = scmp.eq.s32.totalorder %s36, 0
      %p433 = por %p431, %p432
      %s435 = sadd.s32 %s434, 1
      %p438 = scmp.eq.s32.totalorder %s30, 1
      %p439 = scmp.ne.s32.totalorder %s434, %s436
      %p440 = scmp.eq.s32.totalorder %s30, 0
      %p441 = por %p439, %p440
      %p442 = scmp.ne.s32.totalorder %s434, %s436
      %p443 = scmp.eq.s32.totalorder %s35, 1
      %p444 = por %p442, %p443
      %p445 = scmp.ne.s32.totalorder %s436, %s437
      %p446 = scmp.eq.s32.totalorder %s35, 0
      %p447 = por %p445, %p446
      %p448 = scmp.ne.s32.totalorder %s436, %s437
      %p449 = scmp.eq.s32.totalorder %s36, 1
      %p450 = por %p448, %p449
      %p452 = scmp.ne.s32.totalorder %s437, %s451
      %p453 = scmp.eq.s32.totalorder %s36, 0
      %p454 = por %p452, %p453
      %s456 = sadd.s32 %s455, 1
      %p459 = scmp.eq.s32.totalorder %s30, 1
      %p460 = scmp.ne.s32.totalorder %s455, %s457
      %p461 = scmp.eq.s32.totalorder %s30, 0
      %p462 = por %p460, %p461
      %p463 = scmp.ne.s32.totalorder %s455, %s457
      %p464 = scmp.eq.s32.totalorder %s35, 1
      %p465 = por %p463, %p464
      %p466 = scmp.ne.s32.totalorder %s457, %s458
      %p467 = scmp.eq.s32.totalorder %s35, 0
      %p468 = por %p466, %p467
      %p469 = scmp.ne.s32.totalorder %s457, %s458
      %p470 = scmp.eq.s32.totalorder %s36, 1
      %p471 = por %p469, %p470
      %p473 = scmp.ne.s32.totalorder %s458, %s472
      %p474 = scmp.eq.s32.totalorder %s36, 0
      %p475 = por %p473, %p474
      %s477 = sadd.s32 %s476, 1
      %p480 = scmp.eq.s32.totalorder %s30, 1
      %p481 = scmp.ne.s32.totalorder %s476, %s478
      %p482 = scmp.eq.s32.totalorder %s30, 0
      %p483 = por %p481, %p482
      %p484 = scmp.ne.s32.totalorder %s476, %s478
      %p485 = scmp.eq.s32.totalorder %s35, 1
      %p486 = por %p484, %p485
      %p487 = scmp.ne.s32.totalorder %s478, %s479
      %p488 = scmp.eq.s32.totalorder %s35, 0
      %p489 = por %p487, %p488
      %p490 = scmp.ne.s32.totalorder %s478, %s479
      %p491 = scmp.eq.s32.totalorder %s36, 1
      %p492 = por %p490, %p491
      %p494 = scmp.ne.s32.totalorder %s479, %s493
      %p495 = scmp.eq.s32.totalorder %s36, 0
      %p496 = por %p494, %p495
      %p497 = scmp.le.s32.totalorder 1, %s30
      %p498 = scmp.lt.s32.totalorder %s30, 3
      %p499 = pnand %p497, %p498
      %p500 = pneg %p499
      // Predicated region
      $region9: #{hard_share_forward.1} parent=5 // pred_check
        _
      $region10: #{hard_share_forward.1} parent=5 // pred_check_branch
        %502 = sbr.rel (%p499) target = $region12
      $region11: #{hard_share_forward.1} parent=5 // pred_region
        %s503 = ssub.s32 %s30, 1
        // Predicated region
        $region13: #{hard_share_forward.1} parent=11 // pred_check
          %p504 = pneg %p51
        $region14: #{hard_share_forward.1} parent=11 // pred_check_branch
          %506 = sbr.rel (%p504) target = $region16
        $region15: #{hard_share_forward.1} parent=11 // pred_region
          _
        $region16: #{hard_share_forward.1} parent=11 // pred_fallthru
          _
        // Predicated region
        $region17: #{hard_share_forward.1} parent=11 // pred_check
          %p507 = pneg %p72
        $region18: #{hard_share_forward.1} parent=11 // pred_check_branch
          %509 = sbr.rel (%p507) target = $region20
        $region19: #{hard_share_forward.1} parent=11 // pred_region
          _
        $region20: #{hard_share_forward.1} parent=11 // pred_fallthru
          _
        // Predicated region
        $region21: #{hard_share_forward.1} parent=11 // pred_check
          %p510 = pneg %p93
        $region22: #{hard_share_forward.1} parent=11 // pred_check_branch
          %512 = sbr.rel (%p510) target = $region24
        $region23: #{hard_share_forward.1} parent=11 // pred_region
          _
        $region24: #{hard_share_forward.1} parent=11 // pred_fallthru
          _
        // Predicated region
        $region25: #{hard_share_forward.1} parent=11 // pred_check
          %p513 = pneg %p114
        $region26: #{hard_share_forward.1} parent=11 // pred_check_branch
          %515 = sbr.rel (%p513) target = $region28
        $region27: #{hard_share_forward.1} parent=11 // pred_region
          _
        $region28: #{hard_share_forward.1} parent=11 // pred_fallthru
          _
        // Predicated region
        $region29: #{hard_share_forward.1} parent=11 // pred_check
          %p516 = pneg %p447
        $region30: #{hard_share_forward.1} parent=11 // pred_check_branch
          %518 = sbr.rel (%p516) target = $region32
        $region31: #{hard_share_forward.1} parent=11 // pred_region
          _
        $region32: #{hard_share_forward.1} parent=11 // pred_fallthru
          _
        // Predicated region
        $region33: #{hard_share_forward.1} parent=11 // pred_check
          %p519 = pneg %p468
        $region34: #{hard_share_forward.1} parent=11 // pred_check_branch
          %521 = sbr.rel (%p519) target = $region36
        $region35: #{hard_share_forward.1} parent=11 // pred_region
          _
        $region36: #{hard_share_forward.1} parent=11 // pred_fallthru
          _
      $region12: #{hard_share_forward.1} parent=5 // pred_fallthru
        _
      %p522 = scmp.lt.s32.totalorder %s30, 2
      // Predicated region
      $region37: #{hard_share_forward.1} parent=5 // pred_check
        %p523 = pneg %p522
      $region38: #{hard_share_forward.1} parent=5 // pred_check_branch
        %525 = sbr.rel (%p523) target = $region40
      $region39: #{hard_share_forward.1} parent=5 // pred_region
        // Predicated region
        $region41: #{hard_share_forward.1} parent=39 // pred_check
          %p526 = pneg %p134
        $region42: #{hard_share_forward.1} parent=39 // pred_check_branch
          %528 = sbr.rel (%p526) target = $region44
        $region43: #{hard_share_forward.1} parent=39 // pred_region
          %s529 = sand.u32 %s124, 1
          %s530 = scalar_lea.sflag [#allocation4], %s529
          %s531 = sand.u32 %s124, 1
          %s532 = smul.addr %s531, 384
          %s533 = scalar_lea.vmem [#allocation3], %s532
          %s535 = ssub.s32 6144, 6144
          %536 = vsyncadd %s530, %s535
          %s537 = smul.addr %s30, 48
          %s538 = smul.addr %s537, 128
          %s539 = scalar_lea.hbm %s4, %s538
          %s540 = sshll.u32 %s533, 4
          %s541 = int_to_ptr.vmem [resolvable:$true] %s540
          %546 = dma.hbm_to_vmem [thread:$0]  %s539, 6144, %s541, %s530, 384, 384, 24
        $region44: #{hard_share_forward.1} parent=39 // pred_fallthru
          _
        // Predicated region
        $region45: #{hard_share_forward.1} parent=39 // pred_check
          %p547 = pneg %p160
        $region46: #{hard_share_forward.1} parent=39 // pred_check_branch
          %549 = sbr.rel (%p547) target = $region48
        $region47: #{hard_share_forward.1} parent=39 // pred_region
          %p550 = scmp.lt.s32.totalorder %s30, 1
          %s551 = scalar_select %p550, %s30, 1
          %s552 = smul.addr %s551, 3
          %s553 = scalar_lea.vmem %s5, %s552
        $region48: #{hard_share_forward.1} parent=39 // pred_fallthru
          _
        // Predicated region
        $region49: #{hard_share_forward.1} parent=39 // pred_check
          %p554 = pneg %p186
        $region50: #{hard_share_forward.1} parent=39 // pred_check_branch
          %556 = sbr.rel (%p554) target = $region52
        $region51: #{hard_share_forward.1} parent=39 // pred_region
          %p557 = scmp.lt.s32.totalorder %s30, 1
          %s558 = scalar_select %p557, %s30, 1
          %s559 = smul.addr %s558, 16
          %s560 = smul.addr %s559, 8
          %s561 = scalar_lea.vmem %s6, %s560
        $region52: #{hard_share_forward.1} parent=39 // pred_fallthru
          _
        // Predicated region
        $region53: #{hard_share_forward.1} parent=39 // pred_check
          %p562 = pneg %p212
        $region54: #{hard_share_forward.1} parent=39 // pred_check_branch
          %564 = sbr.rel (%p562) target = $region56
        $region55: #{hard_share_forward.1} parent=39 // pred_region
          %p565 = scmp.lt.s32.totalorder %s30, 1
          %s566 = scalar_select %p565, %s30, 1
          %s567 = scalar_lea.vmem %s7, %s566
        $region56: #{hard_share_forward.1} parent=39 // pred_fallthru
          _
        // Predicated region
        $region57: #{hard_share_forward.1} parent=39 // pred_check
          %p568 = pneg %p238
        $region58: #{hard_share_forward.1} parent=39 // pred_check_branch
          %570 = sbr.rel (%p568) target = $region60
        $region59: #{hard_share_forward.1} parent=39 // pred_region
          %p571 = scmp.lt.s32.totalorder %s30, 1
          %s572 = scalar_select %p571, %s30, 1
          %s573 = scalar_lea.vmem %s8, %s572
        $region60: #{hard_share_forward.1} parent=39 // pred_fallthru
          _
        // Predicated region
        $region61: #{hard_share_forward.1} parent=39 // pred_check
          %p574 = pneg %p264
        $region62: #{hard_share_forward.1} parent=39 // pred_check_branch
          %576 = sbr.rel (%p574) target = $region64
        $region63: #{hard_share_forward.1} parent=39 // pred_region
          %p577 = scmp.lt.s32.totalorder %s30, 1
          %s578 = scalar_select %p577, %s30, 1
          %s579 = scalar_lea.vmem %s9, %s578
        $region64: #{hard_share_forward.1} parent=39 // pred_fallthru
          _
        // Predicated region
        $region65: #{hard_share_forward.1} parent=39 // pred_check
          %p580 = pneg %p290
        $region66: #{hard_share_forward.1} parent=39 // pred_check_branch
          %582 = sbr.rel (%p580) target = $region68
        $region67: #{hard_share_forward.1} parent=39 // pred_region
          %s583 = sand.u32 %s30, 1
          %s584 = scalar_lea.sflag [#allocation6], %s583
          %s585 = sand.u32 %s280, 1
          %s586 = smul.addr %s585, 512
          %s587 = scalar_lea.vmem [#allocation5], %s586
          %s589 = ssub.s32 8192, 8192
          %590 = vsyncadd %s584, %s589
          %s591 = smul.addr %s30, 64
          %s592 = smul.addr %s591, 128
          %s593 = scalar_lea.hbm %s10, %s592
          %s594 = sshll.u32 %s587, 4
          %s595 = int_to_ptr.vmem [resolvable:$true] %s594
          %600 = dma.hbm_to_vmem [thread:$0]  %s593, 8192, %s595, %s584, 512, 512, 32
        $region68: #{hard_share_forward.1} parent=39 // pred_fallthru
          _
        // Predicated region
        $region69: #{hard_share_forward.1} parent=39 // pred_check
          %p601 = pneg %p316
        $region70: #{hard_share_forward.1} parent=39 // pred_check_branch
          %603 = sbr.rel (%p601) target = $region72
        $region71: #{hard_share_forward.1} parent=39 // pred_region
          %p604 = scmp.lt.s32.totalorder %s30, 1
          %s605 = scalar_select %p604, %s30, 1
          %s606 = smul.addr %s605, 4
          %s607 = scalar_lea.vmem %s11, %s606
        $region72: #{hard_share_forward.1} parent=39 // pred_fallthru
          _
        // Predicated region
        $region73: #{hard_share_forward.1} parent=39 // pred_check
          %p608 = pneg %p342
        $region74: #{hard_share_forward.1} parent=39 // pred_check_branch
          %610 = sbr.rel (%p608) target = $region76
        $region75: #{hard_share_forward.1} parent=39 // pred_region
          %s611 = sand.u32 %s30, 1
          %s612 = scalar_lea.sflag [#allocation6], %s611
          %s613 = sand.u32 %s332, 1
          %s614 = smul.addr %s613, 512
          %s615 = scalar_lea.vmem [#allocation7], %s614
          %s617 = ssub.s32 8192, 8192
          %618 = vsyncadd %s612, %s617
          %s619 = smul.addr %s30, 64
          %s620 = smul.addr %s619, 128
          %s621 = scalar_lea.hbm %s12, %s620
          %s622 = sshll.u32 %s615, 4
          %s623 = int_to_ptr.vmem [resolvable:$true] %s622
          %628 = dma.hbm_to_vmem [thread:$0]  %s621, 8192, %s623, %s612, 128, 128, 8
        $region76: #{hard_share_forward.1} parent=39 // pred_fallthru
          _
        // Predicated region
        $region77: #{hard_share_forward.1} parent=39 // pred_check
          %p629 = pneg %p368
        $region78: #{hard_share_forward.1} parent=39 // pred_check_branch
          %631 = sbr.rel (%p629) target = $region80
        $region79: #{hard_share_forward.1} parent=39 // pred_region
          %p632 = scmp.lt.s32.totalorder %s30, 1
          %s633 = scalar_select %p632, %s30, 1
          %s634 = scalar_lea.vmem %s13, %s633
        $region80: #{hard_share_forward.1} parent=39 // pred_fallthru
          _
        // Predicated region
        $region81: #{hard_share_forward.1} parent=39 // pred_check
          %p635 = pneg %p394
        $region82: #{hard_share_forward.1} parent=39 // pred_check_branch
          %637 = sbr.rel (%p635) target = $region84
        $region83: #{hard_share_forward.1} parent=39 // pred_region
          %p638 = scmp.lt.s32.totalorder %s30, 1
          %s639 = scalar_select %p638, %s30, 1
          %s640 = scalar_lea.vmem %s14, %s639
        $region84: #{hard_share_forward.1} parent=39 // pred_fallthru
          _
        // Predicated region
        $region85: #{hard_share_forward.1} parent=39 // pred_check
          %p641 = pneg %p420
        $region86: #{hard_share_forward.1} parent=39 // pred_check_branch
          %643 = sbr.rel (%p641) target = $region88
        $region87: #{hard_share_forward.1} parent=39 // pred_region
          %p644 = scmp.lt.s32.totalorder %s30, 1
          %s645 = scalar_select %p644, %s30, 1
          %s646 = scalar_lea.vmem %s15, %s645
        $region88: #{hard_share_forward.1} parent=39 // pred_fallthru
          _
      $region40: #{hard_share_forward.1} parent=5 // pred_fallthru
        _
      %p647 = scmp.le.s32.totalorder 1, %s30
      %p648 = scmp.lt.s32.totalorder %s30, 3
      %p649 = pnand %p647, %p648
      %p650 = pneg %p649
      // Predicated region
      $region89: #{hard_share_forward.1} parent=5 // pred_check
        _
      $region90: #{hard_share_forward.1} parent=5 // pred_check_branch
        %652 = sbr.rel (%p649) target = $region92
      $region91: #{hard_share_forward.1} parent=5 // pred_region
        %s653 = ssub.s32 %s30, 1
        %s654 = sand.u32 %s127, 1
        %s655 = scalar_lea.sflag [#allocation4], %s654
        %s656 = sand.u32 %s127, 1
        %s657 = smul.addr %s656, 384
        %s658 = scalar_lea.vmem [#allocation3], %s657
        // Predicated region
        $region93: #{hard_share_forward.1} parent=91 // pred_check
          %p659 = pneg %p140
        $region94: #{hard_share_forward.1} parent=91 // pred_check_branch
          %661 = sbr.rel (%p659) target = $region96
        $region95: #{hard_share_forward.1} parent=91 // pred_region
          %662 = dma.done %s655, 6144
        $region96: #{hard_share_forward.1} parent=91 // pred_fallthru
          _
        %s663 = sand.u32 %s35, 1
        %s664 = scalar_lea.sflag [#allocation6], %s663
        %s665 = sand.u32 %s283, 1
        %s666 = smul.addr %s665, 512
        %s667 = scalar_lea.vmem [#allocation5], %s666
        // Predicated region
        $region97: #{hard_share_forward.1} parent=91 // pred_check
          %p668 = pneg %p296
        $region98: #{hard_share_forward.1} parent=91 // pred_check_branch
          %670 = sbr.rel (%p668) target = $region100
        $region99: #{hard_share_forward.1} parent=91 // pred_region
          %671 = dma.done %s664, 8192
        $region100: #{hard_share_forward.1} parent=91 // pred_fallthru
          _
        %s672 = sand.u32 %s35, 1
        %s673 = scalar_lea.sflag [#allocation6], %s672
        %s674 = sand.u32 %s335, 1
        %s675 = smul.addr %s674, 512
        %s676 = scalar_lea.vmem [#allocation7], %s675
        // Predicated region
        $region101: #{hard_share_forward.1} parent=91 // pred_check
          %p677 = pneg %p348
        $region102: #{hard_share_forward.1} parent=91 // pred_check_branch
          %679 = sbr.rel (%p677) target = $region104
        $region103: #{hard_share_forward.1} parent=91 // pred_region
          %680 = dma.done %s673, 8192
        $region104: #{hard_share_forward.1} parent=91 // pred_fallthru
          _
        %p681 = pneg %p51
        %p682 = pneg %p48
        %p683 = pneg %p72
        %p684 = pneg %p69
        %p685 = pneg %p93
        %p686 = pneg %p90
        %p687 = pneg %p114
        %p688 = pneg %p111
        %s689 = sand.u32 %s127, 1
        %s690 = scalar_lea.sflag [#allocation4], %s689
        %s691 = sand.u32 %s127, 1
        %s692 = smul.addr %s691, 384
        %s693 = scalar_lea.vmem [#allocation3], %s692
        %p694 = pneg %p140
        %p695 = pneg %p137
        %p696 = scmp.lt.s32.totalorder %s35, 1
        %s697 = scalar_select %p696, %s35, 1
        %s698 = smul.addr %s697, 3
        %s699 = scalar_lea.vmem %s5, %s698
        %p700 = pneg %p166
        %p701 = pneg %p163
        %p702 = scmp.lt.s32.totalorder %s35, 1
        %s703 = scalar_select %p702, %s35, 1
        %s704 = smul.addr %s703, 16
        %s705 = smul.addr %s704, 8
        %s706 = scalar_lea.vmem %s6, %s705
        %p707 = pneg %p192
        %p708 = pneg %p189
        %p709 = scmp.lt.s32.totalorder %s35, 1
        %s710 = scalar_select %p709, %s35, 1
        %s711 = scalar_lea.vmem %s7, %s710
        %p712 = pneg %p218
        %p713 = pneg %p215
        %p714 = scmp.lt.s32.totalorder %s35, 1
        %s715 = scalar_select %p714, %s35, 1
        %s716 = scalar_lea.vmem %s8, %s715
        %p717 = pneg %p244
        %p718 = pneg %p241
        %p719 = scmp.lt.s32.totalorder %s35, 1
        %s720 = scalar_select %p719, %s35, 1
        %s721 = scalar_lea.vmem %s9, %s720
        %p722 = pneg %p270
        %p723 = pneg %p267
        %s724 = sand.u32 %s35, 1
        %s725 = scalar_lea.sflag [#allocation6], %s724
        %s726 = sand.u32 %s283, 1
        %s727 = smul.addr %s726, 512
        %s728 = scalar_lea.vmem [#allocation5], %s727
        %p729 = pneg %p296
        %p730 = pneg %p293
        %p731 = scmp.lt.s32.totalorder %s35, 1
        %s732 = scalar_select %p731, %s35, 1
        %s733 = smul.addr %s732, 4
        %s734 = scalar_lea.vmem %s11, %s733
        %p735 = pneg %p322
        %p736 = pneg %p319
        %s737 = sand.u32 %s35, 1
        %s738 = scalar_lea.sflag [#allocation6], %s737
        %s739 = sand.u32 %s335, 1
        %s740 = smul.addr %s739, 512
        %s741 = scalar_lea.vmem [#allocation7], %s740
        %p742 = pneg %p348
        %p743 = pneg %p345
        %p744 = scmp.lt.s32.totalorder %s35, 1
        %s745 = scalar_select %p744, %s35, 1
        %s746 = scalar_lea.vmem %s13, %s745
        %p747 = pneg %p374
        %p748 = pneg %p371
        %p749 = scmp.lt.s32.totalorder %s35, 1
        %s750 = scalar_select %p749, %s35, 1
        %s751 = scalar_lea.vmem %s14, %s750
        %p752 = pneg %p400
        %p753 = pneg %p397
        %p754 = scmp.lt.s32.totalorder %s35, 1
        %s755 = scalar_select %p754, %s35, 1
        %s756 = scalar_lea.vmem %s15, %s755
        %p757 = pneg %p426
        %p758 = pneg %p423
        %p759 = pneg %p447
        %p760 = pneg %p444
        %p761 = pneg %p468
        %p762 = pneg %p465
        %p763 = pneg %p489
        %p764 = pneg %p486
        %p765 = scmp.lt.s32.totalorder %s35, 1
        %s766 = scalar_select %p765, %s35, 1
        %s767 = smul.addr %s766, 3
        %s768 = scalar_lea.vmem %s5, %s767
        %p769 = scmp.lt.s32.totalorder %s35, 1
        %s770 = scalar_select %p769, %s35, 1
        %s771 = smul.addr %s770, 16
        %s772 = smul.addr %s771, 8
        %s773 = scalar_lea.vmem %s6, %s772
        %p774 = scmp.lt.s32.totalorder %s35, 1
        %s775 = scalar_select %p774, %s35, 1
        %s776 = scalar_lea.vmem %s7, %s775
        %p777 = scmp.lt.s32.totalorder %s35, 1
        %s778 = scalar_select %p777, %s35, 1
        %s779 = scalar_lea.vmem %s8, %s778
        %p780 = scmp.lt.s32.totalorder %s35, 1
        %s781 = scalar_select %p780, %s35, 1
        %s782 = scalar_lea.vmem %s9, %s781
        %p783 = scmp.lt.s32.totalorder %s35, 1
        %s784 = scalar_select %p783, %s35, 1
        %s785 = smul.addr %s784, 4
        %s786 = scalar_lea.vmem %s11, %s785
        %p787 = scmp.lt.s32.totalorder %s35, 1
        %s788 = scalar_select %p787, %s35, 1
        %s789 = scalar_lea.vmem %s13, %s788
        %p790 = scmp.lt.s32.totalorder %s35, 1
        %s791 = scalar_select %p790, %s35, 1
        %s792 = scalar_lea.vmem %s14, %s791
        %p793 = scmp.lt.s32.totalorder %s35, 1
        %s794 = scalar_select %p793, %s35, 1
        %s795 = scalar_lea.vmem %s15, %s794
        %p796 = scmp.eq.s32.totalorder %s35, 0
        // Predicated region
        $region105: #{hard_share_forward.1} parent=91 // pred_check
          %p797 = pneg %p796
        $region106: #{hard_share_forward.1} parent=91 // pred_check_branch
          %799 = sbr.rel (%p797) target = $region108
        $region107: #{hard_share_forward.1} parent=91 // pred_region
          %v800 = vld [vmem:[%s0] sm:$0xff]
          %v801 = vld [vmem:[%s0 + $0x8] sm:$0xff]
          %v802 = vld [vmem:[%s0 + $0x10] sm:$0xff]
          %v803 = vld [vmem:[%s0 + $0x18] sm:$0xff]
          %v804 = vld [vmem:[%s1] sm:$0x1]
          %v805 = vld [vmem:[%s2] sm:$0x1]
          %806 = vadd.xlane.f32.xlu0 %v800
          %v807 = vpop.xlane.xlu0 %806
          %808 = vadd.xlane.f32.xlu0 %v801
          %v809 = vpop.xlane.xlu0 %808
          %810 = vadd.xlane.f32.xlu0 %v802
          %v811 = vpop.xlane.xlu0 %810
          %812 = vadd.xlane.f32.xlu0 %v803
          %v813 = vpop.xlane.xlu0 %812
          %v814 = vrcp.pop 128.0
          %v815 = vmul.f32 %v807, %v814
          %v816 = vmul.f32 %v809, %v814
          %v817 = vmul.f32 %v811, %v814
          %v818 = vmul.f32 %v813, %v814
          %v819 = vsub.f32 %v800, %v815
          %v820 = vsub.f32 %v801, %v816
          %v821 = vsub.f32 %v802, %v817
          %v822 = vsub.f32 %v803, %v818
          %v823 = vmul.f32 %v819, %v819
          %v824 = vmul.f32 %v820, %v820
          %v825 = vmul.f32 %v821, %v821
          %v826 = vmul.f32 %v822, %v822
          %827 = vadd.xlane.f32.xlu0 %v823
          %v828 = vpop.xlane.xlu0 %827
          %829 = vadd.xlane.f32.xlu0 %v824
          %v830 = vpop.xlane.xlu0 %829
          %831 = vadd.xlane.f32.xlu0 %v825
          %v832 = vpop.xlane.xlu0 %831
          %833 = vadd.xlane.f32.xlu0 %v826
          %v834 = vpop.xlane.xlu0 %833
          %v835 = vmul.f32 %v828, %v814
          %v836 = vmul.f32 %v830, %v814
          %v837 = vmul.f32 %v832, %v814
          %v838 = vmul.f32 %v834, %v814
          %v839 = vadd.f32 %v835, 1e-12
          %v840 = vadd.f32 %v836, 1e-12
          %v841 = vadd.f32 %v837, 1e-12
          %v842 = vadd.f32 %v838, 1e-12
          %v843 = vrsqrt.pop %v839
          %v844 = vrsqrt.pop %v840
          %v845 = vrsqrt.pop %v841
          %v846 = vrsqrt.pop %v842
          %v847 = vmul.f32 %v819, %v843
          %v848 = vmul.f32 %v820, %v844
          %v849 = vmul.f32 %v821, %v845
          %v850 = vmul.f32 %v822, %v846
          %v852 = vlaneseq
          %v853 = vshrl.u32 %v852, 7
          %v854 = vsub.s32 0, %v853
          %v855 = vrot.slane %v804, %v854
          %v857 = vmul.f32 %v847, %v855
          %v858 = vmul.f32 %v848, %v855
          %v859 = vmul.f32 %v849, %v855
          %v860 = vmul.f32 %v850, %v855
          %v862 = vlaneseq
          %v863 = vshrl.u32 %v862, 7
          %v864 = vsub.s32 0, %v863
          %v865 = vrot.slane %v805, %v864
          %v867 = vadd.f32 %v857, %v865
          %v868 = vadd.f32 %v858, %v865
          %v869 = vadd.f32 %v859, %v865
          %v870 = vadd.f32 %v860, %v865
          %871 = vst [vmem:[#allocation2] sm:$0xff] %v867
          %872 = vst [vmem:[#allocation2 + $0x8] sm:$0xff] %v868
          %873 = vst [vmem:[#allocation2 + $0x10] sm:$0xff] %v869
          %874 = vst [vmem:[#allocation2 + $0x18] sm:$0xff] %v870
        $region108: #{hard_share_forward.1} parent=91 // pred_fallthru
          _
        %v875 = vld [vmem:[#allocation2] sm:$0xff]
        %v876 = vld [vmem:[#allocation2 + $0x8] sm:$0xff]
        %v877 = vld [vmem:[#allocation2 + $0x10] sm:$0xff]
        %v878 = vld [vmem:[#allocation2 + $0x18] sm:$0xff]
        %v879 = vld [vmem:[%s658] sm:$0xff]
        %v880 = vld [vmem:[%s658 + $0x8] sm:$0xff]
        %v881 = vld [vmem:[%s658 + $0x10] sm:$0xff]
        %v882 = vld [vmem:[%s658 + $0x18] sm:$0xff]
        %v883 = vld [vmem:[%s658 + $0x20] sm:$0xff]
        %v884 = vld [vmem:[%s658 + $0x28] sm:$0xff]
        %v885 = vld [vmem:[%s658 + $0x30] sm:$0xff]
        %v886 = vld [vmem:[%s658 + $0x38] sm:$0xff]
        %v887 = vld [vmem:[%s658 + $0x40] sm:$0xff]
        %v888 = vld [vmem:[%s658 + $0x48] sm:$0xff]
        %v889 = vld [vmem:[%s658 + $0x50] sm:$0xff]
        %v890 = vld [vmem:[%s658 + $0x58] sm:$0xff]
        %v891 = vld [vmem:[%s658 + $0x60] sm:$0xff]
        %v892 = vld [vmem:[%s658 + $0x68] sm:$0xff]
        %v893 = vld [vmem:[%s658 + $0x70] sm:$0xff]
        %v894 = vld [vmem:[%s658 + $0x78] sm:$0xff]
        %v895 = vld [vmem:[%s658 + $0x80] sm:$0xff]
        %v896 = vld [vmem:[%s658 + $0x88] sm:$0xff]
        %v897 = vld [vmem:[%s658 + $0x90] sm:$0xff]
        %v898 = vld [vmem:[%s658 + $0x98] sm:$0xff]
        %v899 = vld [vmem:[%s658 + $0xa0] sm:$0xff]
        %v900 = vld [vmem:[%s658 + $0xa8] sm:$0xff]
        %v901 = vld [vmem:[%s658 + $0xb0] sm:$0xff]
        %v902 = vld [vmem:[%s658 + $0xb8] sm:$0xff]
        %v903 = vld [vmem:[%s658 + $0xc0] sm:$0xff]
        %v904 = vld [vmem:[%s658 + $0xc8] sm:$0xff]
        %v905 = vld [vmem:[%s658 + $0xd0] sm:$0xff]
        %v906 = vld [vmem:[%s658 + $0xd8] sm:$0xff]
        %v907 = vld [vmem:[%s658 + $0xe0] sm:$0xff]
        %v908 = vld [vmem:[%s658 + $0xe8] sm:$0xff]
        %v909 = vld [vmem:[%s658 + $0xf0] sm:$0xff]
        %v910 = vld [vmem:[%s658 + $0xf8] sm:$0xff]
        %v911 = vld [vmem:[%s658 + $0x100] sm:$0xff]
        %v912 = vld [vmem:[%s658 + $0x108] sm:$0xff]
        %v913 = vld [vmem:[%s658 + $0x110] sm:$0xff]
        %v914 = vld [vmem:[%s658 + $0x118] sm:$0xff]
        %v915 = vld [vmem:[%s658 + $0x120] sm:$0xff]
        %v916 = vld [vmem:[%s658 + $0x128] sm:$0xff]
        %v917 = vld [vmem:[%s658 + $0x130] sm:$0xff]
        %v918 = vld [vmem:[%s658 + $0x138] sm:$0xff]
        %v919 = vld [vmem:[%s658 + $0x140] sm:$0xff]
        %v920 = vld [vmem:[%s658 + $0x148] sm:$0xff]
        %v921 = vld [vmem:[%s658 + $0x150] sm:$0xff]
        %v922 = vld [vmem:[%s658 + $0x158] sm:$0xff]
        %v923 = vld [vmem:[%s658 + $0x160] sm:$0xff]
        %v924 = vld [vmem:[%s658 + $0x168] sm:$0xff]
        %v925 = vld [vmem:[%s658 + $0x170] sm:$0xff]
        %v926 = vld [vmem:[%s658 + $0x178] sm:$0xff]
        %v927 = vld [vmem:[%s768] sm:$0x7]
        %v929 = vlaneseq
        %v930 = vshrl.u32 %v929, 7
        %v931 = vsub.s32 0, %v930
        %v932 = vrot.slane %v927, %v931
        %v933 = vlaneseq
        %v934 = vshrl.u32 %v933, 7
        %v935 = vsub.s32 1, %v934
        %v936 = vrot.slane %v927, %v935
        %v937 = vlaneseq
        %v938 = vshrl.u32 %v937, 7
        %v939 = vsub.s32 2, %v938
        %v940 = vrot.slane %v927, %v939
        %944 = vmatprep.subr.mxu0 %v880
        %945 = vmatpush1.msra.mxu0 %v879
        %946 = vmatprep.subr.mxu0 %v883
        %947 = vmatpush1.msra.mxu0 %v882
        %948 = vmatprep.subr.mxu0 %v886
        %949 = vmatpush1.msra.mxu0 %v885
        %950 = vmatprep.subr.mxu0 %v889
        %951 = vmatpush1.msra.mxu0 %v888
        %952 = vmatprep.subr.mxu0 %v892
        %953 = vmatpush1.msra.mxu0 %v891
        %954 = vmatprep.subr.mxu0 %v895
        %955 = vmatpush1.msra.mxu0 %v894
        %956 = vmatprep.subr.mxu0 %v898
        %957 = vmatpush1.msra.mxu0 %v897
        %958 = vmatprep.subr.mxu0 %v901
        %959 = vmatpush1.msra.mxu0 %v900
        %960 = vmatprep.subr.mxu0 %v904
        %961 = vmatpush1.msra.mxu0 %v903
        %962 = vmatprep.subr.mxu0 %v907
        %963 = vmatpush1.msra.mxu0 %v906
        %964 = vmatprep.subr.mxu0 %v910
        %965 = vmatpush1.msra.mxu0 %v909
        %966 = vmatprep.subr.mxu0 %v913
        %967 = vmatpush1.msra.mxu0 %v912
        %968 = vmatprep.subr.mxu0 %v916
        %969 = vmatpush1.msra.mxu0 %v915
        %970 = vmatprep.subr.mxu0 %v919
        %971 = vmatpush1.msra.mxu0 %v918
        %972 = vmatprep.subr.mxu0 %v922
        %973 = vmatpush1.msra.mxu0 %v921
        %974 = vmatprep.subr.mxu0 %v925
        %975 = vmatpush1.msra.mxu0 %v924
        %976 = vmatprep.subr.mxu0 0.0
        %977 = vmatpush1.msra.mxu0 0.0
        %978 = vmatprep.subr.mxu0 0.0
        %979 = vmatpush1.msra.mxu0 0.0
        %980 = vmatprep.subr.mxu0 0.0
        %981 = vmatpush1.msra.mxu0 0.0
        %982 = vmatprep.subr.mxu0 0.0
        %983 = vmatpush1.msra.mxu0 0.0
        %984 = vmatprep.subr.mxu0 0.0
        %985 = vmatpush1.msra.mxu0 0.0
        %986 = vmatprep.subr.mxu0 0.0
        %987 = vmatpush1.msra.mxu0 0.0
        %988 = vmatprep.subr.mxu0 0.0
        %989 = vmatpush1.msra.mxu0 0.0
        %990 = vmatprep.subr.mxu0 0.0
        %991 = vmatpush1.msra.mxu0 0.0
        %992 = vmatprep.subr.mxu0 0.0
        %993 = vmatpush1.msra.mxu0 0.0
        %994 = vmatprep.subr.mxu0 0.0
        %995 = vmatpush1.msra.mxu0 0.0
        %996 = vmatprep.subr.mxu0 0.0
        %997 = vmatpush1.msra.mxu0 0.0
        %998 = vmatprep.subr.mxu0 0.0
        %999 = vmatpush1.msra.mxu0 0.0
        %1000 = vmatprep.subr.mxu0 0.0
        %1001 = vmatpush1.msra.mxu0 0.0
        %1002 = vmatprep.subr.mxu0 0.0
        %1003 = vmatpush1.msra.mxu0 0.0
        %1004 = vmatprep.subr.mxu0 0.0
        %1005 = vmatpush1.msra.mxu0 0.0
        %1006 = vmatprep.subr.mxu0 0.0
        %1007 = vmatpush1.msra.mxu0 0.0
        %1008 = vmatprep.mubr.f32.mxu0 0.0
        %1009 = vmatmul.mubr.f32.gmra.mrb[0].mxu0 %v875
        %v1010 = vpop.f32.mrb[0].mxu0
        %v1011 = vadd.f32 %v932, %v1010
        %v1012 = vpop.f32.mrb[0].mxu0
        %v1013 = vadd.f32 %v936, %v1012
        %1014 = vmatprep.mubr.f32.mxu0 0.0
        %1015 = vmatmul.mubr.f32.gmra.mrb[0].mxu0 %v876
        %v1016 = vpop.f32.mrb[0].mxu0
        %v1017 = vadd.f32 %v932, %v1016
        %v1018 = vpop.f32.mrb[0].mxu0
        %v1019 = vadd.f32 %v936, %v1018
        %1020 = vmatprep.mubr.f32.mxu0 0.0
        %1021 = vmatmul.mubr.f32.gmra.mrb[0].mxu0 %v877
        %v1022 = vpop.f32.mrb[0].mxu0
        %v1023 = vadd.f32 %v932, %v1022
        %v1024 = vpop.f32.mrb[0].mxu0
        %v1025 = vadd.f32 %v936, %v1024
        %1026 = vmatprep.mubr.f32.mxu0 0.0
        %1027 = vmatmul.mubr.f32.gmra.mrb[0].mxu0 %v878
        %v1028 = vpop.f32.mrb[0].mxu0
        %v1029 = vadd.f32 %v932, %v1028
        %v1030 = vpop.f32.mrb[0].mxu0
        %v1031 = vadd.f32 %v936, %v1030
        %1032 = vdwg.mxu0
        %1033 = vmatprep.subr.mxu0 0.0
        %1034 = vmatpush1.msra.mxu0 %v881
        %1035 = vmatprep.subr.mxu0 0.0
        %1036 = vmatpush1.msra.mxu0 %v884
        %1037 = vmatprep.subr.mxu0 0.0
        %1038 = vmatpush1.msra.mxu0 %v887
        %1039 = vmatprep.subr.mxu0 0.0
        %1040 = vmatpush1.msra.mxu0 %v890
        %1041 = vmatprep.subr.mxu0 0.0
        %1042 = vmatpush1.msra.mxu0 %v893
        %1043 = vmatprep.subr.mxu0 0.0
        %1044 = vmatpush1.msra.mxu0 %v896
        %1045 = vmatprep.subr.mxu0 0.0
        %1046 = vmatpush1.msra.mxu0 %v899
        %1047 = vmatprep.subr.mxu0 0.0
        %1048 = vmatpush1.msra.mxu0 %v902
        %1049 = vmatprep.subr.mxu0 0.0
        %1050 = vmatpush1.msra.mxu0 %v905
        %1051 = vmatprep.subr.mxu0 0.0
        %1052 = vmatpush1.msra.mxu0 %v908
        %1053 = vmatprep.subr.mxu0 0.0
        %1054 = vmatpush1.msra.mxu0 %v911
        %1055 = vmatprep.subr.mxu0 0.0
        %1056 = vmatpush1.msra.mxu0 %v914
        %1057 = vmatprep.subr.mxu0 0.0
        %1058 = vmatpush1.msra.mxu0 %v917
        %1059 = vmatprep.subr.mxu0 0.0
        %1060 = vmatpush1.msra.mxu0 %v920
        %1061 = vmatprep.subr.mxu0 0.0
        %1062 = vmatpush1.msra.mxu0 %v923
        %1063 = vmatprep.subr.mxu0 0.0
        %1064 = vmatpush1.msra.mxu0 %v926
        %1065 = vmatprep.subr.mxu0 0.0
        %1066 = vmatpush1.msra.mxu0 0.0
        %1067 = vmatprep.subr.mxu0 0.0
        %1068 = vmatpush1.msra.mxu0 0.0
        %1069 = vmatprep.subr.mxu0 0.0
        %1070 = vmatpush1.msra.mxu0 0.0
        %1071 = vmatprep.subr.mxu0 0.0
        %1072 = vmatpush1.msra.mxu0 0.0
        %1073 = vmatprep.subr.mxu0 0.0
        %1074 = vmatpush1.msra.mxu0 0.0
        %1075 = vmatprep.subr.mxu0 0.0
        %1076 = vmatpush1.msra.mxu0 0.0
        %1077 = vmatprep.subr.mxu0 0.0
        %1078 = vmatpush1.msra.mxu0 0.0
        %1079 = vmatprep.subr.mxu0 0.0
        %1080 = vmatpush1.msra.mxu0 0.0
        %1081 = vmatprep.subr.mxu0 0.0
        %1082 = vmatpush1.msra.mxu0 0.0
        %1083 = vmatprep.subr.mxu0 0.0
        %1084 = vmatpush1.msra.mxu0 0.0
        %1085 = vmatprep.subr.mxu0 0.0
        %1086 = vmatpush1.msra.mxu0 0.0
        %1087 = vmatprep.subr.mxu0 0.0
        %1088 = vmatpush1.msra.mxu0 0.0
        %1089 = vmatprep.subr.mxu0 0.0
        %1090 = vmatpush1.msra.mxu0 0.0
        %1091 = vmatprep.subr.mxu0 0.0
        %1092 = vmatpush1.msra.mxu0 0.0
        %1093 = vmatprep.subr.mxu0 0.0
        %1094 = vmatpush1.msra.mxu0 0.0
        %1095 = vmatprep.subr.mxu0 0.0
        %1096 = vmatpush1.msra.mxu0 0.0
        %1097 = vmatprep.mubr.f32.mxu0 0.0
        %1098 = vmatmul.mubr.f32.gmra.mrb[0].mxu0 %v875
        %v1099 = vpop.f32.mrb[0].mxu0
        %v1100 = vadd.f32 %v940, %v1099
        %v1101 = vpop.f32.mrb[0].mxu0
        %1102 = vmatprep.mubr.f32.mxu0 0.0
        %1103 = vmatmul.mubr.f32.gmra.mrb[0].mxu0 %v876
        %v1104 = vpop.f32.mrb[0].mxu0
        %v1105 = vadd.f32 %v940, %v1104
        %v1106 = vpop.f32.mrb[0].mxu0
        %1107 = vmatprep.mubr.f32.mxu0 0.0
        %1108 = vmatmul.mubr.f32.gmra.mrb[0].mxu0 %v877
        %v1109 = vpop.f32.mrb[0].mxu0
        %v1110 = vadd.f32 %v940, %v1109
        %v1111 = vpop.f32.mrb[0].mxu0
        %1112 = vmatprep.mubr.f32.mxu0 0.0
        %1113 = vmatmul.mubr.f32.gmra.mrb[0].mxu0 %v878
        %v1114 = vpop.f32.mrb[0].mxu0
        %v1115 = vadd.f32 %v940, %v1114
        %v1116 = vpop.f32.mrb[0].mxu0
        %1117 = vdwg.mxu0
        %v1118 = vld [vmem:[%s773] sm:$0xff]
        %v1119 = vld [vmem:[%s773 + $0x8] sm:$0xff]
        %v1120 = vld [vmem:[%s773 + $0x10] sm:$0xff]
        %v1121 = vld [vmem:[%s773 + $0x18] sm:$0xff]
        %v1122 = vld [vmem:[%s773 + $0x20] sm:$0xff]
        %v1123 = vld [vmem:[%s773 + $0x28] sm:$0xff]
        %v1124 = vld [vmem:[%s773 + $0x30] sm:$0xff]
        %v1125 = vld [vmem:[%s773 + $0x38] sm:$0xff]
        %v1126 = vld [vmem:[%s773 + $0x40] sm:$0xff]
        %v1127 = vld [vmem:[%s773 + $0x48] sm:$0xff]
        %v1128 = vld [vmem:[%s773 + $0x50] sm:$0xff]
        %v1129 = vld [vmem:[%s773 + $0x58] sm:$0xff]
        %v1130 = vld [vmem:[%s773 + $0x60] sm:$0xff]
        %v1131 = vld [vmem:[%s773 + $0x68] sm:$0xff]
        %v1132 = vld [vmem:[%s773 + $0x70] sm:$0xff]
        %v1133 = vld [vmem:[%s773 + $0x78] sm:$0xff]
        %v1134 = vld [vmem:[%s3] sm:$0xff]
        %v1135 = vld [vmem:[%s3 + $0x8] sm:$0xff]
        %v1136 = vld [vmem:[%s3 + $0x10] sm:$0xff]
        %v1137 = vld [vmem:[%s3 + $0x18] sm:$0xff]
        %vm1138 = vcmask 261120
        %v1140 = vsel %vm1138, %v1011, 0
        %v1143 = vsel %vm1138, %v1017, 0
        %v1146 = vsel %vm1138, %v1023, 0
        %v1149 = vsel %vm1138, %v1029, 0
        %v1152 = vsel %vm1138, %v1013, 0
        %v1155 = vsel %vm1138, %v1019, 0
        %v1158 = vsel %vm1138, %v1025, 0
        %v1161 = vsel %vm1138, %v1031, 0
        %1163 = vmatprep.subr.mxu0 0.0
        %1164 = vmatpush1.xpose.msra.mxu0 %v1152
        %1165 = vmatprep.subr.mxu0 0.0
        %1166 = vmatpush1.xpose.msra.mxu0 %v1155
        %1167 = vmatprep.subr.mxu0 0.0
        %1168 = vmatpush1.xpose.msra.mxu0 %v1158
        %1169 = vmatprep.subr.mxu0 0.0
        %1170 = vmatpush1.xpose.msra.mxu0 %v1161
        %1171 = vmatprep.subr.mxu0 0.0
        %1172 = vmatpush1.xpose.msra.mxu0 0.0
        %1173 = vmatprep.subr.mxu0 0.0
        %1174 = vmatpush1.xpose.msra.mxu0 0.0
        %1175 = vmatprep.subr.mxu0 0.0
        %1176 = vmatpush1.xpose.msra.mxu0 0.0
        %1177 = vmatprep.subr.mxu0 0.0
        %1178 = vmatpush1.xpose.msra.mxu0 0.0
        %1179 = vmatprep.subr.mxu0 0.0
        %1180 = vmatpush1.xpose.msra.mxu0 0.0
        %1181 = vmatprep.subr.mxu0 0.0
        %1182 = vmatpush1.xpose.msra.mxu0 0.0
        %1183 = vmatprep.subr.mxu0 0.0
        %1184 = vmatpush1.xpose.msra.mxu0 0.0
        %1185 = vmatprep.subr.mxu0 0.0
        %1186 = vmatpush1.xpose.msra.mxu0 0.0
        %1187 = vmatprep.subr.mxu0 0.0
        %1188 = vmatpush1.xpose.msra.mxu0 0.0
        %1189 = vmatprep.subr.mxu0 0.0
        %1190 = vmatpush1.xpose.msra.mxu0 0.0
        %1191 = vmatprep.subr.mxu0 0.0
        %1192 = vmatpush1.xpose.msra.mxu0 0.0
        %1193 = vmatprep.subr.mxu0 0.0
        %1194 = vmatpush1.xpose.msra.mxu0 0.0
        %1195 = vmatprep.subr.mxu0 0.0
        %1196 = vmatpush1.xpose.msra.mxu0 0.0
        %1197 = vmatprep.subr.mxu0 0.0
        %1198 = vmatpush1.xpose.msra.mxu0 0.0
        %1199 = vmatprep.subr.mxu0 0.0
        %1200 = vmatpush1.xpose.msra.mxu0 0.0
        %1201 = vmatprep.subr.mxu0 0.0
        %1202 = vmatpush1.xpose.msra.mxu0 0.0
        %1203 = vmatprep.subr.mxu0 0.0
        %1204 = vmatpush1.xpose.msra.mxu0 0.0
        %1205 = vmatprep.subr.mxu0 0.0
        %1206 = vmatpush1.xpose.msra.mxu0 0.0
        %1207 = vmatprep.subr.mxu0 0.0
        %1208 = vmatpush1.xpose.msra.mxu0 0.0
        %1209 = vmatprep.subr.mxu0 0.0
        %1210 = vmatpush1.xpose.msra.mxu0 0.0
        %1211 = vmatprep.subr.mxu0 0.0
        %1212 = vmatpush1.xpose.msra.mxu0 0.0
        %1213 = vmatprep.subr.mxu0 0.0
        %1214 = vmatpush1.xpose.msra.mxu0 0.0
        %1215 = vmatprep.subr.mxu0 0.0
        %1216 = vmatpush1.xpose.msra.mxu0 0.0
        %1217 = vmatprep.subr.mxu0 0.0
        %1218 = vmatpush1.xpose.msra.mxu0 0.0
        %1219 = vmatprep.subr.mxu0 0.0
        %1220 = vmatpush1.xpose.msra.mxu0 0.0
        %1221 = vmatprep.subr.mxu0 0.0
        %1222 = vmatpush1.xpose.msra.mxu0 0.0
        %1223 = vmatprep.subr.mxu0 0.0
        %1224 = vmatpush1.xpose.msra.mxu0 0.0
        %1225 = vmatprep.subr.mxu0 0.0
        %1226 = vmatpush1.xpose.msra.mxu0 0.0
        %1227 = vmatprep.mubr.f32.mxu0 0.0
        %1228 = vmatmul.mubr.f32.gmra.mrb[0].mxu0 %v1140
        %v1229 = vpop.f32.mrb[0].mxu0
        %v1230 = vadd.f32 0.0, %v1229
        %v1231 = vpop.f32.mrb[0].mxu0
        %1232 = vmatprep.mubr.f32.mxu0 0.0
        %1233 = vmatmul.mubr.f32.gmra.mrb[0].mxu0 %v1143
        %v1234 = vpop.f32.mrb[0].mxu0
        %v1235 = vadd.f32 0.0, %v1234
        %v1236 = vpop.f32.mrb[0].mxu0
        %1237 = vmatprep.mubr.f32.mxu0 0.0
        %1238 = vmatmul.mubr.f32.gmra.mrb[0].mxu0 %v1146
        %v1239 = vpop.f32.mrb[0].mxu0
        %v1240 = vadd.f32 0.0, %v1239
        %v1241 = vpop.f32.mrb[0].mxu0
        %1242 = vmatprep.mubr.f32.mxu0 0.0
        %1243 = vmatmul.mubr.f32.gmra.mrb[0].mxu0 %v1149
        %v1244 = vpop.f32.mrb[0].mxu0
        %v1245 = vadd.f32 0.0, %v1244
        %v1246 = vpop.f32.mrb[0].mxu0
        %1247 = vdwg.mxu0
        %v1248 = vmul.f32 %v1230, 0.17677669
        %v1249 = vmul.f32 %v1235, 0.17677669
        %v1250 = vmul.f32 %v1240, 0.17677669
        %v1251 = vmul.f32 %v1245, 0.17677669
        %v1252 = vadd.f32 %v1248, %v1134
        %v1253 = vadd.f32 %v1249, %v1135
        %v1254 = vadd.f32 %v1250, %v1136
        %v1255 = vadd.f32 %v1251, %v1137
        %v1256 = vsel %vm1138, %v1252, -inf
        %1257 = vmax.xlane.f32.xlu0 %v1256
        %v1258 = vpop.xlane.xlu0 %1257
        %v1259 = vsel %vm1138, %v1253, -inf
        %1260 = vmax.xlane.f32.xlu0 %v1259
        %v1261 = vpop.xlane.xlu0 %1260
        %v1262 = vsel %vm1138, %v1254, -inf
        %1263 = vmax.xlane.f32.xlu0 %v1262
        %v1264 = vpop.xlane.xlu0 %1263
        %v1265 = vsel %vm1138, %v1255, -inf
        %1266 = vmax.xlane.f32.xlu0 %v1265
        %v1267 = vpop.xlane.xlu0 %1266
        %v1268 = vsub.f32 %v1252, %v1258
        %v1269 = vsub.f32 %v1253, %v1261
        %v1270 = vsub.f32 %v1254, %v1264
        %v1271 = vsub.f32 %v1255, %v1267
        %v1272 = vmul.f32 %v1268, 1.442695
        %v1273 = vpow.pop %v1272
        %v1274 = vmul.f32 %v1269, 1.442695
        %v1275 = vpow.pop %v1274
        %v1276 = vmul.f32 %v1270, 1.442695
        %v1277 = vpow.pop %v1276
        %v1278 = vmul.f32 %v1271, 1.442695
        %v1279 = vpow.pop %v1278
        %v1280 = vsel %vm1138, %v1273, 0.0
        %1281 = vadd.xlane.f32.xlu0 %v1280
        %v1282 = vpop.xlane.xlu0 %1281
        %v1283 = vsel %vm1138, %v1275, 0.0
        %1284 = vadd.xlane.f32.xlu0 %v1283
        %v1285 = vpop.xlane.xlu0 %1284
        %v1286 = vsel %vm1138, %v1277, 0.0
        %1287 = vadd.xlane.f32.xlu0 %v1286
        %v1288 = vpop.xlane.xlu0 %1287
        %v1289 = vsel %vm1138, %v1279, 0.0
        %1290 = vadd.xlane.f32.xlu0 %v1289
        %v1291 = vpop.xlane.xlu0 %1290
        %v1292 = vrcp.pop %v1282
        %v1293 = vrcp.pop %v1285
        %v1294 = vrcp.pop %v1288
        %v1295 = vrcp.pop %v1291
        %v1296 = vmul.f32 %v1273, %v1292
        %v1297 = vmul.f32 %v1275, %v1293
        %v1298 = vmul.f32 %v1277, %v1294
        %v1299 = vmul.f32 %v1279, %v1295
        %v1301 = vsel %vm1138, %v1296, 0
        %v1304 = vsel %vm1138, %v1297, 0
        %v1307 = vsel %vm1138, %v1298, 0
        %v1310 = vsel %vm1138, %v1299, 0
        %1312 = vmatprep.subr.mxu0 0.0
        %1313 = vmatpush1.msra.mxu0 %v1100
        %1314 = vmatprep.subr.mxu0 0.0
        %1315 = vmatpush1.msra.mxu0 %v1105
        %1316 = vmatprep.subr.mxu0 0.0
        %1317 = vmatpush1.msra.mxu0 %v1110
        %1318 = vmatprep.subr.mxu0 0.0
        %1319 = vmatpush1.msra.mxu0 %v1115
        %1320 = vmatprep.subr.mxu0 0.0
        %1321 = vmatpush1.msra.mxu0 0.0
        %1322 = vmatprep.subr.mxu0 0.0
        %1323 = vmatpush1.msra.mxu0 0.0
        %1324 = vmatprep.subr.mxu0 0.0
        %1325 = vmatpush1.msra.mxu0 0.0
        %1326 = vmatprep.subr.mxu0 0.0
        %1327 = vmatpush1.msra.mxu0 0.0
        %1328 = vmatprep.subr.mxu0 0.0
        %1329 = vmatpush1.msra.mxu0 0.0
        %1330 = vmatprep.subr.mxu0 0.0
        %1331 = vmatpush1.msra.mxu0 0.0
        %1332 = vmatprep.subr.mxu0 0.0
        %1333 = vmatpush1.msra.mxu0 0.0
        %1334 = vmatprep.subr.mxu0 0.0
        %1335 = vmatpush1.msra.mxu0 0.0
        %1336 = vmatprep.subr.mxu0 0.0
        %1337 = vmatpush1.msra.mxu0 0.0
        %1338 = vmatprep.subr.mxu0 0.0
        %1339 = vmatpush1.msra.mxu0 0.0
        %1340 = vmatprep.subr.mxu0 0.0
        %1341 = vmatpush1.msra.mxu0 0.0
        %1342 = vmatprep.subr.mxu0 0.0
        %1343 = vmatpush1.msra.mxu0 0.0
        %1344 = vmatprep.subr.mxu0 0.0
        %1345 = vmatpush1.msra.mxu0 0.0
        %1346 = vmatprep.subr.mxu0 0.0
        %1347 = vmatpush1.msra.mxu0 0.0
        %1348 = vmatprep.subr.mxu0 0.0
        %1349 = vmatpush1.msra.mxu0 0.0
        %1350 = vmatprep.subr.mxu0 0.0
        %1351 = vmatpush1.msra.mxu0 0.0
        %1352 = vmatprep.subr.mxu0 0.0
        %1353 = vmatpush1.msra.mxu0 0.0
        %1354 = vmatprep.subr.mxu0 0.0
        %1355 = vmatpush1.msra.mxu0 0.0
        %1356 = vmatprep.subr.mxu0 0.0
        %1357 = vmatpush1.msra.mxu0 0.0
        %1358 = vmatprep.subr.mxu0 0.0
        %1359 = vmatpush1.msra.mxu0 0.0
        %1360 = vmatprep.subr.mxu0 0.0
        %1361 = vmatpush1.msra.mxu0 0.0
        %1362 = vmatprep.subr.mxu0 0.0
        %1363 = vmatpush1.msra.mxu0 0.0
        %1364 = vmatprep.subr.mxu0 0.0
        %1365 = vmatpush1.msra.mxu0 0.0
        %1366 = vmatprep.subr.mxu0 0.0
        %1367 = vmatpush1.msra.mxu0 0.0
        %1368 = vmatprep.subr.mxu0 0.0
        %1369 = vmatpush1.msra.mxu0 0.0
        %1370 = vmatprep.subr.mxu0 0.0
        %1371 = vmatpush1.msra.mxu0 0.0
        %1372 = vmatprep.subr.mxu0 0.0
        %1373 = vmatpush1.msra.mxu0 0.0
        %1374 = vmatprep.subr.mxu0 0.0
        %1375 = vmatpush1.msra.mxu0 0.0
        %1376 = vmatprep.mubr.f32.mxu0 0.0
        %1377 = vmatmul.mubr.f32.gmra.mrb[0].mxu0 %v1301
        %v1378 = vpop.f32.mrb[0].mxu0
        %v1379 = vadd.f32 0.0, %v1378
        %v1380 = vpop.f32.mrb[0].mxu0
        %1381 = vmatprep.mubr.f32.mxu0 0.0
        %1382 = vmatmul.mubr.f32.gmra.mrb[0].mxu0 %v1304
        %v1383 = vpop.f32.mrb[0].mxu0
        %v1384 = vadd.f32 0.0, %v1383
        %v1385 = vpop.f32.mrb[0].mxu0
        %1386 = vmatprep.mubr.f32.mxu0 0.0
        %1387 = vmatmul.mubr.f32.gmra.mrb[0].mxu0 %v1307
        %v1388 = vpop.f32.mrb[0].mxu0
        %v1389 = vadd.f32 0.0, %v1388
        %v1390 = vpop.f32.mrb[0].mxu0
        %1391 = vmatprep.mubr.f32.mxu0 0.0
        %1392 = vmatmul.mubr.f32.gmra.mrb[0].mxu0 %v1310
        %v1393 = vpop.f32.mrb[0].mxu0
        %v1394 = vadd.f32 0.0, %v1393
        %v1395 = vpop.f32.mrb[0].mxu0
        %1396 = vdwg.mxu0
        %1397 = vrot.lane.b32.xlu0 %v1011, 96
        %v1398 = vpop.permute.xlu0 %1397
        %1399 = vrot.lane.b32.xlu0 %v1017, 96
        %v1400 = vpop.permute.xlu0 %1399
        %1401 = vrot.lane.b32.xlu0 %v1023, 96
        %v1402 = vpop.permute.xlu0 %1401
        %1403 = vrot.lane.b32.xlu0 %v1029, 96
        %v1404 = vpop.permute.xlu0 %1403
        %1405 = vrot.lane.b32.xlu0 %v1013, 96
        %v1406 = vpop.permute.xlu0 %1405
        %1407 = vrot.lane.b32.xlu0 %v1019, 96
        %v1408 = vpop.permute.xlu0 %1407
        %1409 = vrot.lane.b32.xlu0 %v1025, 96
        %v1410 = vpop.permute.xlu0 %1409
        %1411 = vrot.lane.b32.xlu0 %v1031, 96
        %v1412 = vpop.permute.xlu0 %1411
        %v1413 = vsel %vm1138, %v1398, 0
        %v1415 = vsel %vm1138, %v1400, 0
        %v1417 = vsel %vm1138, %v1402, 0
        %v1419 = vsel %vm1138, %v1404, 0
        %v1421 = vsel %vm1138, %v1406, 0
        %v1423 = vsel %vm1138, %v1408, 0
        %v1425 = vsel %vm1138, %v1410, 0
        %v1427 = vsel %vm1138, %v1412, 0
        %1429 = vmatprep.subr.mxu0 0.0
        %1430 = vmatpush1.xpose.msra.mxu0 %v1421
        %1431 = vmatprep.subr.mxu0 0.0
        %1432 = vmatpush1.xpose.msra.mxu0 %v1423
        %1433 = vmatprep.subr.mxu0 0.0
        %1434 = vmatpush1.xpose.msra.mxu0 %v1425
        %1435 = vmatprep.subr.mxu0 0.0
        %1436 = vmatpush1.xpose.msra.mxu0 %v1427
        %1437 = vmatprep.subr.mxu0 0.0
        %1438 = vmatpush1.xpose.msra.mxu0 0.0
        %1439 = vmatprep.subr.mxu0 0.0
        %1440 = vmatpush1.xpose.msra.mxu0 0.0
        %1441 = vmatprep.subr.mxu0 0.0
        %1442 = vmatpush1.xpose.msra.mxu0 0.0
        %1443 = vmatprep.subr.mxu0 0.0
        %1444 = vmatpush1.xpose.msra.mxu0 0.0
        %1445 = vmatprep.subr.mxu0 0.0
        %1446 = vmatpush1.xpose.msra.mxu0 0.0
        %1447 = vmatprep.subr.mxu0 0.0
        %1448 = vmatpush1.xpose.msra.mxu0 0.0
        %1449 = vmatprep.subr.mxu0 0.0
        %1450 = vmatpush1.xpose.msra.mxu0 0.0
        %1451 = vmatprep.subr.mxu0 0.0
        %1452 = vmatpush1.xpose.msra.mxu0 0.0
        %1453 = vmatprep.subr.mxu0 0.0
        %1454 = vmatpush1.xpose.msra.mxu0 0.0
        %1455 = vmatprep.subr.mxu0 0.0
        %1456 = vmatpush1.xpose.msra.mxu0 0.0
        %1457 = vmatprep.subr.mxu0 0.0
        %1458 = vmatpush1.xpose.msra.mxu0 0.0
        %1459 = vmatprep.subr.mxu0 0.0
        %1460 = vmatpush1.xpose.msra.mxu0 0.0
        %1461 = vmatprep.subr.mxu0 0.0
        %1462 = vmatpush1.xpose.msra.mxu0 0.0
        %1463 = vmatprep.subr.mxu0 0.0
        %1464 = vmatpush1.xpose.msra.mxu0 0.0
        %1465 = vmatprep.subr.mxu0 0.0
        %1466 = vmatpush1.xpose.msra.mxu0 0.0
        %1467 = vmatprep.subr.mxu0 0.0
        %1468 = vmatpush1.xpose.msra.mxu0 0.0
        %1469 = vmatprep.subr.mxu0 0.0
        %1470 = vmatpush1.xpose.msra.mxu0 0.0
        %1471 = vmatprep.subr.mxu0 0.0
        %1472 = vmatpush1.xpose.msra.mxu0 0.0
        %1473 = vmatprep.subr.mxu0 0.0
        %1474 = vmatpush1.xpose.msra.mxu0 0.0
        %1475 = vmatprep.subr.mxu0 0.0
        %1476 = vmatpush1.xpose.msra.mxu0 0.0
        %1477 = vmatprep.subr.mxu0 0.0
        %1478 = vmatpush1.xpose.msra.mxu0 0.0
        %1479 = vmatprep.subr.mxu0 0.0
        %1480 = vmatpush1.xpose.msra.mxu0 0.0
        %1481 = vmatprep.subr.mxu0 0.0
        %1482 = vmatpush1.xpose.msra.mxu0 0.0
        %1483 = vmatprep.subr.mxu0 0.0
        %1484 = vmatpush1.xpose.msra.mxu0 0.0
        %1485 = vmatprep.subr.mxu0 0.0
        %1486 = vmatpush1.xpose.msra.mxu0 0.0
        %1487 = vmatprep.subr.mxu0 0.0
        %1488 = vmatpush1.xpose.msra.mxu0 0.0
        %1489 = vmatprep.subr.mxu0 0.0
        %1490 = vmatpush1.xpose.msra.mxu0 0.0
        %1491 = vmatprep.subr.mxu0 0.0
        %1492 = vmatpush1.xpose.msra.mxu0 0.0
        %1493 = vmatprep.mubr.f32.mxu0 0.0
        %1494 = vmatmul.mubr.f32.gmra.mrb[0].mxu0 %v1413
        %v1495 = vpop.f32.mrb[0].mxu0
        %v1496 = vadd.f32 0.0, %v1495
        %v1497 = vpop.f32.mrb[0].mxu0
        %1498 = vmatprep.mubr.f32.mxu0 0.0
        %1499 = vmatmul.mubr.f32.gmra.mrb[0].mxu0 %v1415
        %v1500 = vpop.f32.mrb[0].mxu0
        %v1501 = vadd.f32 0.0, %v1500
        %v1502 = vpop.f32.mrb[0].mxu0
        %1503 = vmatprep.mubr.f32.mxu0 0.0
        %1504 = vmatmul.mubr.f32.gmra.mrb[0].mxu0 %v1417
        %v1505 = vpop.f32.mrb[0].mxu0
        %v1506 = vadd.f32 0.0, %v1505
        %v1507 = vpop.f32.mrb[0].mxu0
        %1508 = vmatprep.mubr.f32.mxu0 0.0
        %1509 = vmatmul.mubr.f32.gmra.mrb[0].mxu0 %v1419
        %v1510 = vpop.f32.mrb[0].mxu0
        %v1511 = vadd.f32 0.0, %v1510
        %v1512 = vpop.f32.mrb[0].mxu0
        %1513 = vdwg.mxu0
        %v1514 = vmul.f32 %v1496, 0.17677669
        %v1515 = vmul.f32 %v1501, 0.17677669
        %v1516 = vmul.f32 %v1506, 0.17677669
        %v1517 = vmul.f32 %v1511, 0.17677669
        %v1518 = vadd.f32 %v1514, %v1134
        %v1519 = vadd.f32 %v1515, %v1135
        %v1520 = vadd.f32 %v1516, %v1136
        %v1521 = vadd.f32 %v1517, %v1137
        %v1522 = vsel %vm1138, %v1518, -inf
        %1523 = vmax.xlane.f32.xlu0 %v1522
        %v1524 = vpop.xlane.xlu0 %1523
        %v1525 = vsel %vm1138, %v1519, -inf
        %1526 = vmax.xlane.f32.xlu0 %v1525
        %v1527 = vpop.xlane.xlu0 %1526
        %v1528 = vsel %vm1138, %v1520, -inf
        %1529 = vmax.xlane.f32.xlu0 %v1528
        %v1530 = vpop.xlane.xlu0 %1529
        %v1531 = vsel %vm1138, %v1521, -inf
        %1532 = vmax.xlane.f32.xlu0 %v1531
        %v1533 = vpop.xlane.xlu0 %1532
        %v1534 = vsub.f32 %v1518, %v1524
        %v1535 = vsub.f32 %v1519, %v1527
        %v1536 = vsub.f32 %v1520, %v1530
        %v1537 = vsub.f32 %v1521, %v1533
        %v1538 = vmul.f32 %v1534, 1.442695
        %v1539 = vpow.pop %v1538
        %v1540 = vmul.f32 %v1535, 1.442695
        %v1541 = vpow.pop %v1540
        %v1542 = vmul.f32 %v1536, 1.442695
        %v1543 = vpow.pop %v1542
        %v1544 = vmul.f32 %v1537, 1.442695
        %v1545 = vpow.pop %v1544
        %v1546 = vsel %vm1138, %v1539, 0.0
        %1547 = vadd.xlane.f32.xlu0 %v1546
        %v1548 = vpop.xlane.xlu0 %1547
        %v1549 = vsel %vm1138, %v1541, 0.0
        %1550 = vadd.xlane.f32.xlu0 %v1549
        %v1551 = vpop.xlane.xlu0 %1550
        %v1552 = vsel %vm1138, %v1543, 0.0
        %1553 = vadd.xlane.f32.xlu0 %v1552
        %v1554 = vpop.xlane.xlu0 %1553
        %v1555 = vsel %vm1138, %v1545, 0.0
        %1556 = vadd.xlane.f32.xlu0 %v1555
        %v1557 = vpop.xlane.xlu0 %1556
        %v1558 = vrcp.pop %v1548
        %v1559 = vrcp.pop %v1551
        %v1560 = vrcp.pop %v1554
        %v1561 = vrcp.pop %v1557
        %v1562 = vmul.f32 %v1539, %v1558
        %v1563 = vmul.f32 %v1541, %v1559
        %v1564 = vmul.f32 %v1543, %v1560
        %v1565 = vmul.f32 %v1545, %v1561
        %1570 = vrot.lane.b32.xlu0 %v1100, 96
        %v1571 = vpop.permute.xlu0 %1570
        %1572 = vrot.lane.b32.xlu0 %v1105, 96
        %v1573 = vpop.permute.xlu0 %1572
        %1574 = vrot.lane.b32.xlu0 %v1110, 96
        %v1575 = vpop.permute.xlu0 %1574
        %1576 = vrot.lane.b32.xlu0 %v1115, 96
        %v1577 = vpop.permute.xlu0 %1576
        %v1583 = vsel %vm1138, %v1562, 0
        %v1586 = vsel %vm1138, %v1563, 0
        %v1589 = vsel %vm1138, %v1564, 0
        %v1592 = vsel %vm1138, %v1565, 0
        %1594 = vmatprep.subr.mxu0 0.0
        %1595 = vmatpush1.msra.mxu0 %v1571
        %1596 = vmatprep.subr.mxu0 0.0
        %1597 = vmatpush1.msra.mxu0 %v1573
        %1598 = vmatprep.subr.mxu0 0.0
        %1599 = vmatpush1.msra.mxu0 %v1575
        %1600 = vmatprep.subr.mxu0 0.0
        %1601 = vmatpush1.msra.mxu0 %v1577
        %1602 = vmatprep.subr.mxu0 0.0
        %1603 = vmatpush1.msra.mxu0 0.0
        %1604 = vmatprep.subr.mxu0 0.0
        %1605 = vmatpush1.msra.mxu0 0.0
        %1606 = vmatprep.subr.mxu0 0.0
        %1607 = vmatpush1.msra.mxu0 0.0
        %1608 = vmatprep.subr.mxu0 0.0
        %1609 = vmatpush1.msra.mxu0 0.0
        %1610 = vmatprep.subr.mxu0 0.0
        %1611 = vmatpush1.msra.mxu0 0.0
        %1612 = vmatprep.subr.mxu0 0.0
        %1613 = vmatpush1.msra.mxu0 0.0
        %1614 = vmatprep.subr.mxu0 0.0
        %1615 = vmatpush1.msra.mxu0 0.0
        %1616 = vmatprep.subr.mxu0 0.0
        %1617 = vmatpush1.msra.mxu0 0.0
        %1618 = vmatprep.subr.mxu0 0.0
        %1619 = vmatpush1.msra.mxu0 0.0
        %1620 = vmatprep.subr.mxu0 0.0
        %1621 = vmatpush1.msra.mxu0 0.0
        %1622 = vmatprep.subr.mxu0 0.0
        %1623 = vmatpush1.msra.mxu0 0.0
        %1624 = vmatprep.subr.mxu0 0.0
        %1625 = vmatpush1.msra.mxu0 0.0
        %1626 = vmatprep.subr.mxu0 0.0
        %1627 = vmatpush1.msra.mxu0 0.0
        %1628 = vmatprep.subr.mxu0 0.0
        %1629 = vmatpush1.msra.mxu0 0.0
        %1630 = vmatprep.subr.mxu0 0.0
        %1631 = vmatpush1.msra.mxu0 0.0
        %1632 = vmatprep.subr.mxu0 0.0
        %1633 = vmatpush1.msra.mxu0 0.0
        %1634 = vmatprep.subr.mxu0 0.0
        %1635 = vmatpush1.msra.mxu0 0.0
        %1636 = vmatprep.subr.mxu0 0.0
        %1637 = vmatpush1.msra.mxu0 0.0
        %1638 = vmatprep.subr.mxu0 0.0
        %1639 = vmatpush1.msra.mxu0 0.0
        %1640 = vmatprep.subr.mxu0 0.0
        %1641 = vmatpush1.msra.mxu0 0.0
        %1642 = vmatprep.subr.mxu0 0.0
        %1643 = vmatpush1.msra.mxu0 0.0
        %1644 = vmatprep.subr.mxu0 0.0
        %1645 = vmatpush1.msra.mxu0 0.0
        %1646 = vmatprep.subr.mxu0 0.0
        %1647 = vmatpush1.msra.mxu0 0.0
        %1648 = vmatprep.subr.mxu0 0.0
        %1649 = vmatpush1.msra.mxu0 0.0
        %1650 = vmatprep.subr.mxu0 0.0
        %1651 = vmatpush1.msra.mxu0 0.0
        %1652 = vmatprep.subr.mxu0 0.0
        %1653 = vmatpush1.msra.mxu0 0.0
        %1654 = vmatprep.subr.mxu0 0.0
        %1655 = vmatpush1.msra.mxu0 0.0
        %1656 = vmatprep.subr.mxu0 0.0
        %1657 = vmatpush1.msra.mxu0 0.0
        %1658 = vmatprep.mubr.f32.mxu0 0.0
        %1659 = vmatmul.mubr.f32.gmra.mrb[0].mxu0 %v1583
        %v1660 = vpop.f32.mrb[0].mxu0
        %v1661 = vadd.f32 0.0, %v1660
        %v1662 = vpop.f32.mrb[0].mxu0
        %1663 = vmatprep.mubr.f32.mxu0 0.0
        %1664 = vmatmul.mubr.f32.gmra.mrb[0].mxu0 %v1586
        %v1665 = vpop.f32.mrb[0].mxu0
        %v1666 = vadd.f32 0.0, %v1665
        %v1667 = vpop.f32.mrb[0].mxu0
        %1668 = vmatprep.mubr.f32.mxu0 0.0
        %1669 = vmatmul.mubr.f32.gmra.mrb[0].mxu0 %v1589
        %v1670 = vpop.f32.mrb[0].mxu0
        %v1671 = vadd.f32 0.0, %v1670
        %v1672 = vpop.f32.mrb[0].mxu0
        %1673 = vmatprep.mubr.f32.mxu0 0.0
        %1674 = vmatmul.mubr.f32.gmra.mrb[0].mxu0 %v1592
        %v1675 = vpop.f32.mrb[0].mxu0
        %v1676 = vadd.f32 0.0, %v1675
        %v1677 = vpop.f32.mrb[0].mxu0
        %1678 = vdwg.mxu0
        %v1680 = vsel %vm1138, %v1661, 0
        %v1683 = vsel %vm1138, %v1666, 0
        %v1686 = vsel %vm1138, %v1671, 0
        %v1689 = vsel %vm1138, %v1676, 0
        %1691 = vmatprep.subr.mxu0 0.0
        %1692 = vmatpush1.msra.mxu0 %v1122
        %1693 = vmatprep.subr.mxu0 0.0
        %1694 = vmatpush1.msra.mxu0 %v1123
        %1695 = vmatprep.subr.mxu0 0.0
        %1696 = vmatpush1.msra.mxu0 %v1124
        %1697 = vmatprep.subr.mxu0 0.0
        %1698 = vmatpush1.msra.mxu0 %v1125
        %1699 = vmatprep.subr.mxu0 0.0
        %1700 = vmatpush1.msra.mxu0 0.0
        %1701 = vmatprep.subr.mxu0 0.0
        %1702 = vmatpush1.msra.mxu0 0.0
        %1703 = vmatprep.subr.mxu0 0.0
        %1704 = vmatpush1.msra.mxu0 0.0
        %1705 = vmatprep.subr.mxu0 0.0
        %1706 = vmatpush1.msra.mxu0 0.0
        %1707 = vmatprep.subr.mxu0 0.0
        %1708 = vmatpush1.msra.mxu0 0.0
        %1709 = vmatprep.subr.mxu0 0.0
        %1710 = vmatpush1.msra.mxu0 0.0
        %1711 = vmatprep.subr.mxu0 0.0
        %1712 = vmatpush1.msra.mxu0 0.0
        %1713 = vmatprep.subr.mxu0 0.0
        %1714 = vmatpush1.msra.mxu0 0.0
        %1715 = vmatprep.subr.mxu0 0.0
        %1716 = vmatpush1.msra.mxu0 0.0
        %1717 = vmatprep.subr.mxu0 0.0
        %1718 = vmatpush1.msra.mxu0 0.0
        %1719 = vmatprep.subr.mxu0 0.0
        %1720 = vmatpush1.msra.mxu0 0.0
        %1721 = vmatprep.subr.mxu0 0.0
        %1722 = vmatpush1.msra.mxu0 0.0
        %1723 = vmatprep.subr.mxu0 0.0
        %1724 = vmatpush1.msra.mxu0 0.0
        %1725 = vmatprep.subr.mxu0 0.0
        %1726 = vmatpush1.msra.mxu0 0.0
        %1727 = vmatprep.subr.mxu0 0.0
        %1728 = vmatpush1.msra.mxu0 0.0
        %1729 = vmatprep.subr.mxu0 0.0
        %1730 = vmatpush1.msra.mxu0 0.0
        %1731 = vmatprep.subr.mxu0 0.0
        %1732 = vmatpush1.msra.mxu0 0.0
        %1733 = vmatprep.subr.mxu0 0.0
        %1734 = vmatpush1.msra.mxu0 0.0
        %1735 = vmatprep.subr.mxu0 0.0
        %1736 = vmatpush1.msra.mxu0 0.0
        %1737 = vmatprep.subr.mxu0 0.0
        %1738 = vmatpush1.msra.mxu0 0.0
        %1739 = vmatprep.subr.mxu0 0.0
        %1740 = vmatpush1.msra.mxu0 0.0
        %1741 = vmatprep.subr.mxu0 0.0
        %1742 = vmatpush1.msra.mxu0 0.0
        %1743 = vmatprep.subr.mxu0 0.0
        %1744 = vmatpush1.msra.mxu0 0.0
        %1745 = vmatprep.subr.mxu0 0.0
        %1746 = vmatpush1.msra.mxu0 0.0
        %1747 = vmatprep.subr.mxu0 0.0
        %1748 = vmatpush1.msra.mxu0 0.0
        %1749 = vmatprep.subr.mxu0 0.0
        %1750 = vmatpush1.msra.mxu0 0.0
        %1751 = vmatprep.subr.mxu0 0.0
        %1752 = vmatpush1.msra.mxu0 0.0
        %1753 = vmatprep.subr.mxu0 0.0
        %1754 = vmatpush1.msra.mxu0 0.0
        %1755 = vmatprep.mubr.f32.mxu0 0.0
        %1756 = vmatmul.mubr.f32.gmra.mrb[0].mxu0 %v1680
        %v1757 = vpop.f32.mrb[0].mxu0
        %v1758 = vadd.f32 0.0, %v1757
        %v1759 = vpop.f32.mrb[0].mxu0
        %1760 = vmatprep.mubr.f32.mxu0 0.0
        %1761 = vmatmul.mubr.f32.gmra.mrb[0].mxu0 %v1683
        %v1762 = vpop.f32.mrb[0].mxu0
        %v1763 = vadd.f32 0.0, %v1762
        %v1764 = vpop.f32.mrb[0].mxu0
        %1765 = vmatprep.mubr.f32.mxu0 0.0
        %1766 = vmatmul.mubr.f32.gmra.mrb[0].mxu0 %v1686
        %v1767 = vpop.f32.mrb[0].mxu0
        %v1768 = vadd.f32 0.0, %v1767
        %v1769 = vpop.f32.mrb[0].mxu0
        %1770 = vmatprep.mubr.f32.mxu0 0.0
        %1771 = vmatmul.mubr.f32.gmra.mrb[0].mxu0 %v1689
        %v1772 = vpop.f32.mrb[0].mxu0
        %v1773 = vadd.f32 0.0, %v1772
        %v1774 = vpop.f32.mrb[0].mxu0
        %1775 = vdwg.mxu0
        %v1777 = vsel %vm1138, %v1379, 0
        %v1780 = vsel %vm1138, %v1384, 0
        %v1783 = vsel %vm1138, %v1389, 0
        %v1786 = vsel %vm1138, %v1394, 0
        %1788 = vmatprep.subr.mxu0 0.0
        %1789 = vmatpush1.msra.mxu0 %v1118
        %1790 = vmatprep.subr.mxu0 0.0
        %1791 = vmatpush1.msra.mxu0 %v1119
        %1792 = vmatprep.subr.mxu0 0.0
        %1793 = vmatpush1.msra.mxu0 %v1120
        %1794 = vmatprep.subr.mxu0 0.0
        %1795 = vmatpush1.msra.mxu0 %v1121
        %1796 = vmatprep.subr.mxu0 0.0
        %1797 = vmatpush1.msra.mxu0 0.0
        %1798 = vmatprep.subr.mxu0 0.0
        %1799 = vmatpush1.msra.mxu0 0.0
        %1800 = vmatprep.subr.mxu0 0.0
        %1801 = vmatpush1.msra.mxu0 0.0
        %1802 = vmatprep.subr.mxu0 0.0
        %1803 = vmatpush1.msra.mxu0 0.0
        %1804 = vmatprep.subr.mxu0 0.0
        %1805 = vmatpush1.msra.mxu0 0.0
        %1806 = vmatprep.subr.mxu0 0.0
        %1807 = vmatpush1.msra.mxu0 0.0
        %1808 = vmatprep.subr.mxu0 0.0
        %1809 = vmatpush1.msra.mxu0 0.0
        %1810 = vmatprep.subr.mxu0 0.0
        %1811 = vmatpush1.msra.mxu0 0.0
        %1812 = vmatprep.subr.mxu0 0.0
        %1813 = vmatpush1.msra.mxu0 0.0
        %1814 = vmatprep.subr.mxu0 0.0
        %1815 = vmatpush1.msra.mxu0 0.0
        %1816 = vmatprep.subr.mxu0 0.0
        %1817 = vmatpush1.msra.mxu0 0.0
        %1818 = vmatprep.subr.mxu0 0.0
        %1819 = vmatpush1.msra.mxu0 0.0
        %1820 = vmatprep.subr.mxu0 0.0
        %1821 = vmatpush1.msra.mxu0 0.0
        %1822 = vmatprep.subr.mxu0 0.0
        %1823 = vmatpush1.msra.mxu0 0.0
        %1824 = vmatprep.subr.mxu0 0.0
        %1825 = vmatpush1.msra.mxu0 0.0
        %1826 = vmatprep.subr.mxu0 0.0
        %1827 = vmatpush1.msra.mxu0 0.0
        %1828 = vmatprep.subr.mxu0 0.0
        %1829 = vmatpush1.msra.mxu0 0.0
        %1830 = vmatprep.subr.mxu0 0.0
        %1831 = vmatpush1.msra.mxu0 0.0
        %1832 = vmatprep.subr.mxu0 0.0
        %1833 = vmatpush1.msra.mxu0 0.0
        %1834 = vmatprep.subr.mxu0 0.0
        %1835 = vmatpush1.msra.mxu0 0.0
        %1836 = vmatprep.subr.mxu0 0.0
        %1837 = vmatpush1.msra.mxu0 0.0
        %1838 = vmatprep.subr.mxu0 0.0
        %1839 = vmatpush1.msra.mxu0 0.0
        %1840 = vmatprep.subr.mxu0 0.0
        %1841 = vmatpush1.msra.mxu0 0.0
        %1842 = vmatprep.subr.mxu0 0.0
        %1843 = vmatpush1.msra.mxu0 0.0
        %1844 = vmatprep.subr.mxu0 0.0
        %1845 = vmatpush1.msra.mxu0 0.0
        %1846 = vmatprep.subr.mxu0 0.0
        %1847 = vmatpush1.msra.mxu0 0.0
        %1848 = vmatprep.subr.mxu0 0.0
        %1849 = vmatpush1.msra.mxu0 0.0
        %1850 = vmatprep.subr.mxu0 0.0
        %1851 = vmatpush1.msra.mxu0 0.0
        %1852 = vmatprep.mubr.f32.mxu0 0.0
        %1853 = vmatmul.mubr.f32.gmra.mrb[0].mxu0 %v1777
        %v1854 = vpop.f32.mrb[0].mxu0
        %v1855 = vadd.f32 %v1758, %v1854
        %v1856 = vpop.f32.mrb[0].mxu0
        %1857 = vmatprep.mubr.f32.mxu0 0.0
        %1858 = vmatmul.mubr.f32.gmra.mrb[0].mxu0 %v1780
        %v1859 = vpop.f32.mrb[0].mxu0
        %v1860 = vadd.f32 %v1763, %v1859
        %v1861 = vpop.f32.mrb[0].mxu0
        %1862 = vmatprep.mubr.f32.mxu0 0.0
        %1863 = vmatmul.mubr.f32.gmra.mrb[0].mxu0 %v1783
        %v1864 = vpop.f32.mrb[0].mxu0
        %v1865 = vadd.f32 %v1768, %v1864
        %v1866 = vpop.f32.mrb[0].mxu0
        %1867 = vmatprep.mubr.f32.mxu0 0.0
        %1868 = vmatmul.mubr.f32.gmra.mrb[0].mxu0 %v1786
        %v1869 = vpop.f32.mrb[0].mxu0
        %v1870 = vadd.f32 %v1773, %v1869
        %v1871 = vpop.f32.mrb[0].mxu0
        %1872 = vdwg.mxu0
        %1873 = vrot.lane.b32.xlu0 %v1011, 64
        %v1874 = vpop.permute.xlu0 %1873
        %1875 = vrot.lane.b32.xlu0 %v1017, 64
        %v1876 = vpop.permute.xlu0 %1875
        %1877 = vrot.lane.b32.xlu0 %v1023, 64
        %v1878 = vpop.permute.xlu0 %1877
        %1879 = vrot.lane.b32.xlu0 %v1029, 64
        %v1880 = vpop.permute.xlu0 %1879
        %1881 = vrot.lane.b32.xlu0 %v1013, 64
        %v1882 = vpop.permute.xlu0 %1881
        %1883 = vrot.lane.b32.xlu0 %v1019, 64
        %v1884 = vpop.permute.xlu0 %1883
        %1885 = vrot.lane.b32.xlu0 %v1025, 64
        %v1886 = vpop.permute.xlu0 %1885
        %1887 = vrot.lane.b32.xlu0 %v1031, 64
        %v1888 = vpop.permute.xlu0 %1887
        %v1889 = vsel %vm1138, %v1874, 0
        %v1891 = vsel %vm1138, %v1876, 0
        %v1893 = vsel %vm1138, %v1878, 0
        %v1895 = vsel %vm1138, %v1880, 0
        %v1897 = vsel %vm1138, %v1882, 0
        %v1899 = vsel %vm1138, %v1884, 0
        %v1901 = vsel %vm1138, %v1886, 0
        %v1903 = vsel %vm1138, %v1888, 0
        %1905 = vmatprep.subr.mxu0 0.0
        %1906 = vmatpush1.xpose.msra.mxu0 %v1897
        %1907 = vmatprep.subr.mxu0 0.0
        %1908 = vmatpush1.xpose.msra.mxu0 %v1899
        %1909 = vmatprep.subr.mxu0 0.0
        %1910 = vmatpush1.xpose.msra.mxu0 %v1901
        %1911 = vmatprep.subr.mxu0 0.0
        %1912 = vmatpush1.xpose.msra.mxu0 %v1903
        %1913 = vmatprep.subr.mxu0 0.0
        %1914 = vmatpush1.xpose.msra.mxu0 0.0
        %1915 = vmatprep.subr.mxu0 0.0
        %1916 = vmatpush1.xpose.msra.mxu0 0.0
        %1917 = vmatprep.subr.mxu0 0.0
        %1918 = vmatpush1.xpose.msra.mxu0 0.0
        %1919 = vmatprep.subr.mxu0 0.0
        %1920 = vmatpush1.xpose.msra.mxu0 0.0
        %1921 = vmatprep.subr.mxu0 0.0
        %1922 = vmatpush1.xpose.msra.mxu0 0.0
        %1923 = vmatprep.subr.mxu0 0.0
        %1924 = vmatpush1.xpose.msra.mxu0 0.0
        %1925 = vmatprep.subr.mxu0 0.0
        %1926 = vmatpush1.xpose.msra.mxu0 0.0
        %1927 = vmatprep.subr.mxu0 0.0
        %1928 = vmatpush1.xpose.msra.mxu0 0.0
        %1929 = vmatprep.subr.mxu0 0.0
        %1930 = vmatpush1.xpose.msra.mxu0 0.0
        %1931 = vmatprep.subr.mxu0 0.0
        %1932 = vmatpush1.xpose.msra.mxu0 0.0
        %1933 = vmatprep.subr.mxu0 0.0
        %1934 = vmatpush1.xpose.msra.mxu0 0.0
        %1935 = vmatprep.subr.mxu0 0.0
        %1936 = vmatpush1.xpose.msra.mxu0 0.0
        %1937 = vmatprep.subr.mxu0 0.0
        %1938 = vmatpush1.xpose.msra.mxu0 0.0
        %1939 = vmatprep.subr.mxu0 0.0
        %1940 = vmatpush1.xpose.msra.mxu0 0.0
        %1941 = vmatprep.subr.mxu0 0.0
        %1942 = vmatpush1.xpose.msra.mxu0 0.0
        %1943 = vmatprep.subr.mxu0 0.0
        %1944 = vmatpush1.xpose.msra.mxu0 0.0
        %1945 = vmatprep.subr.mxu0 0.0
        %1946 = vmatpush1.xpose.msra.mxu0 0.0
        %1947 = vmatprep.subr.mxu0 0.0
        %1948 = vmatpush1.xpose.msra.mxu0 0.0
        %1949 = vmatprep.subr.mxu0 0.0
        %1950 = vmatpush1.xpose.msra.mxu0 0.0
        %1951 = vmatprep.subr.mxu0 0.0
        %1952 = vmatpush1.xpose.msra.mxu0 0.0
        %1953 = vmatprep.subr.mxu0 0.0
        %1954 = vmatpush1.xpose.msra.mxu0 0.0
        %1955 = vmatprep.subr.mxu0 0.0
        %1956 = vmatpush1.xpose.msra.mxu0 0.0
        %1957 = vmatprep.subr.mxu0 0.0
        %1958 = vmatpush1.xpose.msra.mxu0 0.0
        %1959 = vmatprep.subr.mxu0 0.0
        %1960 = vmatpush1.xpose.msra.mxu0 0.0
        %1961 = vmatprep.subr.mxu0 0.0
        %1962 = vmatpush1.xpose.msra.mxu0 0.0
        %1963 = vmatprep.subr.mxu0 0.0
        %1964 = vmatpush1.xpose.msra.mxu0 0.0
        %1965 = vmatprep.subr.mxu0 0.0
        %1966 = vmatpush1.xpose.msra.mxu0 0.0
        %1967 = vmatprep.subr.mxu0 0.0
        %1968 = vmatpush1.xpose.msra.mxu0 0.0
        %1969 = vmatprep.mubr.f32.mxu0 0.0
        %1970 = vmatmul.mubr.f32.gmra.mrb[0].mxu0 %v1889
        %v1971 = vpop.f32.mrb[0].mxu0
        %v1972 = vadd.f32 0.0, %v1971
        %v1973 = vpop.f32.mrb[0].mxu0
        %1974 = vmatprep.mubr.f32.mxu0 0.0
        %1975 = vmatmul.mubr.f32.gmra.mrb[0].mxu0 %v1891
        %v1976 = vpop.f32.mrb[0].mxu0
        %v1977 = vadd.f32 0.0, %v1976
        %v1978 = vpop.f32.mrb[0].mxu0
        %1979 = vmatprep.mubr.f32.mxu0 0.0
        %1980 = vmatmul.mubr.f32.gmra.mrb[0].mxu0 %v1893
        %v1981 = vpop.f32.mrb[0].mxu0
        %v1982 = vadd.f32 0.0, %v1981
        %v1983 = vpop.f32.mrb[0].mxu0
        %1984 = vmatprep.mubr.f32.mxu0 0.0
        %1985 = vmatmul.mubr.f32.gmra.mrb[0].mxu0 %v1895
        %v1986 = vpop.f32.mrb[0].mxu0
        %v1987 = vadd.f32 0.0, %v1986
        %v1988 = vpop.f32.mrb[0].mxu0
        %1989 = vdwg.mxu0
        %v1990 = vmul.f32 %v1972, 0.17677669
        %v1991 = vmul.f32 %v1977, 0.17677669
        %v1992 = vmul.f32 %v1982, 0.17677669
        %v1993 = vmul.f32 %v1987, 0.17677669
        %v1994 = vadd.f32 %v1990, %v1134
        %v1995 = vadd.f32 %v1991, %v1135
        %v1996 = vadd.f32 %v1992, %v1136
        %v1997 = vadd.f32 %v1993, %v1137
        %v1998 = vsel %vm1138, %v1994, -inf
        %1999 = vmax.xlane.f32.xlu0 %v1998
        %v2000 = vpop.xlane.xlu0 %1999
        %v2001 = vsel %vm1138, %v1995, -inf
        %2002 = vmax.xlane.f32.xlu0 %v2001
        %v2003 = vpop.xlane.xlu0 %2002
        %v2004 = vsel %vm1138, %v1996, -inf
        %2005 = vmax.xlane.f32.xlu0 %v2004
        %v2006 = vpop.xlane.xlu0 %2005
        %v2007 = vsel %vm1138, %v1997, -inf
        %2008 = vmax.xlane.f32.xlu0 %v2007
        %v2009 = vpop.xlane.xlu0 %2008
        %v2010 = vsub.f32 %v1994, %v2000
        %v2011 = vsub.f32 %v1995, %v2003
        %v2012 = vsub.f32 %v1996, %v2006
        %v2013 = vsub.f32 %v1997, %v2009
        %v2014 = vmul.f32 %v2010, 1.442695
        %v2015 = vpow.pop %v2014
        %v2016 = vmul.f32 %v2011, 1.442695
        %v2017 = vpow.pop %v2016
        %v2018 = vmul.f32 %v2012, 1.442695
        %v2019 = vpow.pop %v2018
        %v2020 = vmul.f32 %v2013, 1.442695
        %v2021 = vpow.pop %v2020
        %v2022 = vsel %vm1138, %v2015, 0.0
        %2023 = vadd.xlane.f32.xlu0 %v2022
        %v2024 = vpop.xlane.xlu0 %2023
        %v2025 = vsel %vm1138, %v2017, 0.0
        %2026 = vadd.xlane.f32.xlu0 %v2025
        %v2027 = vpop.xlane.xlu0 %2026
        %v2028 = vsel %vm1138, %v2019, 0.0
        %2029 = vadd.xlane.f32.xlu0 %v2028
        %v2030 = vpop.xlane.xlu0 %2029
        %v2031 = vsel %vm1138, %v2021, 0.0
        %2032 = vadd.xlane.f32.xlu0 %v2031
        %v2033 = vpop.xlane.xlu0 %2032
        %v2034 = vrcp.pop %v2024
        %v2035 = vrcp.pop %v2027
        %v2036 = vrcp.pop %v2030
        %v2037 = vrcp.pop %v2033
        %v2038 = vmul.f32 %v2015, %v2034
        %v2039 = vmul.f32 %v2017, %v2035
        %v2040 = vmul.f32 %v2019, %v2036
        %v2041 = vmul.f32 %v2021, %v2037
        %2042 = vrot.lane.b32.xlu0 %v1100, 64
        %v2043 = vpop.permute.xlu0 %2042
        %2044 = vrot.lane.b32.xlu0 %v1105, 64
        %v2045 = vpop.permute.xlu0 %2044
        %2046 = vrot.lane.b32.xlu0 %v1110, 64
        %v2047 = vpop.permute.xlu0 %2046
        %2048 = vrot.lane.b32.xlu0 %v1115, 64
        %v2049 = vpop.permute.xlu0 %2048
        %v2055 = vsel %vm1138, %v2038, 0
        %v2058 = vsel %vm1138, %v2039, 0
        %v2061 = vsel %vm1138, %v2040, 0
        %v2064 = vsel %vm1138, %v2041, 0
        %2066 = vmatprep.subr.mxu0 0.0
        %2067 = vmatpush1.msra.mxu0 %v2043
        %2068 = vmatprep.subr.mxu0 0.0
        %2069 = vmatpush1.msra.mxu0 %v2045
        %2070 = vmatprep.subr.mxu0 0.0
        %2071 = vmatpush1.msra.mxu0 %v2047
        %2072 = vmatprep.subr.mxu0 0.0
        %2073 = vmatpush1.msra.mxu0 %v2049
        %2074 = vmatprep.subr.mxu0 0.0
        %2075 = vmatpush1.msra.mxu0 0.0
        %2076 = vmatprep.subr.mxu0 0.0
        %2077 = vmatpush1.msra.mxu0 0.0
        %2078 = vmatprep.subr.mxu0 0.0
        %2079 = vmatpush1.msra.mxu0 0.0
        %2080 = vmatprep.subr.mxu0 0.0
        %2081 = vmatpush1.msra.mxu0 0.0
        %2082 = vmatprep.subr.mxu0 0.0
        %2083 = vmatpush1.msra.mxu0 0.0
        %2084 = vmatprep.subr.mxu0 0.0
        %2085 = vmatpush1.msra.mxu0 0.0
        %2086 = vmatprep.subr.mxu0 0.0
        %2087 = vmatpush1.msra.mxu0 0.0
        %2088 = vmatprep.subr.mxu0 0.0
        %2089 = vmatpush1.msra.mxu0 0.0
        %2090 = vmatprep.subr.mxu0 0.0
        %2091 = vmatpush1.msra.mxu0 0.0
        %2092 = vmatprep.subr.mxu0 0.0
        %2093 = vmatpush1.msra.mxu0 0.0
        %2094 = vmatprep.subr.mxu0 0.0
        %2095 = vmatpush1.msra.mxu0 0.0
        %2096 = vmatprep.subr.mxu0 0.0
        %2097 = vmatpush1.msra.mxu0 0.0
        %2098 = vmatprep.subr.mxu0 0.0
        %2099 = vmatpush1.msra.mxu0 0.0
        %2100 = vmatprep.subr.mxu0 0.0
        %2101 = vmatpush1.msra.mxu0 0.0
        %2102 = vmatprep.subr.mxu0 0.0
        %2103 = vmatpush1.msra.mxu0 0.0
        %2104 = vmatprep.subr.mxu0 0.0
        %2105 = vmatpush1.msra.mxu0 0.0
        %2106 = vmatprep.subr.mxu0 0.0
        %2107 = vmatpush1.msra.mxu0 0.0
        %2108 = vmatprep.subr.mxu0 0.0
        %2109 = vmatpush1.msra.mxu0 0.0
        %2110 = vmatprep.subr.mxu0 0.0
        %2111 = vmatpush1.msra.mxu0 0.0
        %2112 = vmatprep.subr.mxu0 0.0
        %2113 = vmatpush1.msra.mxu0 0.0
        %2114 = vmatprep.subr.mxu0 0.0
        %2115 = vmatpush1.msra.mxu0 0.0
        %2116 = vmatprep.subr.mxu0 0.0
        %2117 = vmatpush1.msra.mxu0 0.0
        %2118 = vmatprep.subr.mxu0 0.0
        %2119 = vmatpush1.msra.mxu0 0.0
        %2120 = vmatprep.subr.mxu0 0.0
        %2121 = vmatpush1.msra.mxu0 0.0
        %2122 = vmatprep.subr.mxu0 0.0
        %2123 = vmatpush1.msra.mxu0 0.0
        %2124 = vmatprep.subr.mxu0 0.0
        %2125 = vmatpush1.msra.mxu0 0.0
        %2126 = vmatprep.subr.mxu0 0.0
        %2127 = vmatpush1.msra.mxu0 0.0
        %2128 = vmatprep.subr.mxu0 0.0
        %2129 = vmatpush1.msra.mxu0 0.0
        %2130 = vmatprep.mubr.f32.mxu0 0.0
        %2131 = vmatmul.mubr.f32.gmra.mrb[0].mxu0 %v2055
        %v2132 = vpop.f32.mrb[0].mxu0
        %v2133 = vadd.f32 0.0, %v2132
        %v2134 = vpop.f32.mrb[0].mxu0
        %2135 = vmatprep.mubr.f32.mxu0 0.0
        %2136 = vmatmul.mubr.f32.gmra.mrb[0].mxu0 %v2058
        %v2137 = vpop.f32.mrb[0].mxu0
        %v2138 = vadd.f32 0.0, %v2137
        %v2139 = vpop.f32.mrb[0].mxu0
        %2140 = vmatprep.mubr.f32.mxu0 0.0
        %2141 = vmatmul.mubr.f32.gmra.mrb[0].mxu0 %v2061
        %v2142 = vpop.f32.mrb[0].mxu0
        %v2143 = vadd.f32 0.0, %v2142
        %v2144 = vpop.f32.mrb[0].mxu0
        %2145 = vmatprep.mubr.f32.mxu0 0.0
        %2146 = vmatmul.mubr.f32.gmra.mrb[0].mxu0 %v2064
        %v2147 = vpop.f32.mrb[0].mxu0
        %v2148 = vadd.f32 0.0, %v2147
        %v2149 = vpop.f32.mrb[0].mxu0
        %2150 = vdwg.mxu0
        %v2152 = vsel %vm1138, %v2133, 0
        %v2155 = vsel %vm1138, %v2138, 0
        %v2158 = vsel %vm1138, %v2143, 0
        %v2161 = vsel %vm1138, %v2148, 0
        %2163 = vmatprep.subr.mxu0 0.0
        %2164 = vmatpush1.msra.mxu0 %v1126
        %2165 = vmatprep.subr.mxu0 0.0
        %2166 = vmatpush1.msra.mxu0 %v1127
        %2167 = vmatprep.subr.mxu0 0.0
        %2168 = vmatpush1.msra.mxu0 %v1128
        %2169 = vmatprep.subr.mxu0 0.0
        %2170 = vmatpush1.msra.mxu0 %v1129
        %2171 = vmatprep.subr.mxu0 0.0
        %2172 = vmatpush1.msra.mxu0 0.0
        %2173 = vmatprep.subr.mxu0 0.0
        %2174 = vmatpush1.msra.mxu0 0.0
        %2175 = vmatprep.subr.mxu0 0.0
        %2176 = vmatpush1.msra.mxu0 0.0
        %2177 = vmatprep.subr.mxu0 0.0
        %2178 = vmatpush1.msra.mxu0 0.0
        %2179 = vmatprep.subr.mxu0 0.0
        %2180 = vmatpush1.msra.mxu0 0.0
        %2181 = vmatprep.subr.mxu0 0.0
        %2182 = vmatpush1.msra.mxu0 0.0
        %2183 = vmatprep.subr.mxu0 0.0
        %2184 = vmatpush1.msra.mxu0 0.0
        %2185 = vmatprep.subr.mxu0 0.0
        %2186 = vmatpush1.msra.mxu0 0.0
        %2187 = vmatprep.subr.mxu0 0.0
        %2188 = vmatpush1.msra.mxu0 0.0
        %2189 = vmatprep.subr.mxu0 0.0
        %2190 = vmatpush1.msra.mxu0 0.0
        %2191 = vmatprep.subr.mxu0 0.0
        %2192 = vmatpush1.msra.mxu0 0.0
        %2193 = vmatprep.subr.mxu0 0.0
        %2194 = vmatpush1.msra.mxu0 0.0
        %2195 = vmatprep.subr.mxu0 0.0
        %2196 = vmatpush1.msra.mxu0 0.0
        %2197 = vmatprep.subr.mxu0 0.0
        %2198 = vmatpush1.msra.mxu0 0.0
        %2199 = vmatprep.subr.mxu0 0.0
        %2200 = vmatpush1.msra.mxu0 0.0
        %2201 = vmatprep.subr.mxu0 0.0
        %2202 = vmatpush1.msra.mxu0 0.0
        %2203 = vmatprep.subr.mxu0 0.0
        %2204 = vmatpush1.msra.mxu0 0.0
        %2205 = vmatprep.subr.mxu0 0.0
        %2206 = vmatpush1.msra.mxu0 0.0
        %2207 = vmatprep.subr.mxu0 0.0
        %2208 = vmatpush1.msra.mxu0 0.0
        %2209 = vmatprep.subr.mxu0 0.0
        %2210 = vmatpush1.msra.mxu0 0.0
        %2211 = vmatprep.subr.mxu0 0.0
        %2212 = vmatpush1.msra.mxu0 0.0
        %2213 = vmatprep.subr.mxu0 0.0
        %2214 = vmatpush1.msra.mxu0 0.0
        %2215 = vmatprep.subr.mxu0 0.0
        %2216 = vmatpush1.msra.mxu0 0.0
        %2217 = vmatprep.subr.mxu0 0.0
        %2218 = vmatpush1.msra.mxu0 0.0
        %2219 = vmatprep.subr.mxu0 0.0
        %2220 = vmatpush1.msra.mxu0 0.0
        %2221 = vmatprep.subr.mxu0 0.0
        %2222 = vmatpush1.msra.mxu0 0.0
        %2223 = vmatprep.subr.mxu0 0.0
        %2224 = vmatpush1.msra.mxu0 0.0
        %2225 = vmatprep.subr.mxu0 0.0
        %2226 = vmatpush1.msra.mxu0 0.0
        %2227 = vmatprep.mubr.f32.mxu0 0.0
        %2228 = vmatmul.mubr.f32.gmra.mrb[0].mxu0 %v2152
        %v2229 = vpop.f32.mrb[0].mxu0
        %v2230 = vadd.f32 0.0, %v2229
        %v2231 = vpop.f32.mrb[0].mxu0
        %2232 = vmatprep.mubr.f32.mxu0 0.0
        %2233 = vmatmul.mubr.f32.gmra.mrb[0].mxu0 %v2155
        %v2234 = vpop.f32.mrb[0].mxu0
        %v2235 = vadd.f32 0.0, %v2234
        %v2236 = vpop.f32.mrb[0].mxu0
        %2237 = vmatprep.mubr.f32.mxu0 0.0
        %2238 = vmatmul.mubr.f32.gmra.mrb[0].mxu0 %v2158
        %v2239 = vpop.f32.mrb[0].mxu0
        %v2240 = vadd.f32 0.0, %v2239
        %v2241 = vpop.f32.mrb[0].mxu0
        %2242 = vmatprep.mubr.f32.mxu0 0.0
        %2243 = vmatmul.mubr.f32.gmra.mrb[0].mxu0 %v2161
        %v2244 = vpop.f32.mrb[0].mxu0
        %v2245 = vadd.f32 0.0, %v2244
        %v2246 = vpop.f32.mrb[0].mxu0
        %2247 = vdwg.mxu0
        %v2248 = vadd.f32 %v1855, %v2230
        %v2249 = vadd.f32 %v1860, %v2235
        %v2250 = vadd.f32 %v1865, %v2240
        %v2251 = vadd.f32 %v1870, %v2245
        %2252 = vrot.lane.b32.xlu0 %v1011, 32
        %v2253 = vpop.permute.xlu0 %2252
        %2254 = vrot.lane.b32.xlu0 %v1017, 32
        %v2255 = vpop.permute.xlu0 %2254
        %2256 = vrot.lane.b32.xlu0 %v1023, 32
        %v2257 = vpop.permute.xlu0 %2256
        %2258 = vrot.lane.b32.xlu0 %v1029, 32
        %v2259 = vpop.permute.xlu0 %2258
        %2260 = vrot.lane.b32.xlu0 %v1013, 32
        %v2261 = vpop.permute.xlu0 %2260
        %2262 = vrot.lane.b32.xlu0 %v1019, 32
        %v2263 = vpop.permute.xlu0 %2262
        %2264 = vrot.lane.b32.xlu0 %v1025, 32
        %v2265 = vpop.permute.xlu0 %2264
        %2266 = vrot.lane.b32.xlu0 %v1031, 32
        %v2267 = vpop.permute.xlu0 %2266
        %v2268 = vsel %vm1138, %v2253, 0
        %v2270 = vsel %vm1138, %v2255, 0
        %v2272 = vsel %vm1138, %v2257, 0
        %v2274 = vsel %vm1138, %v2259, 0
        %v2276 = vsel %vm1138, %v2261, 0
        %v2278 = vsel %vm1138, %v2263, 0
        %v2280 = vsel %vm1138, %v2265, 0
        %v2282 = vsel %vm1138, %v2267, 0
        %2284 = vmatprep.subr.mxu0 0.0
        %2285 = vmatpush1.xpose.msra.mxu0 %v2276
        %2286 = vmatprep.subr.mxu0 0.0
        %2287 = vmatpush1.xpose.msra.mxu0 %v2278
        %2288 = vmatprep.subr.mxu0 0.0
        %2289 = vmatpush1.xpose.msra.mxu0 %v2280
        %2290 = vmatprep.subr.mxu0 0.0
        %2291 = vmatpush1.xpose.msra.mxu0 %v2282
        %2292 = vmatprep.subr.mxu0 0.0
        %2293 = vmatpush1.xpose.msra.mxu0 0.0
        %2294 = vmatprep.subr.mxu0 0.0
        %2295 = vmatpush1.xpose.msra.mxu0 0.0
        %2296 = vmatprep.subr.mxu0 0.0
        %2297 = vmatpush1.xpose.msra.mxu0 0.0
        %2298 = vmatprep.subr.mxu0 0.0
        %2299 = vmatpush1.xpose.msra.mxu0 0.0
        %2300 = vmatprep.subr.mxu0 0.0
        %2301 = vmatpush1.xpose.msra.mxu0 0.0
        %2302 = vmatprep.subr.mxu0 0.0
        %2303 = vmatpush1.xpose.msra.mxu0 0.0
        %2304 = vmatprep.subr.mxu0 0.0
        %2305 = vmatpush1.xpose.msra.mxu0 0.0
        %2306 = vmatprep.subr.mxu0 0.0
        %2307 = vmatpush1.xpose.msra.mxu0 0.0
        %2308 = vmatprep.subr.mxu0 0.0
        %2309 = vmatpush1.xpose.msra.mxu0 0.0
        %2310 = vmatprep.subr.mxu0 0.0
        %2311 = vmatpush1.xpose.msra.mxu0 0.0
        %2312 = vmatprep.subr.mxu0 0.0
        %2313 = vmatpush1.xpose.msra.mxu0 0.0
        %2314 = vmatprep.subr.mxu0 0.0
        %2315 = vmatpush1.xpose.msra.mxu0 0.0
        %2316 = vmatprep.subr.mxu0 0.0
        %2317 = vmatpush1.xpose.msra.mxu0 0.0
        %2318 = vmatprep.subr.mxu0 0.0
        %2319 = vmatpush1.xpose.msra.mxu0 0.0
        %2320 = vmatprep.subr.mxu0 0.0
        %2321 = vmatpush1.xpose.msra.mxu0 0.0
        %2322 = vmatprep.subr.mxu0 0.0
        %2323 = vmatpush1.xpose.msra.mxu0 0.0
        %2324 = vmatprep.subr.mxu0 0.0
        %2325 = vmatpush1.xpose.msra.mxu0 0.0
        %2326 = vmatprep.subr.mxu0 0.0
        %2327 = vmatpush1.xpose.msra.mxu0 0.0
        %2328 = vmatprep.subr.mxu0 0.0
        %2329 = vmatpush1.xpose.msra.mxu0 0.0
        %2330 = vmatprep.subr.mxu0 0.0
        %2331 = vmatpush1.xpose.msra.mxu0 0.0
        %2332 = vmatprep.subr.mxu0 0.0
        %2333 = vmatpush1.xpose.msra.mxu0 0.0
        %2334 = vmatprep.subr.mxu0 0.0
        %2335 = vmatpush1.xpose.msra.mxu0 0.0
        %2336 = vmatprep.subr.mxu0 0.0
        %2337 = vmatpush1.xpose.msra.mxu0 0.0
        %2338 = vmatprep.subr.mxu0 0.0
        %2339 = vmatpush1.xpose.msra.mxu0 0.0
        %2340 = vmatprep.subr.mxu0 0.0
        %2341 = vmatpush1.xpose.msra.mxu0 0.0
        %2342 = vmatprep.subr.mxu0 0.0
        %2343 = vmatpush1.xpose.msra.mxu0 0.0
        %2344 = vmatprep.subr.mxu0 0.0
        %2345 = vmatpush1.xpose.msra.mxu0 0.0
        %2346 = vmatprep.subr.mxu0 0.0
        %2347 = vmatpush1.xpose.msra.mxu0 0.0
        %2348 = vmatprep.mubr.f32.mxu0 0.0
        %2349 = vmatmul.mubr.f32.gmra.mrb[0].mxu0 %v2268
        %v2350 = vpop.f32.mrb[0].mxu0
        %v2351 = vadd.f32 0.0, %v2350
        %v2352 = vpop.f32.mrb[0].mxu0
        %2353 = vmatprep.mubr.f32.mxu0 0.0
        %2354 = vmatmul.mubr.f32.gmra.mrb[0].mxu0 %v2270
        %v2355 = vpop.f32.mrb[0].mxu0
        %v2356 = vadd.f32 0.0, %v2355
        %v2357 = vpop.f32.mrb[0].mxu0
        %2358 = vmatprep.mubr.f32.mxu0 0.0
        %2359 = vmatmul.mubr.f32.gmra.mrb[0].mxu0 %v2272
        %v2360 = vpop.f32.mrb[0].mxu0
        %v2361 = vadd.f32 0.0, %v2360
        %v2362 = vpop.f32.mrb[0].mxu0
        %2363 = vmatprep.mubr.f32.mxu0 0.0
        %2364 = vmatmul.mubr.f32.gmra.mrb[0].mxu0 %v2274
        %v2365 = vpop.f32.mrb[0].mxu0
        %v2366 = vadd.f32 0.0, %v2365
        %v2367 = vpop.f32.mrb[0].mxu0
        %2368 = vdwg.mxu0
        %v2369 = vmul.f32 %v2351, 0.17677669
        %v2370 = vmul.f32 %v2356, 0.17677669
        %v2371 = vmul.f32 %v2361, 0.17677669
        %v2372 = vmul.f32 %v2366, 0.17677669
        %v2373 = vadd.f32 %v2369, %v1134
        %v2374 = vadd.f32 %v2370, %v1135
        %v2375 = vadd.f32 %v2371, %v1136
        %v2376 = vadd.f32 %v2372, %v1137
        %v2377 = vsel %vm1138, %v2373, -inf
        %2378 = vmax.xlane.f32.xlu0 %v2377
        %v2379 = vpop.xlane.xlu0 %2378
        %v2380 = vsel %vm1138, %v2374, -inf
        %2381 = vmax.xlane.f32.xlu0 %v2380
        %v2382 = vpop.xlane.xlu0 %2381
        %v2383 = vsel %vm1138, %v2375, -inf
        %2384 = vmax.xlane.f32.xlu0 %v2383
        %v2385 = vpop.xlane.xlu0 %2384
        %v2386 = vsel %vm1138, %v2376, -inf
        %2387 = vmax.xlane.f32.xlu0 %v2386
        %v2388 = vpop.xlane.xlu0 %2387
        %v2389 = vsub.f32 %v2373, %v2379
        %v2390 = vsub.f32 %v2374, %v2382
        %v2391 = vsub.f32 %v2375, %v2385
        %v2392 = vsub.f32 %v2376, %v2388
        %v2393 = vmul.f32 %v2389, 1.442695
        %v2394 = vpow.pop %v2393
        %v2395 = vmul.f32 %v2390, 1.442695
        %v2396 = vpow.pop %v2395
        %v2397 = vmul.f32 %v2391, 1.442695
        %v2398 = vpow.pop %v2397
        %v2399 = vmul.f32 %v2392, 1.442695
        %v2400 = vpow.pop %v2399
        %v2401 = vsel %vm1138, %v2394, 0.0
        %2402 = vadd.xlane.f32.xlu0 %v2401
        %v2403 = vpop.xlane.xlu0 %2402
        %v2404 = vsel %vm1138, %v2396, 0.0
        %2405 = vadd.xlane.f32.xlu0 %v2404
        %v2406 = vpop.xlane.xlu0 %2405
        %v2407 = vsel %vm1138, %v2398, 0.0
        %2408 = vadd.xlane.f32.xlu0 %v2407
        %v2409 = vpop.xlane.xlu0 %2408
        %v2410 = vsel %vm1138, %v2400, 0.0
        %2411 = vadd.xlane.f32.xlu0 %v2410
        %v2412 = vpop.xlane.xlu0 %2411
        %v2413 = vrcp.pop %v2403
        %v2414 = vrcp.pop %v2406
        %v2415 = vrcp.pop %v2409
        %v2416 = vrcp.pop %v2412
        %v2417 = vmul.f32 %v2394, %v2413
        %v2418 = vmul.f32 %v2396, %v2414
        %v2419 = vmul.f32 %v2398, %v2415
        %v2420 = vmul.f32 %v2400, %v2416
        %2421 = vrot.lane.b32.xlu0 %v1100, 32
        %v2422 = vpop.permute.xlu0 %2421
        %2423 = vrot.lane.b32.xlu0 %v1105, 32
        %v2424 = vpop.permute.xlu0 %2423
        %2425 = vrot.lane.b32.xlu0 %v1110, 32
        %v2426 = vpop.permute.xlu0 %2425
        %2427 = vrot.lane.b32.xlu0 %v1115, 32
        %v2428 = vpop.permute.xlu0 %2427
        %v2434 = vsel %vm1138, %v2417, 0
        %v2437 = vsel %vm1138, %v2418, 0
        %v2440 = vsel %vm1138, %v2419, 0
        %v2443 = vsel %vm1138, %v2420, 0
        %2445 = vmatprep.subr.mxu0 0.0
        %2446 = vmatpush1.msra.mxu0 %v2422
        %2447 = vmatprep.subr.mxu0 0.0
        %2448 = vmatpush1.msra.mxu0 %v2424
        %2449 = vmatprep.subr.mxu0 0.0
        %2450 = vmatpush1.msra.mxu0 %v2426
        %2451 = vmatprep.subr.mxu0 0.0
        %2452 = vmatpush1.msra.mxu0 %v2428
        %2453 = vmatprep.subr.mxu0 0.0
        %2454 = vmatpush1.msra.mxu0 0.0
        %2455 = vmatprep.subr.mxu0 0.0
        %2456 = vmatpush1.msra.mxu0 0.0
        %2457 = vmatprep.subr.mxu0 0.0
        %2458 = vmatpush1.msra.mxu0 0.0
        %2459 = vmatprep.subr.mxu0 0.0
        %2460 = vmatpush1.msra.mxu0 0.0
        %2461 = vmatprep.subr.mxu0 0.0
        %2462 = vmatpush1.msra.mxu0 0.0
        %2463 = vmatprep.subr.mxu0 0.0
        %2464 = vmatpush1.msra.mxu0 0.0
        %2465 = vmatprep.subr.mxu0 0.0
        %2466 = vmatpush1.msra.mxu0 0.0
        %2467 = vmatprep.subr.mxu0 0.0
        %2468 = vmatpush1.msra.mxu0 0.0
        %2469 = vmatprep.subr.mxu0 0.0
        %2470 = vmatpush1.msra.mxu0 0.0
        %2471 = vmatprep.subr.mxu0 0.0
        %2472 = vmatpush1.msra.mxu0 0.0
        %2473 = vmatprep.subr.mxu0 0.0
        %2474 = vmatpush1.msra.mxu0 0.0
        %2475 = vmatprep.subr.mxu0 0.0
        %2476 = vmatpush1.msra.mxu0 0.0
        %2477 = vmatprep.subr.mxu0 0.0
        %2478 = vmatpush1.msra.mxu0 0.0
        %2479 = vmatprep.subr.mxu0 0.0
        %2480 = vmatpush1.msra.mxu0 0.0
        %2481 = vmatprep.subr.mxu0 0.0
        %2482 = vmatpush1.msra.mxu0 0.0
        %2483 = vmatprep.subr.mxu0 0.0
        %2484 = vmatpush1.msra.mxu0 0.0
        %2485 = vmatprep.subr.mxu0 0.0
        %2486 = vmatpush1.msra.mxu0 0.0
        %2487 = vmatprep.subr.mxu0 0.0
        %2488 = vmatpush1.msra.mxu0 0.0
        %2489 = vmatprep.subr.mxu0 0.0
        %2490 = vmatpush1.msra.mxu0 0.0
        %2491 = vmatprep.subr.mxu0 0.0
        %2492 = vmatpush1.msra.mxu0 0.0
        %2493 = vmatprep.subr.mxu0 0.0
        %2494 = vmatpush1.msra.mxu0 0.0
        %2495 = vmatprep.subr.mxu0 0.0
        %2496 = vmatpush1.msra.mxu0 0.0
        %2497 = vmatprep.subr.mxu0 0.0
        %2498 = vmatpush1.msra.mxu0 0.0
        %2499 = vmatprep.subr.mxu0 0.0
        %2500 = vmatpush1.msra.mxu0 0.0
        %2501 = vmatprep.subr.mxu0 0.0
        %2502 = vmatpush1.msra.mxu0 0.0
        %2503 = vmatprep.subr.mxu0 0.0
        %2504 = vmatpush1.msra.mxu0 0.0
        %2505 = vmatprep.subr.mxu0 0.0
        %2506 = vmatpush1.msra.mxu0 0.0
        %2507 = vmatprep.subr.mxu0 0.0
        %2508 = vmatpush1.msra.mxu0 0.0
        %2509 = vmatprep.mubr.f32.mxu0 0.0
        %2510 = vmatmul.mubr.f32.gmra.mrb[0].mxu0 %v2434
        %v2511 = vpop.f32.mrb[0].mxu0
        %v2512 = vadd.f32 0.0, %v2511
        %v2513 = vpop.f32.mrb[0].mxu0
        %2514 = vmatprep.mubr.f32.mxu0 0.0
        %2515 = vmatmul.mubr.f32.gmra.mrb[0].mxu0 %v2437
        %v2516 = vpop.f32.mrb[0].mxu0
        %v2517 = vadd.f32 0.0, %v2516
        %v2518 = vpop.f32.mrb[0].mxu0
        %2519 = vmatprep.mubr.f32.mxu0 0.0
        %2520 = vmatmul.mubr.f32.gmra.mrb[0].mxu0 %v2440
        %v2521 = vpop.f32.mrb[0].mxu0
        %v2522 = vadd.f32 0.0, %v2521
        %v2523 = vpop.f32.mrb[0].mxu0
        %2524 = vmatprep.mubr.f32.mxu0 0.0
        %2525 = vmatmul.mubr.f32.gmra.mrb[0].mxu0 %v2443
        %v2526 = vpop.f32.mrb[0].mxu0
        %v2527 = vadd.f32 0.0, %v2526
        %v2528 = vpop.f32.mrb[0].mxu0
        %2529 = vdwg.mxu0
        %v2531 = vsel %vm1138, %v2512, 0
        %v2534 = vsel %vm1138, %v2517, 0
        %v2537 = vsel %vm1138, %v2522, 0
        %v2540 = vsel %vm1138, %v2527, 0
        %2542 = vmatprep.subr.mxu0 0.0
        %2543 = vmatpush1.msra.mxu0 %v1130
        %2544 = vmatprep.subr.mxu0 0.0
        %2545 = vmatpush1.msra.mxu0 %v1131
        %2546 = vmatprep.subr.mxu0 0.0
        %2547 = vmatpush1.msra.mxu0 %v1132
        %2548 = vmatprep.subr.mxu0 0.0
        %2549 = vmatpush1.msra.mxu0 %v1133
        %2550 = vmatprep.subr.mxu0 0.0
        %2551 = vmatpush1.msra.mxu0 0.0
        %2552 = vmatprep.subr.mxu0 0.0
        %2553 = vmatpush1.msra.mxu0 0.0
        %2554 = vmatprep.subr.mxu0 0.0
        %2555 = vmatpush1.msra.mxu0 0.0
        %2556 = vmatprep.subr.mxu0 0.0
        %2557 = vmatpush1.msra.mxu0 0.0
        %2558 = vmatprep.subr.mxu0 0.0
        %2559 = vmatpush1.msra.mxu0 0.0
        %2560 = vmatprep.subr.mxu0 0.0
        %2561 = vmatpush1.msra.mxu0 0.0
        %2562 = vmatprep.subr.mxu0 0.0
        %2563 = vmatpush1.msra.mxu0 0.0
        %2564 = vmatprep.subr.mxu0 0.0
        %2565 = vmatpush1.msra.mxu0 0.0
        %2566 = vmatprep.subr.mxu0 0.0
        %2567 = vmatpush1.msra.mxu0 0.0
        %2568 = vmatprep.subr.mxu0 0.0
        %2569 = vmatpush1.msra.mxu0 0.0
        %2570 = vmatprep.subr.mxu0 0.0
        %2571 = vmatpush1.msra.mxu0 0.0
        %2572 = vmatprep.subr.mxu0 0.0
        %2573 = vmatpush1.msra.mxu0 0.0
        %2574 = vmatprep.subr.mxu0 0.0
        %2575 = vmatpush1.msra.mxu0 0.0
        %2576 = vmatprep.subr.mxu0 0.0
        %2577 = vmatpush1.msra.mxu0 0.0
        %2578 = vmatprep.subr.mxu0 0.0
        %2579 = vmatpush1.msra.mxu0 0.0
        %2580 = vmatprep.subr.mxu0 0.0
        %2581 = vmatpush1.msra.mxu0 0.0
        %2582 = vmatprep.subr.mxu0 0.0
        %2583 = vmatpush1.msra.mxu0 0.0
        %2584 = vmatprep.subr.mxu0 0.0
        %2585 = vmatpush1.msra.mxu0 0.0
        %2586 = vmatprep.subr.mxu0 0.0
        %2587 = vmatpush1.msra.mxu0 0.0
        %2588 = vmatprep.subr.mxu0 0.0
        %2589 = vmatpush1.msra.mxu0 0.0
        %2590 = vmatprep.subr.mxu0 0.0
        %2591 = vmatpush1.msra.mxu0 0.0
        %2592 = vmatprep.subr.mxu0 0.0
        %2593 = vmatpush1.msra.mxu0 0.0
        %2594 = vmatprep.subr.mxu0 0.0
        %2595 = vmatpush1.msra.mxu0 0.0
        %2596 = vmatprep.subr.mxu0 0.0
        %2597 = vmatpush1.msra.mxu0 0.0
        %2598 = vmatprep.subr.mxu0 0.0
        %2599 = vmatpush1.msra.mxu0 0.0
        %2600 = vmatprep.subr.mxu0 0.0
        %2601 = vmatpush1.msra.mxu0 0.0
        %2602 = vmatprep.subr.mxu0 0.0
        %2603 = vmatpush1.msra.mxu0 0.0
        %2604 = vmatprep.subr.mxu0 0.0
        %2605 = vmatpush1.msra.mxu0 0.0
        %2606 = vmatprep.mubr.f32.mxu0 0.0
        %2607 = vmatmul.mubr.f32.gmra.mrb[0].mxu0 %v2531
        %v2608 = vpop.f32.mrb[0].mxu0
        %v2609 = vadd.f32 0.0, %v2608
        %v2610 = vpop.f32.mrb[0].mxu0
        %2611 = vmatprep.mubr.f32.mxu0 0.0
        %2612 = vmatmul.mubr.f32.gmra.mrb[0].mxu0 %v2534
        %v2613 = vpop.f32.mrb[0].mxu0
        %v2614 = vadd.f32 0.0, %v2613
        %v2615 = vpop.f32.mrb[0].mxu0
        %2616 = vmatprep.mubr.f32.mxu0 0.0
        %2617 = vmatmul.mubr.f32.gmra.mrb[0].mxu0 %v2537
        %v2618 = vpop.f32.mrb[0].mxu0
        %v2619 = vadd.f32 0.0, %v2618
        %v2620 = vpop.f32.mrb[0].mxu0
        %2621 = vmatprep.mubr.f32.mxu0 0.0
        %2622 = vmatmul.mubr.f32.gmra.mrb[0].mxu0 %v2540
        %v2623 = vpop.f32.mrb[0].mxu0
        %v2624 = vadd.f32 0.0, %v2623
        %v2625 = vpop.f32.mrb[0].mxu0
        %2626 = vdwg.mxu0
        %v2627 = vadd.f32 %v2248, %v2609
        %v2628 = vadd.f32 %v2249, %v2614
        %v2629 = vadd.f32 %v2250, %v2619
        %v2630 = vadd.f32 %v2251, %v2624
        %v2631 = vld [vmem:[%s776] sm:$0x1]
        %v2633 = vlaneseq
        %v2634 = vshrl.u32 %v2633, 7
        %v2635 = vsub.s32 0, %v2634
        %v2636 = vrot.slane %v2631, %v2635
        %v2638 = vadd.f32 %v2627, %v2636
        %v2639 = vadd.f32 %v2628, %v2636
        %v2640 = vadd.f32 %v2629, %v2636
        %v2641 = vadd.f32 %v2630, %v2636
        %v2642 = vadd.f32 %v875, %v2638
        %v2643 = vadd.f32 %v876, %v2639
        %v2644 = vadd.f32 %v877, %v2640
        %v2645 = vadd.f32 %v878, %v2641
        %v2646 = vld [vmem:[%s779] sm:$0x1]
        %v2647 = vld [vmem:[%s782] sm:$0x1]
        %2648 = vadd.xlane.f32.xlu0 %v2642
        %v2649 = vpop.xlane.xlu0 %2648
        %2650 = vadd.xlane.f32.xlu0 %v2643
        %v2651 = vpop.xlane.xlu0 %2650
        %2652 = vadd.xlane.f32.xlu0 %v2644
        %v2653 = vpop.xlane.xlu0 %2652
        %2654 = vadd.xlane.f32.xlu0 %v2645
        %v2655 = vpop.xlane.xlu0 %2654
        %v2656 = vrcp.pop 128.0
        %v2657 = vmul.f32 %v2649, %v2656
        %v2658 = vmul.f32 %v2651, %v2656
        %v2659 = vmul.f32 %v2653, %v2656
        %v2660 = vmul.f32 %v2655, %v2656
        %v2661 = vsub.f32 %v2642, %v2657
        %v2662 = vsub.f32 %v2643, %v2658
        %v2663 = vsub.f32 %v2644, %v2659
        %v2664 = vsub.f32 %v2645, %v2660
        %v2665 = vmul.f32 %v2661, %v2661
        %v2666 = vmul.f32 %v2662, %v2662
        %v2667 = vmul.f32 %v2663, %v2663
        %v2668 = vmul.f32 %v2664, %v2664
        %2669 = vadd.xlane.f32.xlu0 %v2665
        %v2670 = vpop.xlane.xlu0 %2669
        %2671 = vadd.xlane.f32.xlu0 %v2666
        %v2672 = vpop.xlane.xlu0 %2671
        %2673 = vadd.xlane.f32.xlu0 %v2667
        %v2674 = vpop.xlane.xlu0 %2673
        %2675 = vadd.xlane.f32.xlu0 %v2668
        %v2676 = vpop.xlane.xlu0 %2675
        %v2677 = vmul.f32 %v2670, %v2656
        %v2678 = vmul.f32 %v2672, %v2656
        %v2679 = vmul.f32 %v2674, %v2656
        %v2680 = vmul.f32 %v2676, %v2656
        %v2681 = vadd.f32 %v2677, 1e-12
        %v2682 = vadd.f32 %v2678, 1e-12
        %v2683 = vadd.f32 %v2679, 1e-12
        %v2684 = vadd.f32 %v2680, 1e-12
        %v2685 = vrsqrt.pop %v2681
        %v2686 = vrsqrt.pop %v2682
        %v2687 = vrsqrt.pop %v2683
        %v2688 = vrsqrt.pop %v2684
        %v2689 = vmul.f32 %v2661, %v2685
        %v2690 = vmul.f32 %v2662, %v2686
        %v2691 = vmul.f32 %v2663, %v2687
        %v2692 = vmul.f32 %v2664, %v2688
        %v2694 = vlaneseq
        %v2695 = vshrl.u32 %v2694, 7
        %v2696 = vsub.s32 0, %v2695
        %v2697 = vrot.slane %v2646, %v2696
        %v2699 = vmul.f32 %v2689, %v2697
        %v2700 = vmul.f32 %v2690, %v2697
        %v2701 = vmul.f32 %v2691, %v2697
        %v2702 = vmul.f32 %v2692, %v2697
        %v2704 = vlaneseq
        %v2705 = vshrl.u32 %v2704, 7
        %v2706 = vsub.s32 0, %v2705
        %v2707 = vrot.slane %v2647, %v2706
        %v2709 = vadd.f32 %v2699, %v2707
        %v2710 = vadd.f32 %v2700, %v2707
        %v2711 = vadd.f32 %v2701, %v2707
        %v2712 = vadd.f32 %v2702, %v2707
        %v2713 = vld [vmem:[%s667] sm:$0xff]
        %v2714 = vld [vmem:[%s667 + $0x8] sm:$0xff]
        %v2715 = vld [vmem:[%s667 + $0x10] sm:$0xff]
        %v2716 = vld [vmem:[%s667 + $0x18] sm:$0xff]
        %v2717 = vld [vmem:[%s667 + $0x20] sm:$0xff]
        %v2718 = vld [vmem:[%s667 + $0x28] sm:$0xff]
        %v2719 = vld [vmem:[%s667 + $0x30] sm:$0xff]
        %v2720 = vld [vmem:[%s667 + $0x38] sm:$0xff]
        %v2721 = vld [vmem:[%s667 + $0x40] sm:$0xff]
        %v2722 = vld [vmem:[%s667 + $0x48] sm:$0xff]
        %v2723 = vld [vmem:[%s667 + $0x50] sm:$0xff]
        %v2724 = vld [vmem:[%s667 + $0x58] sm:$0xff]
        %v2725 = vld [vmem:[%s667 + $0x60] sm:$0xff]
        %v2726 = vld [vmem:[%s667 + $0x68] sm:$0xff]
        %v2727 = vld [vmem:[%s667 + $0x70] sm:$0xff]
        %v2728 = vld [vmem:[%s667 + $0x78] sm:$0xff]
        %v2729 = vld [vmem:[%s667 + $0x80] sm:$0xff]
        %v2730 = vld [vmem:[%s667 + $0x88] sm:$0xff]
        %v2731 = vld [vmem:[%s667 + $0x90] sm:$0xff]
        %v2732 = vld [vmem:[%s667 + $0x98] sm:$0xff]
        %v2733 = vld [vmem:[%s667 + $0xa0] sm:$0xff]
        %v2734 = vld [vmem:[%s667 + $0xa8] sm:$0xff]
        %v2735 = vld [vmem:[%s667 + $0xb0] sm:$0xff]
        %v2736 = vld [vmem:[%s667 + $0xb8] sm:$0xff]
        %v2737 = vld [vmem:[%s667 + $0xc0] sm:$0xff]
        %v2738 = vld [vmem:[%s667 + $0xc8] sm:$0xff]
        %v2739 = vld [vmem:[%s667 + $0xd0] sm:$0xff]
        %v2740 = vld [vmem:[%s667 + $0xd8] sm:$0xff]
        %v2741 = vld [vmem:[%s667 + $0xe0] sm:$0xff]
        %v2742 = vld [vmem:[%s667 + $0xe8] sm:$0xff]
        %v2743 = vld [vmem:[%s667 + $0xf0] sm:$0xff]
        %v2744 = vld [vmem:[%s667 + $0xf8] sm:$0xff]
        %v2745 = vld [vmem:[%s667 + $0x100] sm:$0xff]
        %v2746 = vld [vmem:[%s667 + $0x108] sm:$0xff]
        %v2747 = vld [vmem:[%s667 + $0x110] sm:$0xff]
        %v2748 = vld [vmem:[%s667 + $0x118] sm:$0xff]
        %v2749 = vld [vmem:[%s667 + $0x120] sm:$0xff]
        %v2750 = vld [vmem:[%s667 + $0x128] sm:$0xff]
        %v2751 = vld [vmem:[%s667 + $0x130] sm:$0xff]
        %v2752 = vld [vmem:[%s667 + $0x138] sm:$0xff]
        %v2753 = vld [vmem:[%s667 + $0x140] sm:$0xff]
        %v2754 = vld [vmem:[%s667 + $0x148] sm:$0xff]
        %v2755 = vld [vmem:[%s667 + $0x150] sm:$0xff]
        %v2756 = vld [vmem:[%s667 + $0x158] sm:$0xff]
        %v2757 = vld [vmem:[%s667 + $0x160] sm:$0xff]
        %v2758 = vld [vmem:[%s667 + $0x168] sm:$0xff]
        %v2759 = vld [vmem:[%s667 + $0x170] sm:$0xff]
        %v2760 = vld [vmem:[%s667 + $0x178] sm:$0xff]
        %v2761 = vld [vmem:[%s667 + $0x180] sm:$0xff]
        %v2762 = vld [vmem:[%s667 + $0x188] sm:$0xff]
        %v2763 = vld [vmem:[%s667 + $0x190] sm:$0xff]
        %v2764 = vld [vmem:[%s667 + $0x198] sm:$0xff]
        %v2765 = vld [vmem:[%s667 + $0x1a0] sm:$0xff]
        %v2766 = vld [vmem:[%s667 + $0x1a8] sm:$0xff]
        %v2767 = vld [vmem:[%s667 + $0x1b0] sm:$0xff]
        %v2768 = vld [vmem:[%s667 + $0x1b8] sm:$0xff]
        %v2769 = vld [vmem:[%s667 + $0x1c0] sm:$0xff]
        %v2770 = vld [vmem:[%s667 + $0x1c8] sm:$0xff]
        %v2771 = vld [vmem:[%s667 + $0x1d0] sm:$0xff]
        %v2772 = vld [vmem:[%s667 + $0x1d8] sm:$0xff]
        %v2773 = vld [vmem:[%s667 + $0x1e0] sm:$0xff]
        %v2774 = vld [vmem:[%s667 + $0x1e8] sm:$0xff]
        %v2775 = vld [vmem:[%s667 + $0x1f0] sm:$0xff]
        %v2776 = vld [vmem:[%s667 + $0x1f8] sm:$0xff]
        %v2777 = vld [vmem:[%s786] sm:$0xf]
        %v2779 = vlaneseq
        %v2780 = vshrl.u32 %v2779, 7
        %v2781 = vsub.s32 0, %v2780
        %v2782 = vrot.slane %v2777, %v2781
        %v2783 = vlaneseq
        %v2784 = vshrl.u32 %v2783, 7
        %v2785 = vsub.s32 1, %v2784
        %v2786 = vrot.slane %v2777, %v2785
        %v2787 = vlaneseq
        %v2788 = vshrl.u32 %v2787, 7
        %v2789 = vsub.s32 2, %v2788
        %v2790 = vrot.slane %v2777, %v2789
        %v2791 = vlaneseq
        %v2792 = vshrl.u32 %v2791, 7
        %v2793 = vsub.s32 3, %v2792
        %v2794 = vrot.slane %v2777, %v2793
        %2799 = vmatprep.subr.mxu0 %v2714
        %2800 = vmatpush1.msra.mxu0 %v2713
        %2801 = vmatprep.subr.mxu0 %v2718
        %2802 = vmatpush1.msra.mxu0 %v2717
        %2803 = vmatprep.subr.mxu0 %v2722
        %2804 = vmatpush1.msra.mxu0 %v2721
        %2805 = vmatprep.subr.mxu0 %v2726
        %2806 = vmatpush1.msra.mxu0 %v2725
        %2807 = vmatprep.subr.mxu0 %v2730
        %2808 = vmatpush1.msra.mxu0 %v2729
        %2809 = vmatprep.subr.mxu0 %v2734
        %2810 = vmatpush1.msra.mxu0 %v2733
        %2811 = vmatprep.subr.mxu0 %v2738
        %2812 = vmatpush1.msra.mxu0 %v2737
        %2813 = vmatprep.subr.mxu0 %v2742
        %2814 = vmatpush1.msra.mxu0 %v2741
        %2815 = vmatprep.subr.mxu0 %v2746
        %2816 = vmatpush1.msra.mxu0 %v2745
        %2817 = vmatprep.subr.mxu0 %v2750
        %2818 = vmatpush1.msra.mxu0 %v2749
        %2819 = vmatprep.subr.mxu0 %v2754
        %2820 = vmatpush1.msra.mxu0 %v2753
        %2821 = vmatprep.subr.mxu0 %v2758
        %2822 = vmatpush1.msra.mxu0 %v2757
        %2823 = vmatprep.subr.mxu0 %v2762
        %2824 = vmatpush1.msra.mxu0 %v2761
        %2825 = vmatprep.subr.mxu0 %v2766
        %2826 = vmatpush1.msra.mxu0 %v2765
        %2827 = vmatprep.subr.mxu0 %v2770
        %2828 = vmatpush1.msra.mxu0 %v2769
        %2829 = vmatprep.subr.mxu0 %v2774
        %2830 = vmatpush1.msra.mxu0 %v2773
        %2831 = vmatprep.subr.mxu0 0.0
        %2832 = vmatpush1.msra.mxu0 0.0
        %2833 = vmatprep.subr.mxu0 0.0
        %2834 = vmatpush1.msra.mxu0 0.0
        %2835 = vmatprep.subr.mxu0 0.0
        %2836 = vmatpush1.msra.mxu0 0.0
        %2837 = vmatprep.subr.mxu0 0.0
        %2838 = vmatpush1.msra.mxu0 0.0
        %2839 = vmatprep.subr.mxu0 0.0
        %2840 = vmatpush1.msra.mxu0 0.0
        %2841 = vmatprep.subr.mxu0 0.0
        %2842 = vmatpush1.msra.mxu0 0.0
        %2843 = vmatprep.subr.mxu0 0.0
        %2844 = vmatpush1.msra.mxu0 0.0
        %2845 = vmatprep.subr.mxu0 0.0
        %2846 = vmatpush1.msra.mxu0 0.0
        %2847 = vmatprep.subr.mxu0 0.0
        %2848 = vmatpush1.msra.mxu0 0.0
        %2849 = vmatprep.subr.mxu0 0.0
        %2850 = vmatpush1.msra.mxu0 0.0
        %2851 = vmatprep.subr.mxu0 0.0
        %2852 = vmatpush1.msra.mxu0 0.0
        %2853 = vmatprep.subr.mxu0 0.0
        %2854 = vmatpush1.msra.mxu0 0.0
        %2855 = vmatprep.subr.mxu0 0.0
        %2856 = vmatpush1.msra.mxu0 0.0
        %2857 = vmatprep.subr.mxu0 0.0
        %2858 = vmatpush1.msra.mxu0 0.0
        %2859 = vmatprep.subr.mxu0 0.0
        %2860 = vmatpush1.msra.mxu0 0.0
        %2861 = vmatprep.subr.mxu0 0.0
        %2862 = vmatpush1.msra.mxu0 0.0
        %2863 = vmatprep.mubr.f32.mxu0 0.0
        %2864 = vmatmul.mubr.f32.gmra.mrb[0].mxu0 %v2709
        %v2865 = vpop.f32.mrb[0].mxu0
        %v2866 = vadd.f32 %v2782, %v2865
        %v2867 = vpop.f32.mrb[0].mxu0
        %v2868 = vadd.f32 %v2786, %v2867
        %2869 = vmatprep.mubr.f32.mxu0 0.0
        %2870 = vmatmul.mubr.f32.gmra.mrb[0].mxu0 %v2710
        %v2871 = vpop.f32.mrb[0].mxu0
        %v2872 = vadd.f32 %v2782, %v2871
        %v2873 = vpop.f32.mrb[0].mxu0
        %v2874 = vadd.f32 %v2786, %v2873
        %2875 = vmatprep.mubr.f32.mxu0 0.0
        %2876 = vmatmul.mubr.f32.gmra.mrb[0].mxu0 %v2711
        %v2877 = vpop.f32.mrb[0].mxu0
        %v2878 = vadd.f32 %v2782, %v2877
        %v2879 = vpop.f32.mrb[0].mxu0
        %v2880 = vadd.f32 %v2786, %v2879
        %2881 = vmatprep.mubr.f32.mxu0 0.0
        %2882 = vmatmul.mubr.f32.gmra.mrb[0].mxu0 %v2712
        %v2883 = vpop.f32.mrb[0].mxu0
        %v2884 = vadd.f32 %v2782, %v2883
        %v2885 = vpop.f32.mrb[0].mxu0
        %v2886 = vadd.f32 %v2786, %v2885
        %2887 = vdwg.mxu0
        %2888 = vmatprep.subr.mxu0 %v2716
        %2889 = vmatpush1.msra.mxu0 %v2715
        %2890 = vmatprep.subr.mxu0 %v2720
        %2891 = vmatpush1.msra.mxu0 %v2719
        %2892 = vmatprep.subr.mxu0 %v2724
        %2893 = vmatpush1.msra.mxu0 %v2723
        %2894 = vmatprep.subr.mxu0 %v2728
        %2895 = vmatpush1.msra.mxu0 %v2727
        %2896 = vmatprep.subr.mxu0 %v2732
        %2897 = vmatpush1.msra.mxu0 %v2731
        %2898 = vmatprep.subr.mxu0 %v2736
        %2899 = vmatpush1.msra.mxu0 %v2735
        %2900 = vmatprep.subr.mxu0 %v2740
        %2901 = vmatpush1.msra.mxu0 %v2739
        %2902 = vmatprep.subr.mxu0 %v2744
        %2903 = vmatpush1.msra.mxu0 %v2743
        %2904 = vmatprep.subr.mxu0 %v2748
        %2905 = vmatpush1.msra.mxu0 %v2747
        %2906 = vmatprep.subr.mxu0 %v2752
        %2907 = vmatpush1.msra.mxu0 %v2751
        %2908 = vmatprep.subr.mxu0 %v2756
        %2909 = vmatpush1.msra.mxu0 %v2755
        %2910 = vmatprep.subr.mxu0 %v2760
        %2911 = vmatpush1.msra.mxu0 %v2759
        %2912 = vmatprep.subr.mxu0 %v2764
        %2913 = vmatpush1.msra.mxu0 %v2763
        %2914 = vmatprep.subr.mxu0 %v2768
        %2915 = vmatpush1.msra.mxu0 %v2767
        %2916 = vmatprep.subr.mxu0 %v2772
        %2917 = vmatpush1.msra.mxu0 %v2771
        %2918 = vmatprep.subr.mxu0 %v2776
        %2919 = vmatpush1.msra.mxu0 %v2775
        %2920 = vmatprep.subr.mxu0 0.0
        %2921 = vmatpush1.msra.mxu0 0.0
        %2922 = vmatprep.subr.mxu0 0.0
        %2923 = vmatpush1.msra.mxu0 0.0
        %2924 = vmatprep.subr.mxu0 0.0
        %2925 = vmatpush1.msra.mxu0 0.0
        %2926 = vmatprep.subr.mxu0 0.0
        %2927 = vmatpush1.msra.mxu0 0.0
        %2928 = vmatprep.subr.mxu0 0.0
        %2929 = vmatpush1.msra.mxu0 0.0
        %2930 = vmatprep.subr.mxu0 0.0
        %2931 = vmatpush1.msra.mxu0 0.0
        %2932 = vmatprep.subr.mxu0 0.0
        %2933 = vmatpush1.msra.mxu0 0.0
        %2934 = vmatprep.subr.mxu0 0.0
        %2935 = vmatpush1.msra.mxu0 0.0
        %2936 = vmatprep.subr.mxu0 0.0
        %2937 = vmatpush1.msra.mxu0 0.0
        %2938 = vmatprep.subr.mxu0 0.0
        %2939 = vmatpush1.msra.mxu0 0.0
        %2940 = vmatprep.subr.mxu0 0.0
        %2941 = vmatpush1.msra.mxu0 0.0
        %2942 = vmatprep.subr.mxu0 0.0
        %2943 = vmatpush1.msra.mxu0 0.0
        %2944 = vmatprep.subr.mxu0 0.0
        %2945 = vmatpush1.msra.mxu0 0.0
        %2946 = vmatprep.subr.mxu0 0.0
        %2947 = vmatpush1.msra.mxu0 0.0
        %2948 = vmatprep.subr.mxu0 0.0
        %2949 = vmatpush1.msra.mxu0 0.0
        %2950 = vmatprep.subr.mxu0 0.0
        %2951 = vmatpush1.msra.mxu0 0.0
        %2952 = vmatprep.mubr.f32.mxu0 0.0
        %2953 = vmatmul.mubr.f32.gmra.mrb[0].mxu0 %v2709
        %v2954 = vpop.f32.mrb[0].mxu0
        %v2955 = vadd.f32 %v2790, %v2954
        %v2956 = vpop.f32.mrb[0].mxu0
        %v2957 = vadd.f32 %v2794, %v2956
        %2958 = vmatprep.mubr.f32.mxu0 0.0
        %2959 = vmatmul.mubr.f32.gmra.mrb[0].mxu0 %v2710
        %v2960 = vpop.f32.mrb[0].mxu0
        %v2961 = vadd.f32 %v2790, %v2960
        %v2962 = vpop.f32.mrb[0].mxu0
        %v2963 = vadd.f32 %v2794, %v2962
        %2964 = vmatprep.mubr.f32.mxu0 0.0
        %2965 = vmatmul.mubr.f32.gmra.mrb[0].mxu0 %v2711
        %v2966 = vpop.f32.mrb[0].mxu0
        %v2967 = vadd.f32 %v2790, %v2966
        %v2968 = vpop.f32.mrb[0].mxu0
        %v2969 = vadd.f32 %v2794, %v2968
        %2970 = vmatprep.mubr.f32.mxu0 0.0
        %2971 = vmatmul.mubr.f32.gmra.mrb[0].mxu0 %v2712
        %v2972 = vpop.f32.mrb[0].mxu0
        %v2973 = vadd.f32 %v2790, %v2972
        %v2974 = vpop.f32.mrb[0].mxu0
        %v2975 = vadd.f32 %v2794, %v2974
        %2976 = vdwg.mxu0
        %v2977 = vmul.f32 %v2866, %v2866
        %v2978 = vmul.f32 %v2868, %v2868
        %v2979 = vmul.f32 %v2955, %v2955
        %v2980 = vmul.f32 %v2957, %v2957
        %v2981 = vmul.f32 %v2872, %v2872
        %v2982 = vmul.f32 %v2874, %v2874
        %v2983 = vmul.f32 %v2961, %v2961
        %v2984 = vmul.f32 %v2963, %v2963
        %v2985 = vmul.f32 %v2878, %v2878
        %v2986 = vmul.f32 %v2880, %v2880
        %v2987 = vmul.f32 %v2967, %v2967
        %v2988 = vmul.f32 %v2969, %v2969
        %v2989 = vmul.f32 %v2884, %v2884
        %v2990 = vmul.f32 %v2886, %v2886
        %v2991 = vmul.f32 %v2973, %v2973
        %v2992 = vmul.f32 %v2975, %v2975
        %v2993 = vmul.f32 %v2866, %v2977
        %v2994 = vmul.f32 %v2868, %v2978
        %v2995 = vmul.f32 %v2955, %v2979
        %v2996 = vmul.f32 %v2957, %v2980
        %v2997 = vmul.f32 %v2872, %v2981
        %v2998 = vmul.f32 %v2874, %v2982
        %v2999 = vmul.f32 %v2961, %v2983
        %v3000 = vmul.f32 %v2963, %v2984
        %v3001 = vmul.f32 %v2878, %v2985
        %v3002 = vmul.f32 %v2880, %v2986
        %v3003 = vmul.f32 %v2967, %v2987
        %v3004 = vmul.f32 %v2969, %v2988
        %v3005 = vmul.f32 %v2884, %v2989
        %v3006 = vmul.f32 %v2886, %v2990
        %v3007 = vmul.f32 %v2973, %v2991
        %v3008 = vmul.f32 %v2975, %v2992
        %v3009 = vmul.f32 %v2993, 0.044715
        %v3010 = vmul.f32 %v2994, 0.044715
        %v3011 = vmul.f32 %v2995, 0.044715
        %v3012 = vmul.f32 %v2996, 0.044715
        %v3013 = vmul.f32 %v2997, 0.044715
        %v3014 = vmul.f32 %v2998, 0.044715
        %v3015 = vmul.f32 %v2999, 0.044715
        %v3016 = vmul.f32 %v3000, 0.044715
        %v3017 = vmul.f32 %v3001, 0.044715
        %v3018 = vmul.f32 %v3002, 0.044715
        %v3019 = vmul.f32 %v3003, 0.044715
        %v3020 = vmul.f32 %v3004, 0.044715
        %v3021 = vmul.f32 %v3005, 0.044715
        %v3022 = vmul.f32 %v3006, 0.044715
        %v3023 = vmul.f32 %v3007, 0.044715
        %v3024 = vmul.f32 %v3008, 0.044715
        %v3025 = vadd.f32 %v2866, %v3009
        %v3026 = vadd.f32 %v2868, %v3010
        %v3027 = vadd.f32 %v2955, %v3011
        %v3028 = vadd.f32 %v2957, %v3012
        %v3029 = vadd.f32 %v2872, %v3013
        %v3030 = vadd.f32 %v2874, %v3014
        %v3031 = vadd.f32 %v2961, %v3015
        %v3032 = vadd.f32 %v2963, %v3016
        %v3033 = vadd.f32 %v2878, %v3017
        %v3034 = vadd.f32 %v2880, %v3018
        %v3035 = vadd.f32 %v2967, %v3019
        %v3036 = vadd.f32 %v2969, %v3020
        %v3037 = vadd.f32 %v2884, %v3021
        %v3038 = vadd.f32 %v2886, %v3022
        %v3039 = vadd.f32 %v2973, %v3023
        %v3040 = vadd.f32 %v2975, %v3024
        %v3041 = vmul.f32 %v3025, 0.7978846
        %v3042 = vmul.f32 %v3026, 0.7978846
        %v3043 = vmul.f32 %v3027, 0.7978846
        %v3044 = vmul.f32 %v3028, 0.7978846
        %v3045 = vmul.f32 %v3029, 0.7978846
        %v3046 = vmul.f32 %v3030, 0.7978846
        %v3047 = vmul.f32 %v3031, 0.7978846
        %v3048 = vmul.f32 %v3032, 0.7978846
        %v3049 = vmul.f32 %v3033, 0.7978846
        %v3050 = vmul.f32 %v3034, 0.7978846
        %v3051 = vmul.f32 %v3035, 0.7978846
        %v3052 = vmul.f32 %v3036, 0.7978846
        %v3053 = vmul.f32 %v3037, 0.7978846
        %v3054 = vmul.f32 %v3038, 0.7978846
        %v3055 = vmul.f32 %v3039, 0.7978846
        %v3056 = vmul.f32 %v3040, 0.7978846
        %v3057 = vtanh.pop %v3041
        %v3058 = vtanh.pop %v3042
        %v3059 = vtanh.pop %v3043
        %v3060 = vtanh.pop %v3044
        %v3061 = vtanh.pop %v3045
        %v3062 = vtanh.pop %v3046
        %v3063 = vtanh.pop %v3047
        %v3064 = vtanh.pop %v3048
        %v3065 = vtanh.pop %v3049
        %v3066 = vtanh.pop %v3050
        %v3067 = vtanh.pop %v3051
        %v3068 = vtanh.pop %v3052
        %v3069 = vtanh.pop %v3053
        %v3070 = vtanh.pop %v3054
        %v3071 = vtanh.pop %v3055
        %v3072 = vtanh.pop %v3056
        %v3073 = vadd.f32 %v3057, 1.0
        %v3074 = vadd.f32 %v3058, 1.0
        %v3075 = vadd.f32 %v3059, 1.0
        %v3076 = vadd.f32 %v3060, 1.0
        %v3077 = vadd.f32 %v3061, 1.0
        %v3078 = vadd.f32 %v3062, 1.0
        %v3079 = vadd.f32 %v3063, 1.0
        %v3080 = vadd.f32 %v3064, 1.0
        %v3081 = vadd.f32 %v3065, 1.0
        %v3082 = vadd.f32 %v3066, 1.0
        %v3083 = vadd.f32 %v3067, 1.0
        %v3084 = vadd.f32 %v3068, 1.0
        %v3085 = vadd.f32 %v3069, 1.0
        %v3086 = vadd.f32 %v3070, 1.0
        %v3087 = vadd.f32 %v3071, 1.0
        %v3088 = vadd.f32 %v3072, 1.0
        %v3089 = vmul.f32 %v3073, 0.5
        %v3090 = vmul.f32 %v3074, 0.5
        %v3091 = vmul.f32 %v3075, 0.5
        %v3092 = vmul.f32 %v3076, 0.5
        %v3093 = vmul.f32 %v3077, 0.5
        %v3094 = vmul.f32 %v3078, 0.5
        %v3095 = vmul.f32 %v3079, 0.5
        %v3096 = vmul.f32 %v3080, 0.5
        %v3097 = vmul.f32 %v3081, 0.5
        %v3098 = vmul.f32 %v3082, 0.5
        %v3099 = vmul.f32 %v3083, 0.5
        %v3100 = vmul.f32 %v3084, 0.5
        %v3101 = vmul.f32 %v3085, 0.5
        %v3102 = vmul.f32 %v3086, 0.5
        %v3103 = vmul.f32 %v3087, 0.5
        %v3104 = vmul.f32 %v3088, 0.5
        %v3105 = vmul.f32 %v2866, %v3089
        %v3106 = vmul.f32 %v2868, %v3090
        %v3107 = vmul.f32 %v2955, %v3091
        %v3108 = vmul.f32 %v2957, %v3092
        %v3109 = vmul.f32 %v2872, %v3093
        %v3110 = vmul.f32 %v2874, %v3094
        %v3111 = vmul.f32 %v2961, %v3095
        %v3112 = vmul.f32 %v2963, %v3096
        %v3113 = vmul.f32 %v2878, %v3097
        %v3114 = vmul.f32 %v2880, %v3098
        %v3115 = vmul.f32 %v2967, %v3099
        %v3116 = vmul.f32 %v2969, %v3100
        %v3117 = vmul.f32 %v2884, %v3101
        %v3118 = vmul.f32 %v2886, %v3102
        %v3119 = vmul.f32 %v2973, %v3103
        %v3120 = vmul.f32 %v2975, %v3104
        %v3121 = vld [vmem:[%s676] sm:$0xff]
        %v3122 = vld [vmem:[%s676 + $0x8] sm:$0xff]
        %v3123 = vld [vmem:[%s676 + $0x10] sm:$0xff]
        %v3124 = vld [vmem:[%s676 + $0x18] sm:$0xff]
        %v3125 = vld [vmem:[%s676 + $0x20] sm:$0xff]
        %v3126 = vld [vmem:[%s676 + $0x28] sm:$0xff]
        %v3127 = vld [vmem:[%s676 + $0x30] sm:$0xff]
        %v3128 = vld [vmem:[%s676 + $0x38] sm:$0xff]
        %v3129 = vld [vmem:[%s676 + $0x40] sm:$0xff]
        %v3130 = vld [vmem:[%s676 + $0x48] sm:$0xff]
        %v3131 = vld [vmem:[%s676 + $0x50] sm:$0xff]
        %v3132 = vld [vmem:[%s676 + $0x58] sm:$0xff]
        %v3133 = vld [vmem:[%s676 + $0x60] sm:$0xff]
        %v3134 = vld [vmem:[%s676 + $0x68] sm:$0xff]
        %v3135 = vld [vmem:[%s676 + $0x70] sm:$0xff]
        %v3136 = vld [vmem:[%s676 + $0x78] sm:$0xff]
        %v3137 = vld [vmem:[%s676 + $0x80] sm:$0xff]
        %v3138 = vld [vmem:[%s676 + $0x88] sm:$0xff]
        %v3139 = vld [vmem:[%s676 + $0x90] sm:$0xff]
        %v3140 = vld [vmem:[%s676 + $0x98] sm:$0xff]
        %v3141 = vld [vmem:[%s676 + $0xa0] sm:$0xff]
        %v3142 = vld [vmem:[%s676 + $0xa8] sm:$0xff]
        %v3143 = vld [vmem:[%s676 + $0xb0] sm:$0xff]
        %v3144 = vld [vmem:[%s676 + $0xb8] sm:$0xff]
        %v3145 = vld [vmem:[%s676 + $0xc0] sm:$0xff]
        %v3146 = vld [vmem:[%s676 + $0xc8] sm:$0xff]
        %v3147 = vld [vmem:[%s676 + $0xd0] sm:$0xff]
        %v3148 = vld [vmem:[%s676 + $0xd8] sm:$0xff]
        %v3149 = vld [vmem:[%s676 + $0xe0] sm:$0xff]
        %v3150 = vld [vmem:[%s676 + $0xe8] sm:$0xff]
        %v3151 = vld [vmem:[%s676 + $0xf0] sm:$0xff]
        %v3152 = vld [vmem:[%s676 + $0xf8] sm:$0xff]
        %v3153 = vld [vmem:[%s676 + $0x100] sm:$0xff]
        %v3154 = vld [vmem:[%s676 + $0x108] sm:$0xff]
        %v3155 = vld [vmem:[%s676 + $0x110] sm:$0xff]
        %v3156 = vld [vmem:[%s676 + $0x118] sm:$0xff]
        %v3157 = vld [vmem:[%s676 + $0x120] sm:$0xff]
        %v3158 = vld [vmem:[%s676 + $0x128] sm:$0xff]
        %v3159 = vld [vmem:[%s676 + $0x130] sm:$0xff]
        %v3160 = vld [vmem:[%s676 + $0x138] sm:$0xff]
        %v3161 = vld [vmem:[%s676 + $0x140] sm:$0xff]
        %v3162 = vld [vmem:[%s676 + $0x148] sm:$0xff]
        %v3163 = vld [vmem:[%s676 + $0x150] sm:$0xff]
        %v3164 = vld [vmem:[%s676 + $0x158] sm:$0xff]
        %v3165 = vld [vmem:[%s676 + $0x160] sm:$0xff]
        %v3166 = vld [vmem:[%s676 + $0x168] sm:$0xff]
        %v3167 = vld [vmem:[%s676 + $0x170] sm:$0xff]
        %v3168 = vld [vmem:[%s676 + $0x178] sm:$0xff]
        %v3169 = vld [vmem:[%s676 + $0x180] sm:$0xff]
        %v3170 = vld [vmem:[%s676 + $0x188] sm:$0xff]
        %v3171 = vld [vmem:[%s676 + $0x190] sm:$0xff]
        %v3172 = vld [vmem:[%s676 + $0x198] sm:$0xff]
        %v3173 = vld [vmem:[%s676 + $0x1a0] sm:$0xff]
        %v3174 = vld [vmem:[%s676 + $0x1a8] sm:$0xff]
        %v3175 = vld [vmem:[%s676 + $0x1b0] sm:$0xff]
        %v3176 = vld [vmem:[%s676 + $0x1b8] sm:$0xff]
        %v3177 = vld [vmem:[%s676 + $0x1c0] sm:$0xff]
        %v3178 = vld [vmem:[%s676 + $0x1c8] sm:$0xff]
        %v3179 = vld [vmem:[%s676 + $0x1d0] sm:$0xff]
        %v3180 = vld [vmem:[%s676 + $0x1d8] sm:$0xff]
        %v3181 = vld [vmem:[%s676 + $0x1e0] sm:$0xff]
        %v3182 = vld [vmem:[%s676 + $0x1e8] sm:$0xff]
        %v3183 = vld [vmem:[%s676 + $0x1f0] sm:$0xff]
        %v3184 = vld [vmem:[%s676 + $0x1f8] sm:$0xff]
        %v3185 = vld [vmem:[%s789] sm:$0x1]
        %v3187 = vlaneseq
        %v3188 = vshrl.u32 %v3187, 7
        %v3189 = vsub.s32 0, %v3188
        %v3190 = vrot.slane %v3185, %v3189
        %3192 = vmatprep.subr.mxu0 0.0
        %3193 = vmatpush1.msra.mxu0 %v3121
        %3194 = vmatprep.subr.mxu0 0.0
        %3195 = vmatpush1.msra.mxu0 %v3122
        %3196 = vmatprep.subr.mxu0 0.0
        %3197 = vmatpush1.msra.mxu0 %v3123
        %3198 = vmatprep.subr.mxu0 0.0
        %3199 = vmatpush1.msra.mxu0 %v3124
        %3200 = vmatprep.subr.mxu0 0.0
        %3201 = vmatpush1.msra.mxu0 %v3125
        %3202 = vmatprep.subr.mxu0 0.0
        %3203 = vmatpush1.msra.mxu0 %v3126
        %3204 = vmatprep.subr.mxu0 0.0
        %3205 = vmatpush1.msra.mxu0 %v3127
        %3206 = vmatprep.subr.mxu0 0.0
        %3207 = vmatpush1.msra.mxu0 %v3128
        %3208 = vmatprep.subr.mxu0 0.0
        %3209 = vmatpush1.msra.mxu0 %v3129
        %3210 = vmatprep.subr.mxu0 0.0
        %3211 = vmatpush1.msra.mxu0 %v3130
        %3212 = vmatprep.subr.mxu0 0.0
        %3213 = vmatpush1.msra.mxu0 %v3131
        %3214 = vmatprep.subr.mxu0 0.0
        %3215 = vmatpush1.msra.mxu0 %v3132
        %3216 = vmatprep.subr.mxu0 0.0
        %3217 = vmatpush1.msra.mxu0 %v3133
        %3218 = vmatprep.subr.mxu0 0.0
        %3219 = vmatpush1.msra.mxu0 %v3134
        %3220 = vmatprep.subr.mxu0 0.0
        %3221 = vmatpush1.msra.mxu0 %v3135
        %3222 = vmatprep.subr.mxu0 0.0
        %3223 = vmatpush1.msra.mxu0 %v3136
        %3224 = vmatprep.subr.mxu0 0.0
        %3225 = vmatpush1.msra.mxu0 %v3137
        %3226 = vmatprep.subr.mxu0 0.0
        %3227 = vmatpush1.msra.mxu0 %v3138
        %3228 = vmatprep.subr.mxu0 0.0
        %3229 = vmatpush1.msra.mxu0 %v3139
        %3230 = vmatprep.subr.mxu0 0.0
        %3231 = vmatpush1.msra.mxu0 %v3140
        %3232 = vmatprep.subr.mxu0 0.0
        %3233 = vmatpush1.msra.mxu0 %v3141
        %3234 = vmatprep.subr.mxu0 0.0
        %3235 = vmatpush1.msra.mxu0 %v3142
        %3236 = vmatprep.subr.mxu0 0.0
        %3237 = vmatpush1.msra.mxu0 %v3143
        %3238 = vmatprep.subr.mxu0 0.0
        %3239 = vmatpush1.msra.mxu0 %v3144
        %3240 = vmatprep.subr.mxu0 0.0
        %3241 = vmatpush1.msra.mxu0 %v3145
        %3242 = vmatprep.subr.mxu0 0.0
        %3243 = vmatpush1.msra.mxu0 %v3146
        %3244 = vmatprep.subr.mxu0 0.0
        %3245 = vmatpush1.msra.mxu0 %v3147
        %3246 = vmatprep.subr.mxu0 0.0
        %3247 = vmatpush1.msra.mxu0 %v3148
        %3248 = vmatprep.subr.mxu0 0.0
        %3249 = vmatpush1.msra.mxu0 %v3149
        %3250 = vmatprep.subr.mxu0 0.0
        %3251 = vmatpush1.msra.mxu0 %v3150
        %3252 = vmatprep.subr.mxu0 0.0
        %3253 = vmatpush1.msra.mxu0 %v3151
        %3254 = vmatprep.subr.mxu0 0.0
        %3255 = vmatpush1.msra.mxu0 %v3152
        %3256 = vmatprep.mubr.f32.mxu0 %v3106
        %3257 = vmatmul.mubr.f32.gmra.mrb[0].mxu0 %v3105
        %v3258 = vpop.f32.mrb[0].mxu0
        %v3259 = vadd.f32 %v3190, %v3258
        %v3260 = vpop.f32.mrb[0].mxu0
        %3261 = vmatprep.mubr.f32.mxu0 %v3110
        %3262 = vmatmul.mubr.f32.gmra.mrb[0].mxu0 %v3109
        %v3263 = vpop.f32.mrb[0].mxu0
        %v3264 = vadd.f32 %v3190, %v3263
        %v3265 = vpop.f32.mrb[0].mxu0
        %3266 = vmatprep.mubr.f32.mxu0 %v3114
        %3267 = vmatmul.mubr.f32.gmra.mrb[0].mxu0 %v3113
        %v3268 = vpop.f32.mrb[0].mxu0
        %v3269 = vadd.f32 %v3190, %v3268
        %v3270 = vpop.f32.mrb[0].mxu0
        %3271 = vmatprep.mubr.f32.mxu0 %v3118
        %3272 = vmatmul.mubr.f32.gmra.mrb[0].mxu0 %v3117
        %v3273 = vpop.f32.mrb[0].mxu0
        %v3274 = vadd.f32 %v3190, %v3273
        %v3275 = vpop.f32.mrb[0].mxu0
        %3276 = vdwg.mxu0
        %3277 = vmatprep.subr.mxu0 0.0
        %3278 = vmatpush1.msra.mxu0 %v3153
        %3279 = vmatprep.subr.mxu0 0.0
        %3280 = vmatpush1.msra.mxu0 %v3154
        %3281 = vmatprep.subr.mxu0 0.0
        %3282 = vmatpush1.msra.mxu0 %v3155
        %3283 = vmatprep.subr.mxu0 0.0
        %3284 = vmatpush1.msra.mxu0 %v3156
        %3285 = vmatprep.subr.mxu0 0.0
        %3286 = vmatpush1.msra.mxu0 %v3157
        %3287 = vmatprep.subr.mxu0 0.0
        %3288 = vmatpush1.msra.mxu0 %v3158
        %3289 = vmatprep.subr.mxu0 0.0
        %3290 = vmatpush1.msra.mxu0 %v3159
        %3291 = vmatprep.subr.mxu0 0.0
        %3292 = vmatpush1.msra.mxu0 %v3160
        %3293 = vmatprep.subr.mxu0 0.0
        %3294 = vmatpush1.msra.mxu0 %v3161
        %3295 = vmatprep.subr.mxu0 0.0
        %3296 = vmatpush1.msra.mxu0 %v3162
        %3297 = vmatprep.subr.mxu0 0.0
        %3298 = vmatpush1.msra.mxu0 %v3163
        %3299 = vmatprep.subr.mxu0 0.0
        %3300 = vmatpush1.msra.mxu0 %v3164
        %3301 = vmatprep.subr.mxu0 0.0
        %3302 = vmatpush1.msra.mxu0 %v3165
        %3303 = vmatprep.subr.mxu0 0.0
        %3304 = vmatpush1.msra.mxu0 %v3166
        %3305 = vmatprep.subr.mxu0 0.0
        %3306 = vmatpush1.msra.mxu0 %v3167
        %3307 = vmatprep.subr.mxu0 0.0
        %3308 = vmatpush1.msra.mxu0 %v3168
        %3309 = vmatprep.subr.mxu0 0.0
        %3310 = vmatpush1.msra.mxu0 %v3169
        %3311 = vmatprep.subr.mxu0 0.0
        %3312 = vmatpush1.msra.mxu0 %v3170
        %3313 = vmatprep.subr.mxu0 0.0
        %3314 = vmatpush1.msra.mxu0 %v3171
        %3315 = vmatprep.subr.mxu0 0.0
        %3316 = vmatpush1.msra.mxu0 %v3172
        %3317 = vmatprep.subr.mxu0 0.0
        %3318 = vmatpush1.msra.mxu0 %v3173
        %3319 = vmatprep.subr.mxu0 0.0
        %3320 = vmatpush1.msra.mxu0 %v3174
        %3321 = vmatprep.subr.mxu0 0.0
        %3322 = vmatpush1.msra.mxu0 %v3175
        %3323 = vmatprep.subr.mxu0 0.0
        %3324 = vmatpush1.msra.mxu0 %v3176
        %3325 = vmatprep.subr.mxu0 0.0
        %3326 = vmatpush1.msra.mxu0 %v3177
        %3327 = vmatprep.subr.mxu0 0.0
        %3328 = vmatpush1.msra.mxu0 %v3178
        %3329 = vmatprep.subr.mxu0 0.0
        %3330 = vmatpush1.msra.mxu0 %v3179
        %3331 = vmatprep.subr.mxu0 0.0
        %3332 = vmatpush1.msra.mxu0 %v3180
        %3333 = vmatprep.subr.mxu0 0.0
        %3334 = vmatpush1.msra.mxu0 %v3181
        %3335 = vmatprep.subr.mxu0 0.0
        %3336 = vmatpush1.msra.mxu0 %v3182
        %3337 = vmatprep.subr.mxu0 0.0
        %3338 = vmatpush1.msra.mxu0 %v3183
        %3339 = vmatprep.subr.mxu0 0.0
        %3340 = vmatpush1.msra.mxu0 %v3184
        %3341 = vmatprep.mubr.f32.mxu0 %v3108
        %3342 = vmatmul.mubr.f32.gmra.mrb[0].mxu0 %v3107
        %v3343 = vpop.f32.mrb[0].mxu0
        %v3344 = vadd.f32 %v3259, %v3343
        %v3345 = vpop.f32.mrb[0].mxu0
        %3346 = vmatprep.mubr.f32.mxu0 %v3112
        %3347 = vmatmul.mubr.f32.gmra.mrb[0].mxu0 %v3111
        %v3348 = vpop.f32.mrb[0].mxu0
        %v3349 = vadd.f32 %v3264, %v3348
        %v3350 = vpop.f32.mrb[0].mxu0
        %3351 = vmatprep.mubr.f32.mxu0 %v3116
        %3352 = vmatmul.mubr.f32.gmra.mrb[0].mxu0 %v3115
        %v3353 = vpop.f32.mrb[0].mxu0
        %v3354 = vadd.f32 %v3269, %v3353
        %v3355 = vpop.f32.mrb[0].mxu0
        %3356 = vmatprep.mubr.f32.mxu0 %v3120
        %3357 = vmatmul.mubr.f32.gmra.mrb[0].mxu0 %v3119
        %v3358 = vpop.f32.mrb[0].mxu0
        %v3359 = vadd.f32 %v3274, %v3358
        %v3360 = vpop.f32.mrb[0].mxu0
        %3361 = vdwg.mxu0
        %v3362 = vadd.f32 %v2709, %v3344
        %v3363 = vadd.f32 %v2710, %v3349
        %v3364 = vadd.f32 %v2711, %v3354
        %v3365 = vadd.f32 %v2712, %v3359
        %v3366 = vld [vmem:[%s792] sm:$0x1]
        %v3367 = vld [vmem:[%s795] sm:$0x1]
        %3368 = vadd.xlane.f32.xlu0 %v3362
        %v3369 = vpop.xlane.xlu0 %3368
        %3370 = vadd.xlane.f32.xlu0 %v3363
        %v3371 = vpop.xlane.xlu0 %3370
        %3372 = vadd.xlane.f32.xlu0 %v3364
        %v3373 = vpop.xlane.xlu0 %3372
        %3374 = vadd.xlane.f32.xlu0 %v3365
        %v3375 = vpop.xlane.xlu0 %3374
        %v3376 = vmul.f32 %v3369, %v2656
        %v3377 = vmul.f32 %v3371, %v2656
        %v3378 = vmul.f32 %v3373, %v2656
        %v3379 = vmul.f32 %v3375, %v2656
        %v3380 = vsub.f32 %v3362, %v3376
        %v3381 = vsub.f32 %v3363, %v3377
        %v3382 = vsub.f32 %v3364, %v3378
        %v3383 = vsub.f32 %v3365, %v3379
        %v3384 = vmul.f32 %v3380, %v3380
        %v3385 = vmul.f32 %v3381, %v3381
        %v3386 = vmul.f32 %v3382, %v3382
        %v3387 = vmul.f32 %v3383, %v3383
        %3388 = vadd.xlane.f32.xlu0 %v3384
        %v3389 = vpop.xlane.xlu0 %3388
        %3390 = vadd.xlane.f32.xlu0 %v3385
        %v3391 = vpop.xlane.xlu0 %3390
        %3392 = vadd.xlane.f32.xlu0 %v3386
        %v3393 = vpop.xlane.xlu0 %3392
        %3394 = vadd.xlane.f32.xlu0 %v3387
        %v3395 = vpop.xlane.xlu0 %3394
        %v3396 = vmul.f32 %v3389, %v2656
        %v3397 = vmul.f32 %v3391, %v2656
        %v3398 = vmul.f32 %v3393, %v2656
        %v3399 = vmul.f32 %v3395, %v2656
        %v3400 = vadd.f32 %v3396, 1e-12
        %v3401 = vadd.f32 %v3397, 1e-12
        %v3402 = vadd.f32 %v3398, 1e-12
        %v3403 = vadd.f32 %v3399, 1e-12
        %v3404 = vrsqrt.pop %v3400
        %v3405 = vrsqrt.pop %v3401
        %v3406 = vrsqrt.pop %v3402
        %v3407 = vrsqrt.pop %v3403
        %v3408 = vmul.f32 %v3380, %v3404
        %v3409 = vmul.f32 %v3381, %v3405
        %v3410 = vmul.f32 %v3382, %v3406
        %v3411 = vmul.f32 %v3383, %v3407
        %v3413 = vlaneseq
        %v3414 = vshrl.u32 %v3413, 7
        %v3415 = vsub.s32 0, %v3414
        %v3416 = vrot.slane %v3366, %v3415
        %v3418 = vmul.f32 %v3408, %v3416
        %v3419 = vmul.f32 %v3409, %v3416
        %v3420 = vmul.f32 %v3410, %v3416
        %v3421 = vmul.f32 %v3411, %v3416
        %v3423 = vlaneseq
        %v3424 = vshrl.u32 %v3423, 7
        %v3425 = vsub.s32 0, %v3424
        %v3426 = vrot.slane %v3367, %v3425
        %v3428 = vadd.f32 %v3418, %v3426
        %v3429 = vadd.f32 %v3419, %v3426
        %v3430 = vadd.f32 %v3420, %v3426
        %v3431 = vadd.f32 %v3421, %v3426
        %3432 = vst [vmem:[#allocation2] sm:$0xff] %v3428
        %3433 = vst [vmem:[#allocation2 + $0x8] sm:$0xff] %v3429
        %3434 = vst [vmem:[#allocation2 + $0x10] sm:$0xff] %v3430
        %3435 = vst [vmem:[#allocation2 + $0x18] sm:$0xff] %v3431
        %p3436 = scmp.eq.s32.totalorder %s35, 1
        // Predicated region
        $region109: #{hard_share_forward.1} parent=91 // pred_check
          %p3437 = pneg %p3436
        $region110: #{hard_share_forward.1} parent=91 // pred_check_branch
          %3439 = sbr.rel (%p3437) target = $region112
        $region111: #{hard_share_forward.1} parent=91 // pred_region
          %v3440 = vld [vmem:[%s16] sm:$0xff]
          %v3441 = vld [vmem:[%s16 + $0x8] sm:$0xff]
          %v3442 = vld [vmem:[%s16 + $0x10] sm:$0xff]
          %v3443 = vld [vmem:[%s16 + $0x18] sm:$0xff]
          %v3444 = vld [vmem:[%s16 + $0x20] sm:$0xff]
          %v3445 = vld [vmem:[%s16 + $0x28] sm:$0xff]
          %v3446 = vld [vmem:[%s16 + $0x30] sm:$0xff]
          %v3447 = vld [vmem:[%s16 + $0x38] sm:$0xff]
          %v3448 = vld [vmem:[%s16 + $0x40] sm:$0xff]
          %v3449 = vld [vmem:[%s16 + $0x48] sm:$0xff]
          %v3450 = vld [vmem:[%s16 + $0x50] sm:$0xff]
          %v3451 = vld [vmem:[%s16 + $0x58] sm:$0xff]
          %v3452 = vld [vmem:[%s16 + $0x60] sm:$0xff]
          %v3453 = vld [vmem:[%s16 + $0x68] sm:$0xff]
          %v3454 = vld [vmem:[%s16 + $0x70] sm:$0xff]
          %v3455 = vld [vmem:[%s16 + $0x78] sm:$0xff]
          %v3456 = vld [vmem:[%s17] sm:$0x1]
          %v3458 = vlaneseq
          %v3459 = vshrl.u32 %v3458, 7
          %v3460 = vsub.s32 0, %v3459
          %v3461 = vrot.slane %v3456, %v3460
          %3463 = vmatprep.subr.mxu0 0.0
          %3464 = vmatpush1.msra.mxu0 %v3440
          %3465 = vmatprep.subr.mxu0 0.0
          %3466 = vmatpush1.msra.mxu0 %v3441
          %3467 = vmatprep.subr.mxu0 0.0
          %3468 = vmatpush1.msra.mxu0 %v3442
          %3469 = vmatprep.subr.mxu0 0.0
          %3470 = vmatpush1.msra.mxu0 %v3443
          %3471 = vmatprep.subr.mxu0 0.0
          %3472 = vmatpush1.msra.mxu0 %v3444
          %3473 = vmatprep.subr.mxu0 0.0
          %3474 = vmatpush1.msra.mxu0 %v3445
          %3475 = vmatprep.subr.mxu0 0.0
          %3476 = vmatpush1.msra.mxu0 %v3446
          %3477 = vmatprep.subr.mxu0 0.0
          %3478 = vmatpush1.msra.mxu0 %v3447
          %3479 = vmatprep.subr.mxu0 0.0
          %3480 = vmatpush1.msra.mxu0 %v3448
          %3481 = vmatprep.subr.mxu0 0.0
          %3482 = vmatpush1.msra.mxu0 %v3449
          %3483 = vmatprep.subr.mxu0 0.0
          %3484 = vmatpush1.msra.mxu0 %v3450
          %3485 = vmatprep.subr.mxu0 0.0
          %3486 = vmatpush1.msra.mxu0 %v3451
          %3487 = vmatprep.subr.mxu0 0.0
          %3488 = vmatpush1.msra.mxu0 %v3452
          %3489 = vmatprep.subr.mxu0 0.0
          %3490 = vmatpush1.msra.mxu0 %v3453
          %3491 = vmatprep.subr.mxu0 0.0
          %3492 = vmatpush1.msra.mxu0 %v3454
          %3493 = vmatprep.subr.mxu0 0.0
          %3494 = vmatpush1.msra.mxu0 %v3455
          %3495 = vmatprep.subr.mxu0 0.0
          %3496 = vmatpush1.msra.mxu0 0.0
          %3497 = vmatprep.subr.mxu0 0.0
          %3498 = vmatpush1.msra.mxu0 0.0
          %3499 = vmatprep.subr.mxu0 0.0
          %3500 = vmatpush1.msra.mxu0 0.0
          %3501 = vmatprep.subr.mxu0 0.0
          %3502 = vmatpush1.msra.mxu0 0.0
          %3503 = vmatprep.subr.mxu0 0.0
          %3504 = vmatpush1.msra.mxu0 0.0
          %3505 = vmatprep.subr.mxu0 0.0
          %3506 = vmatpush1.msra.mxu0 0.0
          %3507 = vmatprep.subr.mxu0 0.0
          %3508 = vmatpush1.msra.mxu0 0.0
          %3509 = vmatprep.subr.mxu0 0.0
          %3510 = vmatpush1.msra.mxu0 0.0
          %3511 = vmatprep.subr.mxu0 0.0
          %3512 = vmatpush1.msra.mxu0 0.0
          %3513 = vmatprep.subr.mxu0 0.0
          %3514 = vmatpush1.msra.mxu0 0.0
          %3515 = vmatprep.subr.mxu0 0.0
          %3516 = vmatpush1.msra.mxu0 0.0
          %3517 = vmatprep.subr.mxu0 0.0
          %3518 = vmatpush1.msra.mxu0 0.0
          %3519 = vmatprep.subr.mxu0 0.0
          %3520 = vmatpush1.msra.mxu0 0.0
          %3521 = vmatprep.subr.mxu0 0.0
          %3522 = vmatpush1.msra.mxu0 0.0
          %3523 = vmatprep.subr.mxu0 0.0
          %3524 = vmatpush1.msra.mxu0 0.0
          %3525 = vmatprep.subr.mxu0 0.0
          %3526 = vmatpush1.msra.mxu0 0.0
          %3527 = vmatprep.mubr.f32.mxu0 0.0
          %3528 = vmatmul.mubr.f32.gmra.mrb[0].mxu0 %v3428
          %v3529 = vpop.f32.mrb[0].mxu0
          %v3530 = vadd.f32 %v3461, %v3529
          %v3531 = vpop.f32.mrb[0].mxu0
          %3532 = vmatprep.mubr.f32.mxu0 0.0
          %3533 = vmatmul.mubr.f32.gmra.mrb[0].mxu0 %v3429
          %v3534 = vpop.f32.mrb[0].mxu0
          %v3535 = vadd.f32 %v3461, %v3534
          %v3536 = vpop.f32.mrb[0].mxu0
          %3537 = vmatprep.mubr.f32.mxu0 0.0
          %3538 = vmatmul.mubr.f32.gmra.mrb[0].mxu0 %v3430
          %v3539 = vpop.f32.mrb[0].mxu0
          %v3540 = vadd.f32 %v3461, %v3539
          %v3541 = vpop.f32.mrb[0].mxu0
          %3542 = vmatprep.mubr.f32.mxu0 0.0
          %3543 = vmatmul.mubr.f32.gmra.mrb[0].mxu0 %v3431
          %v3544 = vpop.f32.mrb[0].mxu0
          %v3545 = vadd.f32 %v3461, %v3544
          %v3546 = vpop.f32.mrb[0].mxu0
          %3547 = vdwg.mxu0
          %3548 = vst [vmem:[%s18] sm:$0xff] %v3530
          %3549 = vst [vmem:[%s18 + $0x8] sm:$0xff] %v3535
          %3550 = vst [vmem:[%s18 + $0x10] sm:$0xff] %v3540
          %3551 = vst [vmem:[%s18 + $0x18] sm:$0xff] %v3545
        $region112: #{hard_share_forward.1} parent=91 // pred_fallthru
          _
        // Predicated region
        $region113: #{hard_share_forward.1} parent=91 // pred_check
          %p3552 = pneg %p486
        $region114: #{hard_share_forward.1} parent=91 // pred_check_branch
          %3554 = sbr.rel (%p3552) target = $region116
        $region115: #{hard_share_forward.1} parent=91 // pred_region
          _
        $region116: #{hard_share_forward.1} parent=91 // pred_fallthru
          _
        // Predicated region
        $region117: #{hard_share_forward.1} parent=91 // pred_check
          %p3555 = pneg %p486
        $region118: #{hard_share_forward.1} parent=91 // pred_check_branch
          %3557 = sbr.rel (%p3555) target = $region120
        $region119: #{hard_share_forward.1} parent=91 // pred_region
          _
        $region120: #{hard_share_forward.1} parent=91 // pred_fallthru
          _
      $region92: #{hard_share_forward.1} parent=5 // pred_fallthru
        _
      %p3558 = scmp.le.s32.totalorder 2, %s30
      // Predicated region
      $region121: #{hard_share_forward.1} parent=5 // pred_check
        %p3559 = pneg %p3558
      $region122: #{hard_share_forward.1} parent=5 // pred_check_branch
        %3561 = sbr.rel (%p3559) target = $region124
      $region123: #{hard_share_forward.1} parent=5 // pred_region
        %s3562 = ssub.s32 %s30, 2
      $region124: #{hard_share_forward.1} parent=5 // pred_fallthru
        _
    $region6: #{hard_share_forward.1} parent=1 // loop_footer
      %s34 = sadd.s32 1, %s30
    $region7: #{hard_share_forward.1} parent=1 // loop_footer_branch
      %29 = sbr.rel target = $region3
    $region8: #{hard_share_forward.1} parent=1 // loop_exit
      _
    %3563 = vsyncpa [#allocation4], 1
    %s3564 = scalar_lea.sflag [#allocation4], 1
    %3565 = vsyncpa %s3564, 1
    %3566 = vsyncpa [#allocation6], 1
    %s3567 = scalar_lea.sflag [#allocation6], 1
    %3568 = vsyncpa %s3567, 1

</llo_original>
